<compile_context>
chip_gen: v7x
topology: tpu7x:2x2x1
jax: 0.10.0
libtpu: 0.0.40
codegen_flags: <defaults>
</compile_context>

<pallas_src>
import functools

import jax
import jax.numpy as jnp
from jax.experimental import pallas as pl
from jax.experimental.pallas import tpu as pltpu

# ---- tag vocabulary (module relies on a global tag2id) ----
START_TAG = "<start>"
END_TAG = "<end>"
tag2id = {"O": 0, "B-PER": 1, "I-PER": 2, "B-LOC": 3, START_TAG: 4, END_TAG: 5}
TAG_SIZE = len(tag2id)
START_ID = tag2id[START_TAG]
END_ID = tag2id[END_TAG]

NEG = -10000.0
LANES = 128
SUBLANES = 8
OUT_LANES = 128


def _round_up(x, m):
    return (x + m - 1) // m * m


def _crf_fwd_kernel(feats_ref, mask_ref, trans_ref, out_ref,
                    alpha_ref, et_ref, r_ref, *, unroll):
    """One grid step == one (batch tile, time chunk).

    feats_ref : (TCHUNK, B_TILE, T_pad)  emission scores for this chunk
    mask_ref  : (TCHUNK, B_TILE, 1)      mask for this chunk
    trans_ref : (T_pad, T_pad)           padded transition matrix (resident in VMEM)
    out_ref   : (B_TILE, 128)            log-partition, broadcast across lanes
    alpha_ref : (B_TILE, T_pad)          alpha carried across time chunks (VMEM scratch)
    et_ref    : (T_pad, T_pad)           E^T[j,i] = exp(trans[i,j] - r_i)   (precomputed)
    r_ref     : (1, T_pad)               r_i = max_j trans[i,j]             (precomputed)
    """
    c = pl.program_id(1)                      # time-chunk index (sequential / "arbitrary")
    n_chunks = pl.num_programs(1)
    B, T = alpha_ref.shape
    TC = feats_ref.shape[0]

    # ---- one-time setup per batch tile (first time chunk) ----
    @pl.when(c == 0)
    def _init():
        tT = trans_ref[...].T                             # tT[j, i] = trans[i, j]
        r_row = jnp.max(tT, axis=0, keepdims=True)        # (1, T): r_i = max_j trans[i, j]
        et_ref[...] = jnp.exp(tT - r_row)                 # E^T[j, i] = exp(trans[i, j] - r_i)
        r_ref[...] = r_row
        col = jax.lax.broadcasted_iota(jnp.int32, (B, T), 1)
        alpha_ref[...] = jnp.where(col == START_ID, 0.0, NEG).astype(jnp.float32)

    et = et_ref[...]                                      # (T, T) loop-invariant
    r_row = r_ref[...]                                    # (1, T) loop-invariant

    def step(s, alpha):
        feat = feats_ref[s].astype(jnp.float32)           # (B, T)
        m = mask_ref[s]                                   # (B, 1)
        m_b = jnp.max(alpha, axis=1, keepdims=True)       # (B, 1) per-batch max
        ea = jnp.exp(alpha - m_b)                         # (B, T); -1e4 sentinels -> exactly 0
        s_mat = jnp.dot(ea, et,                           # (B, T) on the MXU
                        preferred_element_type=jnp.float32,
                        precision=jax.lax.Precision.HIGHEST)
        # emission hoisted out of the reduction (constant over the reduced axis)
        new_alpha = jnp.log(s_mat) + m_b + r_row + feat
        return jnp.where(m > 0.5, new_alpha, alpha)       # masked steps carry alpha through

    alpha = jax.lax.fori_loop(0, TC, step, alpha_ref[...], unroll=unroll)
    alpha_ref[...] = alpha

    # ---- finalize at the last time chunk ----
    @pl.when(c == n_chunks - 1)
    def _finalize():
        end_row = trans_ref[pl.ds(END_ID, 1), :]          # (1, T) transition-to-<end> row
        final = alpha + end_row                           # (B, T)
        fmx = jnp.max(final, axis=1, keepdims=True)       # (B, 1)
        flse = fmx + jnp.log(jnp.sum(jnp.exp(final - fmx), axis=1, keepdims=True))
        out_ref[...] = jnp.broadcast_to(flse, out_ref.shape)   # lane-dense store


def crf_forward(feats, mask, transition):
    """feats: (seq_len, batch, tag_size), mask: (seq_len, batch) -> (batch,) f32 log-partition."""
    seq_len, batch, tag_size = feats.shape

    # lane-dense tag axis (>=128), sublane-aligned batch, time padded to a whole chunk count
    t_pad = _round_up(max(tag_size, LANES), LANES)
    b_tile = 128 if batch > 128 else _round_up(batch, SUBLANES)
    b_pad = _round_up(batch, b_tile)
    t_chunk = min(seq_len, 64)
    s_pad = _round_up(seq_len, t_chunk)
    n_chunks = s_pad // t_chunk
    n_b = b_pad // b_tile

    # padding: transition sentinels -1e4, feats 0, mask 0 (padded tags/batch/time are inert)
    feats_p = jnp.zeros((s_pad, b_pad, t_pad), dtype=feats.dtype)
    feats_p = feats_p.at[:seq_len, :batch, :tag_size].set(feats)
    mask_p = jnp.zeros((s_pad, b_pad, 1), dtype=jnp.float32)
    mask_p = mask_p.at[:seq_len, :batch, 0].set(mask.astype(jnp.float32))
    trans_p = jnp.full((t_pad, t_pad), NEG, dtype=jnp.float32)
    trans_p = trans_p.at[:tag_size, :tag_size].set(transition.astype(jnp.float32))

    unroll = True if t_chunk <= 32 else 8
    kernel = functools.partial(_crf_fwd_kernel, unroll=unroll)

    out = pl.pallas_call(
        kernel,
        out_shape=jax.ShapeDtypeStruct((b_pad, OUT_LANES), jnp.float32),
        grid_spec=pltpu.PrefetchScalarGridSpec(
            num_scalar_prefetch=0,
            grid=(n_b, n_chunks),
            in_specs=[
                pl.BlockSpec((t_chunk, b_tile, t_pad), lambda b, c: (c, b, 0)),  # feats chunk
                pl.BlockSpec((t_chunk, b_tile, 1), lambda b, c: (c, b, 0)),      # mask chunk
                pl.BlockSpec((t_pad, t_pad), lambda b, c: (0, 0)),               # transition
            ],
            out_specs=pl.BlockSpec((b_tile, OUT_LANES), lambda b, c: (b, 0)),
            scratch_shapes=[
                pltpu.VMEM((b_tile, t_pad), jnp.float32),   # alpha carry
                pltpu.VMEM((t_pad, t_pad), jnp.float32),    # E^T = exp(trans - r)^T
                pltpu.VMEM((1, t_pad), jnp.float32),        # r (row maxima of trans)
            ],
        ),
        compiler_params=pltpu.CompilerParams(
            # batch tiles are independent (shard across v7x's 2 TCs); time is a recurrence
            dimension_semantics=("parallel", "arbitrary"),
        ),
    )(feats_p, mask_p, trans_p)
    return out[:batch, 0]


def crf_forward_ref(feats, mask, transition):
    """Pure-JAX reference mirroring the PyTorch loop exactly."""
    seq_len, batch, tag_size = feats.shape
    alpha = jnp.full((batch, tag_size), NEG, dtype=jnp.float32)
    alpha = alpha.at[:, START_ID].set(0.0)
    for t in range(seq_len):
        feat = feats[t]
        scores = alpha[:, None, :] + transition[None, :, :] + feat[:, :, None]
        lse = jax.scipy.special.logsumexp(scores, axis=-1)
        m = mask[t][:, None]
        alpha = lse * m + alpha * (1.0 - m)
    alpha = alpha + transition[END_ID][None, :]
    return jax.scipy.special.logsumexp(alpha, axis=-1)


def init_transition(key, tag_size):
    """Deterministic equivalent of CRFLayer.__init__ / reset_parameters."""
    trans = jax.random.normal(key, (tag_size, tag_size), dtype=jnp.float32)
    trans = trans.at[START_ID, :].set(NEG)    # nothing transitions INTO <start>
    trans = trans.at[:, END_ID].set(NEG)      # nothing transitions FROM <end>
    return trans


if __name__ == "__main__":
    key = jax.random.PRNGKey(0)
    k_trans, k_feats = jax.random.split(key)

    seq_len, batch = 8, 2
    transition = init_transition(k_trans, TAG_SIZE)
    feats = jax.random.normal(k_feats, (seq_len, batch, TAG_SIZE), dtype=jnp.float32)

    # mask: first sequence full length, second padded after 5 steps
    mask = jnp.ones((seq_len, batch), dtype=jnp.float32)
    mask = mask.at[5:, 1].set(0.0)

    out = jax.block_until_ready(crf_forward(feats, mask, transition))
    ref = crf_forward_ref(feats, mask, transition)

    assert out.shape == (batch,)
    assert jnp.allclose(out, ref, rtol=1e-5, atol=1e-3), (out, ref)
    print("KERNEL_OK")
</pallas_src>

<mosaic_0001>
module attributes {stable_mosaic.version = 11 : i64} {
  func.func @_crf_fwd_kernel(%arg0: i32, %arg1: i32, %arg2: memref<8x8x128xf32, #tpu.memory_space<vmem>>, %arg3: memref<8x8x1xf32, #tpu.memory_space<vmem>>, %arg4: memref<128x128xf32, #tpu.memory_space<vmem>>, %arg5: memref<8x128xf32, #tpu.memory_space<vmem>>, %arg6: memref<8x128xf32, #tpu.memory_space<vmem>>, %arg7: memref<128x128xf32, #tpu.memory_space<vmem>>, %arg8: memref<1x128xf32, #tpu.memory_space<vmem>>) attributes {dimension_semantics = [#tpu.dimension_semantics<parallel>, #tpu.dimension_semantics<arbitrary>], iteration_bounds = array<i64: 1, 1>, scalar_prefetch = 0 : i64, scratch_operands = 3 : i64, tpu.core_type = #tpu.core_type<tc>, window_params = [{transform_indices = @transform_0, window_bounds = array<i64: 8, 8, 128>}, {transform_indices = @transform_1, window_bounds = array<i64: 8, 8, 1>}, {pipeline_mode = #tpu.pipeline_mode<synchronous>, transform_indices = @transform_2, window_bounds = array<i64: 128, 128>}, {transform_indices = @transform_3, window_bounds = array<i64: 8, 128>}]} {
    %c0_i32 = arith.constant 0 : i32
    %0 = arith.cmpi eq, %arg1, %c0_i32 : i32
    %1 = arith.extui %0 : i1 to i32
    %c0_i32_0 = arith.constant 0 : i32
    %2 = arith.cmpi ne, %1, %c0_i32_0 : i32
    scf.if %2 {
      %c0_66 = arith.constant 0 : index
      %c0_67 = arith.constant 0 : index
      %194 = vector.load %arg4[%c0_66, %c0_67] : memref<128x128xf32, #tpu.memory_space<vmem>>, vector<128x128xf32>
      %195 = tpu.transpose %194, [1, 0] : vector<128x128xf32> -> vector<128x128xf32>
      %cst_68 = arith.constant dense<0xFF800000> : vector<128xf32>
      %196 = vector.multi_reduction <maximumf>, %195, %cst_68 [0] : vector<128x128xf32> to vector<128xf32>
      %197 = vector.shape_cast %196 : vector<128xf32> to vector<1x128xf32>
      %198 = vector.broadcast %197 : vector<1x128xf32> to vector<128x128xf32>
      %199 = arith.subf %195, %198 : vector<128x128xf32>
      %200 = math.exp %199 : vector<128x128xf32>
      %c0_69 = arith.constant 0 : index
      %c0_70 = arith.constant 0 : index
      %201 = vector.load %arg7[%c0_69, %c0_70] : memref<128x128xf32, #tpu.memory_space<vmem>>, vector<128x128xf32>
      tpu.vector_store %arg7[%c0_69, %c0_70], %200 {strides = array<i32>} : memref<128x128xf32, #tpu.memory_space<vmem>>, vector<128x128xf32>,
      %c0_71 = arith.constant 0 : index
      %c0_72 = arith.constant 0 : index
      %202 = vector.load %arg8[%c0_71, %c0_72] : memref<1x128xf32, #tpu.memory_space<vmem>>, vector<1x128xf32>
      tpu.vector_store %arg8[%c0_71, %c0_72], %197 {strides = array<i32>} : memref<1x128xf32, #tpu.memory_space<vmem>>, vector<1x128xf32>,
      %203 = tpu.iota {dimensions = array<i32: 1>} : vector<8x128xi32>
      %c4_i32_73 = arith.constant 4 : i32
      %204 = vector.broadcast %c4_i32_73 : i32 to vector<8x128xi32>
      %205 = arith.cmpi eq, %203, %204 : vector<8x128xi32>
      %cst_74 = arith.constant 0.000000e+00 : f32
      %cst_75 = arith.constant -1.000000e+04 : f32
      %206 = vector.broadcast %cst_74 : f32 to vector<8x128xf32>
      %207 = vector.broadcast %cst_75 : f32 to vector<8x128xf32>
      %208 = arith.select %205, %206, %207 : vector<8x128xi1>, vector<8x128xf32>
      %c0_76 = arith.constant 0 : index
      %c0_77 = arith.constant 0 : index
      %209 = vector.load %arg6[%c0_76, %c0_77] : memref<8x128xf32, #tpu.memory_space<vmem>>, vector<8x128xf32>
      tpu.vector_store %arg6[%c0_76, %c0_77], %208 {strides = array<i32>} : memref<8x128xf32, #tpu.memory_space<vmem>>, vector<8x128xf32>,
    } else {
    }
    %c0 = arith.constant 0 : index
    %c0_1 = arith.constant 0 : index
    %3 = vector.load %arg7[%c0, %c0_1] : memref<128x128xf32, #tpu.memory_space<vmem>>, vector<128x128xf32>
    %c0_2 = arith.constant 0 : index
    %c0_3 = arith.constant 0 : index
    %4 = vector.load %arg8[%c0_2, %c0_3] : memref<1x128xf32, #tpu.memory_space<vmem>>, vector<1x128xf32>
    %c0_4 = arith.constant 0 : index
    %c0_5 = arith.constant 0 : index
    %5 = vector.load %arg6[%c0_4, %c0_5] : memref<8x128xf32, #tpu.memory_space<vmem>>, vector<8x128xf32>
    %c0_i32_6 = arith.constant 0 : i32
    %6 = arith.index_cast %c0_i32_6 : i32 to index
    %c0_7 = arith.constant 0 : index
    %c0_8 = arith.constant 0 : index
    %7 = vector.load %arg2[%6, %c0_7, %c0_8] : memref<8x8x128xf32, #tpu.memory_space<vmem>>, vector<1x8x128xf32>
    %8 = vector.shape_cast %7 : vector<1x8x128xf32> to vector<8x128xf32>
    %9 = arith.index_cast %c0_i32_6 : i32 to index
    %c0_9 = arith.constant 0 : index
    %c0_10 = arith.constant 0 : index
    %10 = vector.load %arg3[%9, %c0_9, %c0_10] : memref<8x8x1xf32, #tpu.memory_space<vmem>>, vector<1x8x1xf32>
    %11 = vector.shape_cast %10 : vector<1x8x1xf32> to vector<8x1xf32>
    %cst = arith.constant dense<0xFF800000> : vector<8xf32>
    %12 = vector.multi_reduction <maximumf>, %5, %cst [1] : vector<8x128xf32> to vector<8xf32>
    %13 = vector.shape_cast %12 : vector<8xf32> to vector<8x1xf32>
    %14 = vector.broadcast %13 : vector<8x1xf32> to vector<8x128xf32>
    %15 = arith.subf %5, %14 : vector<8x128xf32>
    %16 = math.exp %15 : vector<8x128xf32>
    %cst_11 = arith.constant dense<0.000000e+00> : vector<8x128xf32>
    %17 = tpu.matmul %16, %3, %cst_11 {dimension_numbers = #tpu.dot_dimension_numbers<[1], [0], [0], [1], [0, 0, 1, 1], [], []>, precision = #tpu.contract_precision<fp32>} : vector<8x128xf32>, vector<128x128xf32>, vector<8x128xf32> -> vector<8x128xf32>
    %18 = math.log %17 : vector<8x128xf32>
    %19 = vector.broadcast %13 : vector<8x1xf32> to vector<8x128xf32>
    %20 = arith.addf %18, %19 : vector<8x128xf32>
    %21 = vector.broadcast %4 : vector<1x128xf32> to vector<8x128xf32>
    %22 = arith.addf %20, %21 : vector<8x128xf32>
    %23 = arith.addf %22, %8 : vector<8x128xf32>
    %cst_12 = arith.constant 5.000000e-01 : f32
    %24 = vector.broadcast %cst_12 : f32 to vector<8x1xf32>
    %25 = arith.cmpf ogt, %11, %24 : vector<8x1xf32>
    %26 = vector.shape_cast %25 : vector<8x1xi1> to vector<8x1xi1>
    %27 = vector.broadcast %26 : vector<8x1xi1> to vector<8x128xi1>
    %28 = arith.select %27, %23, %5 : vector<8x128xi1>, vector<8x128xf32>
    %c1_i32 = arith.constant 1 : i32
    %29 = arith.index_cast %c1_i32 : i32 to index
    %c0_13 = arith.constant 0 : index
    %c0_14 = arith.constant 0 : index
    %30 = vector.load %arg2[%29, %c0_13, %c0_14] : memref<8x8x128xf32, #tpu.memory_space<vmem>>, vector<1x8x128xf32>
    %31 = vector.shape_cast %30 : vector<1x8x128xf32> to vector<8x128xf32>
    %32 = arith.index_cast %c1_i32 : i32 to index
    %c0_15 = arith.constant 0 : index
    %c0_16 = arith.constant 0 : index
    %33 = vector.load %arg3[%32, %c0_15, %c0_16] : memref<8x8x1xf32, #tpu.memory_space<vmem>>, vector<1x8x1xf32>
    %34 = vector.shape_cast %33 : vector<1x8x1xf32> to vector<8x1xf32>
    %cst_17 = arith.constant dense<0xFF800000> : vector<8xf32>
    %35 = vector.multi_reduction <maximumf>, %28, %cst_17 [1] : vector<8x128xf32> to vector<8xf32>
    %36 = vector.shape_cast %35 : vector<8xf32> to vector<8x1xf32>
    %37 = vector.broadcast %36 : vector<8x1xf32> to vector<8x128xf32>
    %38 = arith.subf %28, %37 : vector<8x128xf32>
    %39 = math.exp %38 : vector<8x128xf32>
    %cst_18 = arith.constant dense<0.000000e+00> : vector<8x128xf32>
    %40 = tpu.matmul %39, %3, %cst_18 {dimension_numbers = #tpu.dot_dimension_numbers<[1], [0], [0], [1], [0, 0, 1, 1], [], []>, precision = #tpu.contract_precision<fp32>} : vector<8x128xf32>, vector<128x128xf32>, vector<8x128xf32> -> vector<8x128xf32>
    %41 = math.log %40 : vector<8x128xf32>
    %42 = vector.broadcast %36 : vector<8x1xf32> to vector<8x128xf32>
    %43 = arith.addf %41, %42 : vector<8x128xf32>
    %44 = vector.broadcast %4 : vector<1x128xf32> to vector<8x128xf32>
    %45 = arith.addf %43, %44 : vector<8x128xf32>
    %46 = arith.addf %45, %31 : vector<8x128xf32>
    %cst_19 = arith.constant 5.000000e-01 : f32
    %47 = vector.broadcast %cst_19 : f32 to vector<8x1xf32>
    %48 = arith.cmpf ogt, %34, %47 : vector<8x1xf32>
    %49 = vector.shape_cast %48 : vector<8x1xi1> to vector<8x1xi1>
    %50 = vector.broadcast %49 : vector<8x1xi1> to vector<8x128xi1>
    %51 = arith.select %50, %46, %28 : vector<8x128xi1>, vector<8x128xf32>
    %c2_i32 = arith.constant 2 : i32
    %52 = arith.index_cast %c2_i32 : i32 to index
    %c0_20 = arith.constant 0 : index
    %c0_21 = arith.constant 0 : index
    %53 = vector.load %arg2[%52, %c0_20, %c0_21] : memref<8x8x128xf32, #tpu.memory_space<vmem>>, vector<1x8x128xf32>
    %54 = vector.shape_cast %53 : vector<1x8x128xf32> to vector<8x128xf32>
    %55 = arith.index_cast %c2_i32 : i32 to index
    %c0_22 = arith.constant 0 : index
    %c0_23 = arith.constant 0 : index
    %56 = vector.load %arg3[%55, %c0_22, %c0_23] : memref<8x8x1xf32, #tpu.memory_space<vmem>>, vector<1x8x1xf32>
    %57 = vector.shape_cast %56 : vector<1x8x1xf32> to vector<8x1xf32>
    %cst_24 = arith.constant dense<0xFF800000> : vector<8xf32>
    %58 = vector.multi_reduction <maximumf>, %51, %cst_24 [1] : vector<8x128xf32> to vector<8xf32>
    %59 = vector.shape_cast %58 : vector<8xf32> to vector<8x1xf32>
    %60 = vector.broadcast %59 : vector<8x1xf32> to vector<8x128xf32>
    %61 = arith.subf %51, %60 : vector<8x128xf32>
    %62 = math.exp %61 : vector<8x128xf32>
    %cst_25 = arith.constant dense<0.000000e+00> : vector<8x128xf32>
    %63 = tpu.matmul %62, %3, %cst_25 {dimension_numbers = #tpu.dot_dimension_numbers<[1], [0], [0], [1], [0, 0, 1, 1], [], []>, precision = #tpu.contract_precision<fp32>} : vector<8x128xf32>, vector<128x128xf32>, vector<8x128xf32> -> vector<8x128xf32>
    %64 = math.log %63 : vector<8x128xf32>
    %65 = vector.broadcast %59 : vector<8x1xf32> to vector<8x128xf32>
    %66 = arith.addf %64, %65 : vector<8x128xf32>
    %67 = vector.broadcast %4 : vector<1x128xf32> to vector<8x128xf32>
    %68 = arith.addf %66, %67 : vector<8x128xf32>
    %69 = arith.addf %68, %54 : vector<8x128xf32>
    %cst_26 = arith.constant 5.000000e-01 : f32
    %70 = vector.broadcast %cst_26 : f32 to vector<8x1xf32>
    %71 = arith.cmpf ogt, %57, %70 : vector<8x1xf32>
    %72 = vector.shape_cast %71 : vector<8x1xi1> to vector<8x1xi1>
    %73 = vector.broadcast %72 : vector<8x1xi1> to vector<8x128xi1>
    %74 = arith.select %73, %69, %51 : vector<8x128xi1>, vector<8x128xf32>
    %c3_i32 = arith.constant 3 : i32
    %75 = arith.index_cast %c3_i32 : i32 to index
    %c0_27 = arith.constant 0 : index
    %c0_28 = arith.constant 0 : index
    %76 = vector.load %arg2[%75, %c0_27, %c0_28] : memref<8x8x128xf32, #tpu.memory_space<vmem>>, vector<1x8x128xf32>
    %77 = vector.shape_cast %76 : vector<1x8x128xf32> to vector<8x128xf32>
    %78 = arith.index_cast %c3_i32 : i32 to index
    %c0_29 = arith.constant 0 : index
    %c0_30 = arith.constant 0 : index
    %79 = vector.load %arg3[%78, %c0_29, %c0_30] : memref<8x8x1xf32, #tpu.memory_space<vmem>>, vector<1x8x1xf32>
    %80 = vector.shape_cast %79 : vector<1x8x1xf32> to vector<8x1xf32>
    %cst_31 = arith.constant dense<0xFF800000> : vector<8xf32>
    %81 = vector.multi_reduction <maximumf>, %74, %cst_31 [1] : vector<8x128xf32> to vector<8xf32>
    %82 = vector.shape_cast %81 : vector<8xf32> to vector<8x1xf32>
    %83 = vector.broadcast %82 : vector<8x1xf32> to vector<8x128xf32>
    %84 = arith.subf %74, %83 : vector<8x128xf32>
    %85 = math.exp %84 : vector<8x128xf32>
    %cst_32 = arith.constant dense<0.000000e+00> : vector<8x128xf32>
    %86 = tpu.matmul %85, %3, %cst_32 {dimension_numbers = #tpu.dot_dimension_numbers<[1], [0], [0], [1], [0, 0, 1, 1], [], []>, precision = #tpu.contract_precision<fp32>} : vector<8x128xf32>, vector<128x128xf32>, vector<8x128xf32> -> vector<8x128xf32>
    %87 = math.log %86 : vector<8x128xf32>
    %88 = vector.broadcast %82 : vector<8x1xf32> to vector<8x128xf32>
    %89 = arith.addf %87, %88 : vector<8x128xf32>
    %90 = vector.broadcast %4 : vector<1x128xf32> to vector<8x128xf32>
    %91 = arith.addf %89, %90 : vector<8x128xf32>
    %92 = arith.addf %91, %77 : vector<8x128xf32>
    %cst_33 = arith.constant 5.000000e-01 : f32
    %93 = vector.broadcast %cst_33 : f32 to vector<8x1xf32>
    %94 = arith.cmpf ogt, %80, %93 : vector<8x1xf32>
    %95 = vector.shape_cast %94 : vector<8x1xi1> to vector<8x1xi1>
    %96 = vector.broadcast %95 : vector<8x1xi1> to vector<8x128xi1>
    %97 = arith.select %96, %92, %74 : vector<8x128xi1>, vector<8x128xf32>
    %c4_i32 = arith.constant 4 : i32
    %98 = arith.index_cast %c4_i32 : i32 to index
    %c0_34 = arith.constant 0 : index
    %c0_35 = arith.constant 0 : index
    %99 = vector.load %arg2[%98, %c0_34, %c0_35] : memref<8x8x128xf32, #tpu.memory_space<vmem>>, vector<1x8x128xf32>
    %100 = vector.shape_cast %99 : vector<1x8x128xf32> to vector<8x128xf32>
    %101 = arith.index_cast %c4_i32 : i32 to index
    %c0_36 = arith.constant 0 : index
    %c0_37 = arith.constant 0 : index
    %102 = vector.load %arg3[%101, %c0_36, %c0_37] : memref<8x8x1xf32, #tpu.memory_space<vmem>>, vector<1x8x1xf32>
    %103 = vector.shape_cast %102 : vector<1x8x1xf32> to vector<8x1xf32>
    %cst_38 = arith.constant dense<0xFF800000> : vector<8xf32>
    %104 = vector.multi_reduction <maximumf>, %97, %cst_38 [1] : vector<8x128xf32> to vector<8xf32>
    %105 = vector.shape_cast %104 : vector<8xf32> to vector<8x1xf32>
    %106 = vector.broadcast %105 : vector<8x1xf32> to vector<8x128xf32>
    %107 = arith.subf %97, %106 : vector<8x128xf32>
    %108 = math.exp %107 : vector<8x128xf32>
    %cst_39 = arith.constant dense<0.000000e+00> : vector<8x128xf32>
    %109 = tpu.matmul %108, %3, %cst_39 {dimension_numbers = #tpu.dot_dimension_numbers<[1], [0], [0], [1], [0, 0, 1, 1], [], []>, precision = #tpu.contract_precision<fp32>} : vector<8x128xf32>, vector<128x128xf32>, vector<8x128xf32> -> vector<8x128xf32>
    %110 = math.log %109 : vector<8x128xf32>
    %111 = vector.broadcast %105 : vector<8x1xf32> to vector<8x128xf32>
    %112 = arith.addf %110, %111 : vector<8x128xf32>
    %113 = vector.broadcast %4 : vector<1x128xf32> to vector<8x128xf32>
    %114 = arith.addf %112, %113 : vector<8x128xf32>
    %115 = arith.addf %114, %100 : vector<8x128xf32>
    %cst_40 = arith.constant 5.000000e-01 : f32
    %116 = vector.broadcast %cst_40 : f32 to vector<8x1xf32>
    %117 = arith.cmpf ogt, %103, %116 : vector<8x1xf32>
    %118 = vector.shape_cast %117 : vector<8x1xi1> to vector<8x1xi1>
    %119 = vector.broadcast %118 : vector<8x1xi1> to vector<8x128xi1>
    %120 = arith.select %119, %115, %97 : vector<8x128xi1>, vector<8x128xf32>
    %c5_i32 = arith.constant 5 : i32
    %121 = arith.index_cast %c5_i32 : i32 to index
    %c0_41 = arith.constant 0 : index
    %c0_42 = arith.constant 0 : index
    %122 = vector.load %arg2[%121, %c0_41, %c0_42] : memref<8x8x128xf32, #tpu.memory_space<vmem>>, vector<1x8x128xf32>
    %123 = vector.shape_cast %122 : vector<1x8x128xf32> to vector<8x128xf32>
    %124 = arith.index_cast %c5_i32 : i32 to index
    %c0_43 = arith.constant 0 : index
    %c0_44 = arith.constant 0 : index
    %125 = vector.load %arg3[%124, %c0_43, %c0_44] : memref<8x8x1xf32, #tpu.memory_space<vmem>>, vector<1x8x1xf32>
    %126 = vector.shape_cast %125 : vector<1x8x1xf32> to vector<8x1xf32>
    %cst_45 = arith.constant dense<0xFF800000> : vector<8xf32>
    %127 = vector.multi_reduction <maximumf>, %120, %cst_45 [1] : vector<8x128xf32> to vector<8xf32>
    %128 = vector.shape_cast %127 : vector<8xf32> to vector<8x1xf32>
    %129 = vector.broadcast %128 : vector<8x1xf32> to vector<8x128xf32>
    %130 = arith.subf %120, %129 : vector<8x128xf32>
    %131 = math.exp %130 : vector<8x128xf32>
    %cst_46 = arith.constant dense<0.000000e+00> : vector<8x128xf32>
    %132 = tpu.matmul %131, %3, %cst_46 {dimension_numbers = #tpu.dot_dimension_numbers<[1], [0], [0], [1], [0, 0, 1, 1], [], []>, precision = #tpu.contract_precision<fp32>} : vector<8x128xf32>, vector<128x128xf32>, vector<8x128xf32> -> vector<8x128xf32>
    %133 = math.log %132 : vector<8x128xf32>
    %134 = vector.broadcast %128 : vector<8x1xf32> to vector<8x128xf32>
    %135 = arith.addf %133, %134 : vector<8x128xf32>
    %136 = vector.broadcast %4 : vector<1x128xf32> to vector<8x128xf32>
    %137 = arith.addf %135, %136 : vector<8x128xf32>
    %138 = arith.addf %137, %123 : vector<8x128xf32>
    %cst_47 = arith.constant 5.000000e-01 : f32
    %139 = vector.broadcast %cst_47 : f32 to vector<8x1xf32>
    %140 = arith.cmpf ogt, %126, %139 : vector<8x1xf32>
    %141 = vector.shape_cast %140 : vector<8x1xi1> to vector<8x1xi1>
    %142 = vector.broadcast %141 : vector<8x1xi1> to vector<8x128xi1>
    %143 = arith.select %142, %138, %120 : vector<8x128xi1>, vector<8x128xf32>
    %c6_i32 = arith.constant 6 : i32
    %144 = arith.index_cast %c6_i32 : i32 to index
    %c0_48 = arith.constant 0 : index
    %c0_49 = arith.constant 0 : index
    %145 = vector.load %arg2[%144, %c0_48, %c0_49] : memref<8x8x128xf32, #tpu.memory_space<vmem>>, vector<1x8x128xf32>
    %146 = vector.shape_cast %145 : vector<1x8x128xf32> to vector<8x128xf32>
    %147 = arith.index_cast %c6_i32 : i32 to index
    %c0_50 = arith.constant 0 : index
    %c0_51 = arith.constant 0 : index
    %148 = vector.load %arg3[%147, %c0_50, %c0_51] : memref<8x8x1xf32, #tpu.memory_space<vmem>>, vector<1x8x1xf32>
    %149 = vector.shape_cast %148 : vector<1x8x1xf32> to vector<8x1xf32>
    %cst_52 = arith.constant dense<0xFF800000> : vector<8xf32>
    %150 = vector.multi_reduction <maximumf>, %143, %cst_52 [1] : vector<8x128xf32> to vector<8xf32>
    %151 = vector.shape_cast %150 : vector<8xf32> to vector<8x1xf32>
    %152 = vector.broadcast %151 : vector<8x1xf32> to vector<8x128xf32>
    %153 = arith.subf %143, %152 : vector<8x128xf32>
    %154 = math.exp %153 : vector<8x128xf32>
    %cst_53 = arith.constant dense<0.000000e+00> : vector<8x128xf32>
    %155 = tpu.matmul %154, %3, %cst_53 {dimension_numbers = #tpu.dot_dimension_numbers<[1], [0], [0], [1], [0, 0, 1, 1], [], []>, precision = #tpu.contract_precision<fp32>} : vector<8x128xf32>, vector<128x128xf32>, vector<8x128xf32> -> vector<8x128xf32>
    %156 = math.log %155 : vector<8x128xf32>
    %157 = vector.broadcast %151 : vector<8x1xf32> to vector<8x128xf32>
    %158 = arith.addf %156, %157 : vector<8x128xf32>
    %159 = vector.broadcast %4 : vector<1x128xf32> to vector<8x128xf32>
    %160 = arith.addf %158, %159 : vector<8x128xf32>
    %161 = arith.addf %160, %146 : vector<8x128xf32>
    %cst_54 = arith.constant 5.000000e-01 : f32
    %162 = vector.broadcast %cst_54 : f32 to vector<8x1xf32>
    %163 = arith.cmpf ogt, %149, %162 : vector<8x1xf32>
    %164 = vector.shape_cast %163 : vector<8x1xi1> to vector<8x1xi1>
    %165 = vector.broadcast %164 : vector<8x1xi1> to vector<8x128xi1>
    %166 = arith.select %165, %161, %143 : vector<8x128xi1>, vector<8x128xf32>
    %c7_i32 = arith.constant 7 : i32
    %167 = arith.index_cast %c7_i32 : i32 to index
    %c0_55 = arith.constant 0 : index
    %c0_56 = arith.constant 0 : index
    %168 = vector.load %arg2[%167, %c0_55, %c0_56] : memref<8x8x128xf32, #tpu.memory_space<vmem>>, vector<1x8x128xf32>
    %169 = vector.shape_cast %168 : vector<1x8x128xf32> to vector<8x128xf32>
    %170 = arith.index_cast %c7_i32 : i32 to index
    %c0_57 = arith.constant 0 : index
    %c0_58 = arith.constant 0 : index
    %171 = vector.load %arg3[%170, %c0_57, %c0_58] : memref<8x8x1xf32, #tpu.memory_space<vmem>>, vector<1x8x1xf32>
    %172 = vector.shape_cast %171 : vector<1x8x1xf32> to vector<8x1xf32>
    %cst_59 = arith.constant dense<0xFF800000> : vector<8xf32>
    %173 = vector.multi_reduction <maximumf>, %166, %cst_59 [1] : vector<8x128xf32> to vector<8xf32>
    %174 = vector.shape_cast %173 : vector<8xf32> to vector<8x1xf32>
    %175 = vector.broadcast %174 : vector<8x1xf32> to vector<8x128xf32>
    %176 = arith.subf %166, %175 : vector<8x128xf32>
    %177 = math.exp %176 : vector<8x128xf32>
    %cst_60 = arith.constant dense<0.000000e+00> : vector<8x128xf32>
    %178 = tpu.matmul %177, %3, %cst_60 {dimension_numbers = #tpu.dot_dimension_numbers<[1], [0], [0], [1], [0, 0, 1, 1], [], []>, precision = #tpu.contract_precision<fp32>} : vector<8x128xf32>, vector<128x128xf32>, vector<8x128xf32> -> vector<8x128xf32>
    %179 = math.log %178 : vector<8x128xf32>
    %180 = vector.broadcast %174 : vector<8x1xf32> to vector<8x128xf32>
    %181 = arith.addf %179, %180 : vector<8x128xf32>
    %182 = vector.broadcast %4 : vector<1x128xf32> to vector<8x128xf32>
    %183 = arith.addf %181, %182 : vector<8x128xf32>
    %184 = arith.addf %183, %169 : vector<8x128xf32>
    %cst_61 = arith.constant 5.000000e-01 : f32
    %185 = vector.broadcast %cst_61 : f32 to vector<8x1xf32>
    %186 = arith.cmpf ogt, %172, %185 : vector<8x1xf32>
    %187 = vector.shape_cast %186 : vector<8x1xi1> to vector<8x1xi1>
    %188 = vector.broadcast %187 : vector<8x1xi1> to vector<8x128xi1>
    %189 = arith.select %188, %184, %166 : vector<8x128xi1>, vector<8x128xf32>
    %c8_i32 = arith.constant 8 : i32
    %c0_62 = arith.constant 0 : index
    %c0_63 = arith.constant 0 : index
    %190 = vector.load %arg6[%c0_62, %c0_63] : memref<8x128xf32, #tpu.memory_space<vmem>>, vector<8x128xf32>
    tpu.vector_store %arg6[%c0_62, %c0_63], %189 {strides = array<i32>} : memref<8x128xf32, #tpu.memory_space<vmem>>, vector<8x128xf32>,
    %c0_i32_64 = arith.constant 0 : i32
    %191 = arith.cmpi eq, %arg1, %c0_i32_64 : i32
    %192 = arith.extui %191 : i1 to i32
    %c0_i32_65 = arith.constant 0 : i32
    %193 = arith.cmpi ne, %192, %c0_i32_65 : i32
    scf.if %193 {
      %c5 = arith.constant 5 : index
      %c0_66 = arith.constant 0 : index
      %194 = vector.load %arg4[%c5, %c0_66] : memref<128x128xf32, #tpu.memory_space<vmem>>, vector<1x128xf32>
      %195 = vector.broadcast %194 : vector<1x128xf32> to vector<8x128xf32>
      %196 = arith.addf %189, %195 : vector<8x128xf32>
      %cst_67 = arith.constant dense<0xFF800000> : vector<8xf32>
      %197 = vector.multi_reduction <maximumf>, %196, %cst_67 [1] : vector<8x128xf32> to vector<8xf32>
      %198 = vector.shape_cast %197 : vector<8xf32> to vector<8x1xf32>
      %199 = vector.broadcast %198 : vector<8x1xf32> to vector<8x128xf32>
      %200 = arith.subf %196, %199 : vector<8x128xf32>
      %201 = math.exp %200 : vector<8x128xf32>
      %cst_68 = arith.constant dense<0.000000e+00> : vector<8xf32>
      %202 = vector.multi_reduction <add>, %201, %cst_68 [1] : vector<8x128xf32> to vector<8xf32>
      %203 = vector.shape_cast %202 : vector<8xf32> to vector<8x1xf32>
      %204 = math.log %203 : vector<8x1xf32>
      %205 = arith.addf %198, %204 : vector<8x1xf32>
      %206 = vector.shape_cast %205 : vector<8x1xf32> to vector<8x1xf32>
      %207 = vector.broadcast %206 : vector<8x1xf32> to vector<8x128xf32>
      %c0_69 = arith.constant 0 : index
      %c0_70 = arith.constant 0 : index
      %208 = vector.load %arg5[%c0_69, %c0_70] : memref<8x128xf32, #tpu.memory_space<vmem>>, vector<8x128xf32>
      tpu.vector_store %arg5[%c0_69, %c0_70], %207 {strides = array<i32>} : memref<8x128xf32, #tpu.memory_space<vmem>>, vector<8x128xf32>,
    } else {
    }
    return
  }
  func.func @transform_0(%arg0: i32, %arg1: i32) -> (i32, i32, i32) {
    %c0_i32 = arith.constant 0 : i32
    %c0_i32_0 = arith.constant 0 : i32
    return %arg1, %arg0, %c0_i32 : i32, i32, i32
  }
  func.func @transform_1(%arg0: i32, %arg1: i32) -> (i32, i32, i32) {
    %c0_i32 = arith.constant 0 : i32
    %c0_i32_0 = arith.constant 0 : i32
    return %arg1, %arg0, %c0_i32 : i32, i32, i32
  }
  func.func @transform_2(%arg0: i32, %arg1: i32) -> (i32, i32) {
    %c0_i32 = arith.constant 0 : i32
    %c0_i32_0 = arith.constant 0 : i32
    %c0_i32_1 = arith.constant 0 : i32
    return %c0_i32, %c0_i32_0 : i32, i32
  }
  func.func @transform_3(%arg0: i32, %arg1: i32) -> (i32, i32) {
    %c0_i32 = arith.constant 0 : i32
    %c0_i32_0 = arith.constant 0 : i32
    return %arg0, %c0_i32 : i32, i32
  }
}

</mosaic_0001>

<llo_original>
// kernel: tpu_custom_call.1
$region0: #{tpu_custom_call.1}
  #allocation0 [shape = 'u32[]', space=smem, size = 0x4, offset = 0x4, fixed_abs, tag = 'smem constant byte address 0x4 - core index']
  #allocation1 [shape = 'u32[144,128]{1,0:T(1,128)}', space=vmem, size = 0x12000, scoped, tag = 'internal scratch']
  #allocation2 [shape = 'f32[8,128]{1,0:T(8,128)}', space=vmem, size = 0x1000, scoped, tag = 'scratch operand']
  #allocation3 [shape = 'f32[128,128]{1,0:T(8,128)}', space=vmem, size = 0x10000, scoped, tag = 'scratch operand']
  #allocation4 [shape = 'f32[1,128]{1,0:T(1,128)}', space=vmem, size = 0x200, scoped, tag = 'scratch operand']
  %s0 = inlined_call_operand.vmem [shape: f32[8,8,128], index: 0, kind: input, shape index: {}]
  %s1 = inlined_call_operand.vmem [shape: f32[8,8,1], index: 1, kind: input, shape index: {}]
  %s2 = inlined_call_operand.hbm [shape: f32[128,128], index: 2, kind: input, shape index: {}]
  %s3 = inlined_call_operand.hbm [shape: f32[8,128], index: 3, kind: output, shape index: {}]
  %s4 = sld [smem:[#allocation0]]
  $region34: #{tpu_custom_call.1} parent=0
    _
  %s6 = ssub.s32 1, %s4
  %s7 = scalar_select 0, %s6, %s4
  $region1: #{tpu_custom_call.1} parent=0
    #allocation5 [shape = 'u8[65536]{0}', space=vmem, size = 0x10000, scoped, tag = 'input window, operand 2, single buffered']
    #allocation6 [shape = 's32[1]{0}', space=sflag, size = 0x4, scoped, tag = 'scoped memory for tpu_custom_call.1']
    #allocation7 [shape = 's32[1]{0}', space=sflag, size = 0x4, scoped, tag = 'scoped memory for tpu_custom_call.1']
    #allocation8 [shape = 'u8[4096]{0}', space=vmem, size = 0x1000, scoped, tag = 'output window, operand 0, single buffered']
    %8 = vsyncpa [#allocation6], 0
    %9 = vsyncpa [#allocation7], 0
    // Predicated region
    $region2: #{tpu_custom_call.1} parent=1 // pred_check
      _
    $region3: #{tpu_custom_call.1} parent=1 // pred_check_branch
      %11 = sbr.rel (0) target = $region5
    $region4: #{tpu_custom_call.1} parent=1 // pred_region
      _
    $region5: #{tpu_custom_call.1} parent=1 // pred_fallthru
      _
    // Predicated region
    $region6: #{tpu_custom_call.1} parent=1 // pred_check
      _
    $region7: #{tpu_custom_call.1} parent=1 // pred_check_branch
      %13 = sbr.rel (0) target = $region9
    $region8: #{tpu_custom_call.1} parent=1 // pred_region
      _
    $region9: #{tpu_custom_call.1} parent=1 // pred_fallthru
      _
    // Predicated region
    $region10: #{tpu_custom_call.1} parent=1 // pred_check
      _
    $region11: #{tpu_custom_call.1} parent=1 // pred_check_branch
      %15 = sbr.rel (0) target = $region13
    $region12: #{tpu_custom_call.1} parent=1 // pred_region
      %s17 = ssub.s32 2048, 2048
      %18 = vsyncadd [#allocation6], %s17
      %s19 = sshll.u32 [#allocation5], 4
      %s20 = int_to_ptr.vmem [resolvable:$true] %s19
      %25 = dma.hbm_to_vmem [thread:$0]  %s2, 2048, %s20, [#allocation6], 128, 128, 8
    $region13: #{tpu_custom_call.1} parent=1 // pred_fallthru
      _
    // Predicated region
    $region14: #{tpu_custom_call.1} parent=1 // pred_check
      _
    $region15: #{tpu_custom_call.1} parent=1 // pred_check_branch
      %27 = sbr.rel (0) target = $region17
    $region16: #{tpu_custom_call.1} parent=1 // pred_region
      %28 = dma.done [#allocation6], 2048
    $region17: #{tpu_custom_call.1} parent=1 // pred_fallthru
      _
    %p29 = scmp.eq.s32.totalorder 0, 0
    // Predicated region
    $region18: #{tpu_custom_call.1} parent=1 // pred_check
      %p30 = pneg %p29
    $region19: #{tpu_custom_call.1} parent=1 // pred_check_branch
      %32 = sbr.rel (%p30) target = $region21
    $region20: #{tpu_custom_call.1} parent=1 // pred_region
      %v33 = vld [vmem:[#allocation5] sm:$0xff]
      %v34 = vld [vmem:[#allocation5 + $0x8] sm:$0xff]
      %v35 = vld [vmem:[#allocation5 + $0x10] sm:$0xff]
      %v36 = vld [vmem:[#allocation5 + $0x18] sm:$0xff]
      %v37 = vld [vmem:[#allocation5 + $0x20] sm:$0xff]
      %v38 = vld [vmem:[#allocation5 + $0x28] sm:$0xff]
      %v39 = vld [vmem:[#allocation5 + $0x30] sm:$0xff]
      %v40 = vld [vmem:[#allocation5 + $0x38] sm:$0xff]
      %v41 = vld [vmem:[#allocation5 + $0x40] sm:$0xff]
      %v42 = vld [vmem:[#allocation5 + $0x48] sm:$0xff]
      %v43 = vld [vmem:[#allocation5 + $0x50] sm:$0xff]
      %v44 = vld [vmem:[#allocation5 + $0x58] sm:$0xff]
      %v45 = vld [vmem:[#allocation5 + $0x60] sm:$0xff]
      %v46 = vld [vmem:[#allocation5 + $0x68] sm:$0xff]
      %v47 = vld [vmem:[#allocation5 + $0x70] sm:$0xff]
      %v48 = vld [vmem:[#allocation5 + $0x78] sm:$0xff]
      %49 = vxpose.xlu0.b32.start [1/16] %v33, 128
      %50 = vxpose.xlu0.b32.cont [2/16] %v34, 128
      %51 = vxpose.xlu0.b32.cont [3/16] %v35, 128
      %52 = vxpose.xlu0.b32.cont [4/16] %v36, 128
      %53 = vxpose.xlu0.b32.cont [5/16] %v37, 128
      %54 = vxpose.xlu0.b32.cont [6/16] %v38, 128
      %55 = vxpose.xlu0.b32.cont [7/16] %v39, 128
      %56 = vxpose.xlu0.b32.cont [8/16] %v40, 128
      %57 = vxpose.xlu0.b32.cont [9/16] %v41, 128
      %58 = vxpose.xlu0.b32.cont [10/16] %v42, 128
      %59 = vxpose.xlu0.b32.cont [11/16] %v43, 128
      %60 = vxpose.xlu0.b32.cont [12/16] %v44, 128
      %61 = vxpose.xlu0.b32.cont [13/16] %v45, 128
      %62 = vxpose.xlu0.b32.cont [14/16] %v46, 128
      %63 = vxpose.xlu0.b32.cont [15/16] %v47, 128
      %64 = vxpose.xlu0.b32.end [16/16] %v48, 128
      %v65 = vpop.trf.xlu0
      %v66 = vpop.trf.xlu0
      %v67 = vpop.trf.xlu0
      %v68 = vpop.trf.xlu0
      %v69 = vpop.trf.xlu0
      %v70 = vpop.trf.xlu0
      %v71 = vpop.trf.xlu0
      %v72 = vpop.trf.xlu0
      %v73 = vpop.trf.xlu0
      %v74 = vpop.trf.xlu0
      %v75 = vpop.trf.xlu0
      %v76 = vpop.trf.xlu0
      %v77 = vpop.trf.xlu0
      %v78 = vpop.trf.xlu0
      %v79 = vpop.trf.xlu0
      %v80 = vpop.trf.xlu0
      %v81 = vmax.f32 %v65, %v69
      %v82 = vmax.f32 %v66, %v70
      %v83 = vmax.f32 %v67, %v71
      %v84 = vmax.f32 %v68, %v72
      %v85 = vmax.f32 %v81, %v73
      %v86 = vmax.f32 %v82, %v74
      %v87 = vmax.f32 %v83, %v75
      %v88 = vmax.f32 %v84, %v76
      %v89 = vmax.f32 %v85, %v77
      %v90 = vmax.f32 %v86, %v78
      %v91 = vmax.f32 %v87, %v79
      %v92 = vmax.f32 %v88, %v80
      %v93 = vmax.f32 %v89, %v90
      %v94 = vmax.f32 %v91, %v92
      %v95 = vmax.f32 %v93, %v94
      %v96 = vrot.slane %v95, 4
      %v97 = vmax.f32 %v95, %v96
      %v98 = vrot.slane %v97, 2
      %v99 = vmax.f32 %v97, %v98
      %v100 = vrot.slane %v99, 1
      %v101 = vmax.f32 %v99, %v100
      %v102 = vsub.f32 %v65, %v101
      %v103 = vsub.f32 %v66, %v101
      %v104 = vsub.f32 %v67, %v101
      %v105 = vsub.f32 %v68, %v101
      %v106 = vsub.f32 %v69, %v101
      %v107 = vsub.f32 %v70, %v101
      %v108 = vsub.f32 %v71, %v101
      %v109 = vsub.f32 %v72, %v101
      %v110 = vsub.f32 %v73, %v101
      %v111 = vsub.f32 %v74, %v101
      %v112 = vsub.f32 %v75, %v101
      %v113 = vsub.f32 %v76, %v101
      %v114 = vsub.f32 %v77, %v101
      %v115 = vsub.f32 %v78, %v101
      %v116 = vsub.f32 %v79, %v101
      %v117 = vsub.f32 %v80, %v101
      %v118 = vmul.f32 %v102, 1.442695
      %v119 = vpow.pop %v118
      %v120 = vmul.f32 %v103, 1.442695
      %v121 = vpow.pop %v120
      %v122 = vmul.f32 %v104, 1.442695
      %v123 = vpow.pop %v122
      %v124 = vmul.f32 %v105, 1.442695
      %v125 = vpow.pop %v124
      %v126 = vmul.f32 %v106, 1.442695
      %v127 = vpow.pop %v126
      %v128 = vmul.f32 %v107, 1.442695
      %v129 = vpow.pop %v128
      %v130 = vmul.f32 %v108, 1.442695
      %v131 = vpow.pop %v130
      %v132 = vmul.f32 %v109, 1.442695
      %v133 = vpow.pop %v132
      %v134 = vmul.f32 %v110, 1.442695
      %v135 = vpow.pop %v134
      %v136 = vmul.f32 %v111, 1.442695
      %v137 = vpow.pop %v136
      %v138 = vmul.f32 %v112, 1.442695
      %v139 = vpow.pop %v138
      %v140 = vmul.f32 %v113, 1.442695
      %v141 = vpow.pop %v140
      %v142 = vmul.f32 %v114, 1.442695
      %v143 = vpow.pop %v142
      %v144 = vmul.f32 %v115, 1.442695
      %v145 = vpow.pop %v144
      %v146 = vmul.f32 %v116, 1.442695
      %v147 = vpow.pop %v146
      %v148 = vmul.f32 %v117, 1.442695
      %v149 = vpow.pop %v148
      %150 = vst [vmem:[#allocation3] sm:$0xff] %v119
      %151 = vst [vmem:[#allocation3 + $0x8] sm:$0xff] %v121
      %152 = vst [vmem:[#allocation3 + $0x10] sm:$0xff] %v123
      %153 = vst [vmem:[#allocation3 + $0x18] sm:$0xff] %v125
      %154 = vst [vmem:[#allocation3 + $0x20] sm:$0xff] %v127
      %155 = vst [vmem:[#allocation3 + $0x28] sm:$0xff] %v129
      %156 = vst [vmem:[#allocation3 + $0x30] sm:$0xff] %v131
      %157 = vst [vmem:[#allocation3 + $0x38] sm:$0xff] %v133
      %158 = vst [vmem:[#allocation3 + $0x40] sm:$0xff] %v135
      %159 = vst [vmem:[#allocation3 + $0x48] sm:$0xff] %v137
      %160 = vst [vmem:[#allocation3 + $0x50] sm:$0xff] %v139
      %161 = vst [vmem:[#allocation3 + $0x58] sm:$0xff] %v141
      %162 = vst [vmem:[#allocation3 + $0x60] sm:$0xff] %v143
      %163 = vst [vmem:[#allocation3 + $0x68] sm:$0xff] %v145
      %164 = vst [vmem:[#allocation3 + $0x70] sm:$0xff] %v147
      %165 = vst [vmem:[#allocation3 + $0x78] sm:$0xff] %v149
      %166 = vst [vmem:[#allocation4] sm:$0x1] %v101
      %v167 = vlaneseq
      %v168 = vand.u32 %v167, 127
      %vm169 = vcmp.eq.s32.totalorder %v168, 4
      %v170 = vsel %vm169, 0.0, -10000.0
      %171 = vst [vmem:[#allocation2] sm:$0xff] %v170
    $region21: #{tpu_custom_call.1} parent=1 // pred_fallthru
      _
    %v172 = vld [vmem:[#allocation3] sm:$0xff]
    %v173 = vld [vmem:[#allocation3 + $0x8] sm:$0xff]
    %v174 = vld [vmem:[#allocation3 + $0x10] sm:$0xff]
    %v175 = vld [vmem:[#allocation3 + $0x18] sm:$0xff]
    %v176 = vld [vmem:[#allocation3 + $0x20] sm:$0xff]
    %v177 = vld [vmem:[#allocation3 + $0x28] sm:$0xff]
    %v178 = vld [vmem:[#allocation3 + $0x30] sm:$0xff]
    %v179 = vld [vmem:[#allocation3 + $0x38] sm:$0xff]
    %v180 = vld [vmem:[#allocation3 + $0x40] sm:$0xff]
    %v181 = vld [vmem:[#allocation3 + $0x48] sm:$0xff]
    %v182 = vld [vmem:[#allocation3 + $0x50] sm:$0xff]
    %v183 = vld [vmem:[#allocation3 + $0x58] sm:$0xff]
    %v184 = vld [vmem:[#allocation3 + $0x60] sm:$0xff]
    %v185 = vld [vmem:[#allocation3 + $0x68] sm:$0xff]
    %v186 = vld [vmem:[#allocation3 + $0x70] sm:$0xff]
    %v187 = vld [vmem:[#allocation3 + $0x78] sm:$0xff]
    %v188 = vld [vmem:[#allocation4] sm:$0x1]
    %v189 = vld [vmem:[#allocation2] sm:$0xff]
    %v190 = vld [vmem:[%s0] sm:$0xff]
    %v191 = vld [vmem:[%s1] sm:$0xff]
    %192 = vmax.xlane.f32.xlu0 %v189
    %v193 = vpop.xlane.xlu0 %192
    %v194 = vsub.f32 %v189, %v193
    %v195 = vmul.f32 %v194, 1.442695
    %v196 = vpow.pop %v195
    %197 = vmatprep.subr.mxu0 0.0
    %v198 = vand.u32 %v172, 4294901760
    %199 = vmatpush1.msra.mxu0 %v198
    %200 = vmatprep.subr.mxu0 0.0
    %v201 = vand.u32 %v173, 4294901760
    %202 = vmatpush1.msra.mxu0 %v201
    %203 = vmatprep.subr.mxu0 0.0
    %v204 = vand.u32 %v174, 4294901760
    %205 = vmatpush1.msra.mxu0 %v204
    %206 = vmatprep.subr.mxu0 0.0
    %v207 = vand.u32 %v175, 4294901760
    %208 = vmatpush1.msra.mxu0 %v207
    %209 = vmatprep.subr.mxu0 0.0
    %v210 = vand.u32 %v176, 4294901760
    %211 = vmatpush1.msra.mxu0 %v210
    %212 = vmatprep.subr.mxu0 0.0
    %v213 = vand.u32 %v177, 4294901760
    %214 = vmatpush1.msra.mxu0 %v213
    %215 = vmatprep.subr.mxu0 0.0
    %v216 = vand.u32 %v178, 4294901760
    %217 = vmatpush1.msra.mxu0 %v216
    %218 = vmatprep.subr.mxu0 0.0
    %v219 = vand.u32 %v179, 4294901760
    %220 = vmatpush1.msra.mxu0 %v219
    %221 = vmatprep.subr.mxu0 0.0
    %v222 = vand.u32 %v180, 4294901760
    %223 = vmatpush1.msra.mxu0 %v222
    %224 = vmatprep.subr.mxu0 0.0
    %v225 = vand.u32 %v181, 4294901760
    %226 = vmatpush1.msra.mxu0 %v225
    %227 = vmatprep.subr.mxu0 0.0
    %v228 = vand.u32 %v182, 4294901760
    %229 = vmatpush1.msra.mxu0 %v228
    %230 = vmatprep.subr.mxu0 0.0
    %v231 = vand.u32 %v183, 4294901760
    %232 = vmatpush1.msra.mxu0 %v231
    %233 = vmatprep.subr.mxu0 0.0
    %v234 = vand.u32 %v184, 4294901760
    %235 = vmatpush1.msra.mxu0 %v234
    %236 = vmatprep.subr.mxu0 0.0
    %v237 = vand.u32 %v185, 4294901760
    %238 = vmatpush1.msra.mxu0 %v237
    %239 = vmatprep.subr.mxu0 0.0
    %v240 = vand.u32 %v186, 4294901760
    %241 = vmatpush1.msra.mxu0 %v240
    %242 = vmatprep.subr.mxu0 0.0
    %v243 = vand.u32 %v187, 4294901760
    %244 = vmatpush1.msra.mxu0 %v243
    %245 = vmatprep.subr.mxu0 0.0
    %246 = vmatpush1.msra.mxu0 0.0
    %247 = vmatprep.subr.mxu0 0.0
    %248 = vmatpush1.msra.mxu0 0.0
    %249 = vmatprep.subr.mxu0 0.0
    %250 = vmatpush1.msra.mxu0 0.0
    %251 = vmatprep.subr.mxu0 0.0
    %252 = vmatpush1.msra.mxu0 0.0
    %253 = vmatprep.subr.mxu0 0.0
    %254 = vmatpush1.msra.mxu0 0.0
    %255 = vmatprep.subr.mxu0 0.0
    %256 = vmatpush1.msra.mxu0 0.0
    %257 = vmatprep.subr.mxu0 0.0
    %258 = vmatpush1.msra.mxu0 0.0
    %259 = vmatprep.subr.mxu0 0.0
    %260 = vmatpush1.msra.mxu0 0.0
    %261 = vmatprep.subr.mxu0 0.0
    %262 = vmatpush1.msra.mxu0 0.0
    %263 = vmatprep.subr.mxu0 0.0
    %264 = vmatpush1.msra.mxu0 0.0
    %265 = vmatprep.subr.mxu0 0.0
    %266 = vmatpush1.msra.mxu0 0.0
    %267 = vmatprep.subr.mxu0 0.0
    %268 = vmatpush1.msra.mxu0 0.0
    %269 = vmatprep.subr.mxu0 0.0
    %270 = vmatpush1.msra.mxu0 0.0
    %271 = vmatprep.subr.mxu0 0.0
    %272 = vmatpush1.msra.mxu0 0.0
    %273 = vmatprep.subr.mxu0 0.0
    %274 = vmatpush1.msra.mxu0 0.0
    %275 = vmatprep.subr.mxu0 0.0
    %276 = vmatpush1.msra.mxu0 0.0
    %277 = vmatprep.mubr.f32.mxu0 0.0
    %v278 = vand.u32 %v196, 4294901760
    %v279 = vsub.f32 %v196, %v278
    %v280 = vand.u32 %v279, 4294901760
    %v281 = vsub.f32 %v279, %v280
    %v282 = vand.u32 %v281, 4294901760
    %283 = vmatmul.mubr.f32.gmra.mrb[0].mxu0 %v282
    %v284 = vpop.f32.mrb[0].mxu0
    %v285 = vadd.f32 0.0, %v284
    %v286 = vpop.f32.mrb[0].mxu0
    %287 = vdwg.mxu0
    %288 = vmatprep.subr.mxu0 0.0
    %v289 = vand.u32 %v172, 4294901760
    %v290 = vsub.f32 %v172, %v289
    %v291 = vand.u32 %v290, 4294901760
    %v292 = vsub.f32 %v290, %v291
    %v293 = vand.u32 %v292, 4294901760
    %294 = vmatpush1.msra.mxu0 %v293
    %295 = vmatprep.subr.mxu0 0.0
    %v296 = vand.u32 %v173, 4294901760
    %v297 = vsub.f32 %v173, %v296
    %v298 = vand.u32 %v297, 4294901760
    %v299 = vsub.f32 %v297, %v298
    %v300 = vand.u32 %v299, 4294901760
    %301 = vmatpush1.msra.mxu0 %v300
    %302 = vmatprep.subr.mxu0 0.0
    %v303 = vand.u32 %v174, 4294901760
    %v304 = vsub.f32 %v174, %v303
    %v305 = vand.u32 %v304, 4294901760
    %v306 = vsub.f32 %v304, %v305
    %v307 = vand.u32 %v306, 4294901760
    %308 = vmatpush1.msra.mxu0 %v307
    %309 = vmatprep.subr.mxu0 0.0
    %v310 = vand.u32 %v175, 4294901760
    %v311 = vsub.f32 %v175, %v310
    %v312 = vand.u32 %v311, 4294901760
    %v313 = vsub.f32 %v311, %v312
    %v314 = vand.u32 %v313, 4294901760
    %315 = vmatpush1.msra.mxu0 %v314
    %316 = vmatprep.subr.mxu0 0.0
    %v317 = vand.u32 %v176, 4294901760
    %v318 = vsub.f32 %v176, %v317
    %v319 = vand.u32 %v318, 4294901760
    %v320 = vsub.f32 %v318, %v319
    %v321 = vand.u32 %v320, 4294901760
    %322 = vmatpush1.msra.mxu0 %v321
    %323 = vmatprep.subr.mxu0 0.0
    %v324 = vand.u32 %v177, 4294901760
    %v325 = vsub.f32 %v177, %v324
    %v326 = vand.u32 %v325, 4294901760
    %v327 = vsub.f32 %v325, %v326
    %v328 = vand.u32 %v327, 4294901760
    %329 = vmatpush1.msra.mxu0 %v328
    %330 = vmatprep.subr.mxu0 0.0
    %v331 = vand.u32 %v178, 4294901760
    %v332 = vsub.f32 %v178, %v331
    %v333 = vand.u32 %v332, 4294901760
    %v334 = vsub.f32 %v332, %v333
    %v335 = vand.u32 %v334, 4294901760
    %336 = vmatpush1.msra.mxu0 %v335
    %337 = vmatprep.subr.mxu0 0.0
    %v338 = vand.u32 %v179, 4294901760
    %v339 = vsub.f32 %v179, %v338
    %v340 = vand.u32 %v339, 4294901760
    %v341 = vsub.f32 %v339, %v340
    %v342 = vand.u32 %v341, 4294901760
    %343 = vmatpush1.msra.mxu0 %v342
    %344 = vmatprep.subr.mxu0 0.0
    %v345 = vand.u32 %v180, 4294901760
    %v346 = vsub.f32 %v180, %v345
    %v347 = vand.u32 %v346, 4294901760
    %v348 = vsub.f32 %v346, %v347
    %v349 = vand.u32 %v348, 4294901760
    %350 = vmatpush1.msra.mxu0 %v349
    %351 = vmatprep.subr.mxu0 0.0
    %v352 = vand.u32 %v181, 4294901760
    %v353 = vsub.f32 %v181, %v352
    %v354 = vand.u32 %v353, 4294901760
    %v355 = vsub.f32 %v353, %v354
    %v356 = vand.u32 %v355, 4294901760
    %357 = vmatpush1.msra.mxu0 %v356
    %358 = vmatprep.subr.mxu0 0.0
    %v359 = vand.u32 %v182, 4294901760
    %v360 = vsub.f32 %v182, %v359
    %v361 = vand.u32 %v360, 4294901760
    %v362 = vsub.f32 %v360, %v361
    %v363 = vand.u32 %v362, 4294901760
    %364 = vmatpush1.msra.mxu0 %v363
    %365 = vmatprep.subr.mxu0 0.0
    %v366 = vand.u32 %v183, 4294901760
    %v367 = vsub.f32 %v183, %v366
    %v368 = vand.u32 %v367, 4294901760
    %v369 = vsub.f32 %v367, %v368
    %v370 = vand.u32 %v369, 4294901760
    %371 = vmatpush1.msra.mxu0 %v370
    %372 = vmatprep.subr.mxu0 0.0
    %v373 = vand.u32 %v184, 4294901760
    %v374 = vsub.f32 %v184, %v373
    %v375 = vand.u32 %v374, 4294901760
    %v376 = vsub.f32 %v374, %v375
    %v377 = vand.u32 %v376, 4294901760
    %378 = vmatpush1.msra.mxu0 %v377
    %379 = vmatprep.subr.mxu0 0.0
    %v380 = vand.u32 %v185, 4294901760
    %v381 = vsub.f32 %v185, %v380
    %v382 = vand.u32 %v381, 4294901760
    %v383 = vsub.f32 %v381, %v382
    %v384 = vand.u32 %v383, 4294901760
    %385 = vmatpush1.msra.mxu0 %v384
    %386 = vmatprep.subr.mxu0 0.0
    %v387 = vand.u32 %v186, 4294901760
    %v388 = vsub.f32 %v186, %v387
    %v389 = vand.u32 %v388, 4294901760
    %v390 = vsub.f32 %v388, %v389
    %v391 = vand.u32 %v390, 4294901760
    %392 = vmatpush1.msra.mxu0 %v391
    %393 = vmatprep.subr.mxu0 0.0
    %v394 = vand.u32 %v187, 4294901760
    %v395 = vsub.f32 %v187, %v394
    %v396 = vand.u32 %v395, 4294901760
    %v397 = vsub.f32 %v395, %v396
    %v398 = vand.u32 %v397, 4294901760
    %399 = vmatpush1.msra.mxu0 %v398
    %400 = vmatprep.subr.mxu0 0.0
    %401 = vmatpush1.msra.mxu0 0.0
    %402 = vmatprep.subr.mxu0 0.0
    %403 = vmatpush1.msra.mxu0 0.0
    %404 = vmatprep.subr.mxu0 0.0
    %405 = vmatpush1.msra.mxu0 0.0
    %406 = vmatprep.subr.mxu0 0.0
    %407 = vmatpush1.msra.mxu0 0.0
    %408 = vmatprep.subr.mxu0 0.0
    %409 = vmatpush1.msra.mxu0 0.0
    %410 = vmatprep.subr.mxu0 0.0
    %411 = vmatpush1.msra.mxu0 0.0
    %412 = vmatprep.subr.mxu0 0.0
    %413 = vmatpush1.msra.mxu0 0.0
    %414 = vmatprep.subr.mxu0 0.0
    %415 = vmatpush1.msra.mxu0 0.0
    %416 = vmatprep.subr.mxu0 0.0
    %417 = vmatpush1.msra.mxu0 0.0
    %418 = vmatprep.subr.mxu0 0.0
    %419 = vmatpush1.msra.mxu0 0.0
    %420 = vmatprep.subr.mxu0 0.0
    %421 = vmatpush1.msra.mxu0 0.0
    %422 = vmatprep.subr.mxu0 0.0
    %423 = vmatpush1.msra.mxu0 0.0
    %424 = vmatprep.subr.mxu0 0.0
    %425 = vmatpush1.msra.mxu0 0.0
    %426 = vmatprep.subr.mxu0 0.0
    %427 = vmatpush1.msra.mxu0 0.0
    %428 = vmatprep.subr.mxu0 0.0
    %429 = vmatpush1.msra.mxu0 0.0
    %430 = vmatprep.subr.mxu0 0.0
    %431 = vmatpush1.msra.mxu0 0.0
    %432 = vmatprep.mubr.f32.mxu0 0.0
    %v433 = vand.u32 %v196, 4294901760
    %434 = vmatmul.mubr.f32.gmra.mrb[0].mxu0 %v433
    %v435 = vpop.f32.mrb[0].mxu0
    %v436 = vadd.f32 %v285, %v435
    %v437 = vpop.f32.mrb[0].mxu0
    %438 = vdwg.mxu0
    %439 = vmatprep.subr.mxu0 0.0
    %v440 = vand.u32 %v172, 4294901760
    %v441 = vsub.f32 %v172, %v440
    %442 = vmatpush1.msra.mxu0 %v441
    %443 = vmatprep.subr.mxu0 0.0
    %v444 = vand.u32 %v173, 4294901760
    %v445 = vsub.f32 %v173, %v444
    %446 = vmatpush1.msra.mxu0 %v445
    %447 = vmatprep.subr.mxu0 0.0
    %v448 = vand.u32 %v174, 4294901760
    %v449 = vsub.f32 %v174, %v448
    %450 = vmatpush1.msra.mxu0 %v449
    %451 = vmatprep.subr.mxu0 0.0
    %v452 = vand.u32 %v175, 4294901760
    %v453 = vsub.f32 %v175, %v452
    %454 = vmatpush1.msra.mxu0 %v453
    %455 = vmatprep.subr.mxu0 0.0
    %v456 = vand.u32 %v176, 4294901760
    %v457 = vsub.f32 %v176, %v456
    %458 = vmatpush1.msra.mxu0 %v457
    %459 = vmatprep.subr.mxu0 0.0
    %v460 = vand.u32 %v177, 4294901760
    %v461 = vsub.f32 %v177, %v460
    %462 = vmatpush1.msra.mxu0 %v461
    %463 = vmatprep.subr.mxu0 0.0
    %v464 = vand.u32 %v178, 4294901760
    %v465 = vsub.f32 %v178, %v464
    %466 = vmatpush1.msra.mxu0 %v465
    %467 = vmatprep.subr.mxu0 0.0
    %v468 = vand.u32 %v179, 4294901760
    %v469 = vsub.f32 %v179, %v468
    %470 = vmatpush1.msra.mxu0 %v469
    %471 = vmatprep.subr.mxu0 0.0
    %v472 = vand.u32 %v180, 4294901760
    %v473 = vsub.f32 %v180, %v472
    %474 = vmatpush1.msra.mxu0 %v473
    %475 = vmatprep.subr.mxu0 0.0
    %v476 = vand.u32 %v181, 4294901760
    %v477 = vsub.f32 %v181, %v476
    %478 = vmatpush1.msra.mxu0 %v477
    %479 = vmatprep.subr.mxu0 0.0
    %v480 = vand.u32 %v182, 4294901760
    %v481 = vsub.f32 %v182, %v480
    %482 = vmatpush1.msra.mxu0 %v481
    %483 = vmatprep.subr.mxu0 0.0
    %v484 = vand.u32 %v183, 4294901760
    %v485 = vsub.f32 %v183, %v484
    %486 = vmatpush1.msra.mxu0 %v485
    %487 = vmatprep.subr.mxu0 0.0
    %v488 = vand.u32 %v184, 4294901760
    %v489 = vsub.f32 %v184, %v488
    %490 = vmatpush1.msra.mxu0 %v489
    %491 = vmatprep.subr.mxu0 0.0
    %v492 = vand.u32 %v185, 4294901760
    %v493 = vsub.f32 %v185, %v492
    %494 = vmatpush1.msra.mxu0 %v493
    %495 = vmatprep.subr.mxu0 0.0
    %v496 = vand.u32 %v186, 4294901760
    %v497 = vsub.f32 %v186, %v496
    %498 = vmatpush1.msra.mxu0 %v497
    %499 = vmatprep.subr.mxu0 0.0
    %v500 = vand.u32 %v187, 4294901760
    %v501 = vsub.f32 %v187, %v500
    %502 = vmatpush1.msra.mxu0 %v501
    %503 = vmatprep.subr.mxu0 0.0
    %504 = vmatpush1.msra.mxu0 0.0
    %505 = vmatprep.subr.mxu0 0.0
    %506 = vmatpush1.msra.mxu0 0.0
    %507 = vmatprep.subr.mxu0 0.0
    %508 = vmatpush1.msra.mxu0 0.0
    %509 = vmatprep.subr.mxu0 0.0
    %510 = vmatpush1.msra.mxu0 0.0
    %511 = vmatprep.subr.mxu0 0.0
    %512 = vmatpush1.msra.mxu0 0.0
    %513 = vmatprep.subr.mxu0 0.0
    %514 = vmatpush1.msra.mxu0 0.0
    %515 = vmatprep.subr.mxu0 0.0
    %516 = vmatpush1.msra.mxu0 0.0
    %517 = vmatprep.subr.mxu0 0.0
    %518 = vmatpush1.msra.mxu0 0.0
    %519 = vmatprep.subr.mxu0 0.0
    %520 = vmatpush1.msra.mxu0 0.0
    %521 = vmatprep.subr.mxu0 0.0
    %522 = vmatpush1.msra.mxu0 0.0
    %523 = vmatprep.subr.mxu0 0.0
    %524 = vmatpush1.msra.mxu0 0.0
    %525 = vmatprep.subr.mxu0 0.0
    %526 = vmatpush1.msra.mxu0 0.0
    %527 = vmatprep.subr.mxu0 0.0
    %528 = vmatpush1.msra.mxu0 0.0
    %529 = vmatprep.subr.mxu0 0.0
    %530 = vmatpush1.msra.mxu0 0.0
    %531 = vmatprep.subr.mxu0 0.0
    %532 = vmatpush1.msra.mxu0 0.0
    %533 = vmatprep.subr.mxu0 0.0
    %534 = vmatpush1.msra.mxu0 0.0
    %535 = vmatprep.mubr.f32.mxu0 0.0
    %v536 = vand.u32 %v196, 4294901760
    %v537 = vsub.f32 %v196, %v536
    %538 = vmatmul.mubr.f32.gmra.mrb[0].mxu0 %v537
    %v539 = vpop.f32.mrb[0].mxu0
    %v540 = vadd.f32 %v436, %v539
    %v541 = vpop.f32.mrb[0].mxu0
    %542 = vdwg.mxu0
    %543 = vmatprep.subr.mxu0 0.0
    %v544 = vand.u32 %v172, 4294901760
    %545 = vmatpush1.msra.mxu0 %v544
    %546 = vmatprep.subr.mxu0 0.0
    %v547 = vand.u32 %v173, 4294901760
    %548 = vmatpush1.msra.mxu0 %v547
    %549 = vmatprep.subr.mxu0 0.0
    %v550 = vand.u32 %v174, 4294901760
    %551 = vmatpush1.msra.mxu0 %v550
    %552 = vmatprep.subr.mxu0 0.0
    %v553 = vand.u32 %v175, 4294901760
    %554 = vmatpush1.msra.mxu0 %v553
    %555 = vmatprep.subr.mxu0 0.0
    %v556 = vand.u32 %v176, 4294901760
    %557 = vmatpush1.msra.mxu0 %v556
    %558 = vmatprep.subr.mxu0 0.0
    %v559 = vand.u32 %v177, 4294901760
    %560 = vmatpush1.msra.mxu0 %v559
    %561 = vmatprep.subr.mxu0 0.0
    %v562 = vand.u32 %v178, 4294901760
    %563 = vmatpush1.msra.mxu0 %v562
    %564 = vmatprep.subr.mxu0 0.0
    %v565 = vand.u32 %v179, 4294901760
    %566 = vmatpush1.msra.mxu0 %v565
    %567 = vmatprep.subr.mxu0 0.0
    %v568 = vand.u32 %v180, 4294901760
    %569 = vmatpush1.msra.mxu0 %v568
    %570 = vmatprep.subr.mxu0 0.0
    %v571 = vand.u32 %v181, 4294901760
    %572 = vmatpush1.msra.mxu0 %v571
    %573 = vmatprep.subr.mxu0 0.0
    %v574 = vand.u32 %v182, 4294901760
    %575 = vmatpush1.msra.mxu0 %v574
    %576 = vmatprep.subr.mxu0 0.0
    %v577 = vand.u32 %v183, 4294901760
    %578 = vmatpush1.msra.mxu0 %v577
    %579 = vmatprep.subr.mxu0 0.0
    %v580 = vand.u32 %v184, 4294901760
    %581 = vmatpush1.msra.mxu0 %v580
    %582 = vmatprep.subr.mxu0 0.0
    %v583 = vand.u32 %v185, 4294901760
    %584 = vmatpush1.msra.mxu0 %v583
    %585 = vmatprep.subr.mxu0 0.0
    %v586 = vand.u32 %v186, 4294901760
    %587 = vmatpush1.msra.mxu0 %v586
    %588 = vmatprep.subr.mxu0 0.0
    %v589 = vand.u32 %v187, 4294901760
    %590 = vmatpush1.msra.mxu0 %v589
    %591 = vmatprep.subr.mxu0 0.0
    %592 = vmatpush1.msra.mxu0 0.0
    %593 = vmatprep.subr.mxu0 0.0
    %594 = vmatpush1.msra.mxu0 0.0
    %595 = vmatprep.subr.mxu0 0.0
    %596 = vmatpush1.msra.mxu0 0.0
    %597 = vmatprep.subr.mxu0 0.0
    %598 = vmatpush1.msra.mxu0 0.0
    %599 = vmatprep.subr.mxu0 0.0
    %600 = vmatpush1.msra.mxu0 0.0
    %601 = vmatprep.subr.mxu0 0.0
    %602 = vmatpush1.msra.mxu0 0.0
    %603 = vmatprep.subr.mxu0 0.0
    %604 = vmatpush1.msra.mxu0 0.0
    %605 = vmatprep.subr.mxu0 0.0
    %606 = vmatpush1.msra.mxu0 0.0
    %607 = vmatprep.subr.mxu0 0.0
    %608 = vmatpush1.msra.mxu0 0.0
    %609 = vmatprep.subr.mxu0 0.0
    %610 = vmatpush1.msra.mxu0 0.0
    %611 = vmatprep.subr.mxu0 0.0
    %612 = vmatpush1.msra.mxu0 0.0
    %613 = vmatprep.subr.mxu0 0.0
    %614 = vmatpush1.msra.mxu0 0.0
    %615 = vmatprep.subr.mxu0 0.0
    %616 = vmatpush1.msra.mxu0 0.0
    %617 = vmatprep.subr.mxu0 0.0
    %618 = vmatpush1.msra.mxu0 0.0
    %619 = vmatprep.subr.mxu0 0.0
    %620 = vmatpush1.msra.mxu0 0.0
    %621 = vmatprep.subr.mxu0 0.0
    %622 = vmatpush1.msra.mxu0 0.0
    %623 = vmatprep.mubr.f32.mxu0 0.0
    %v624 = vand.u32 %v196, 4294901760
    %v625 = vsub.f32 %v196, %v624
    %v626 = vand.u32 %v625, 4294901760
    %627 = vmatmul.mubr.f32.gmra.mrb[0].mxu0 %v626
    %v628 = vpop.f32.mrb[0].mxu0
    %v629 = vadd.f32 %v540, %v628
    %v630 = vpop.f32.mrb[0].mxu0
    %631 = vdwg.mxu0
    %632 = vmatprep.subr.mxu0 0.0
    %v633 = vand.u32 %v172, 4294901760
    %v634 = vsub.f32 %v172, %v633
    %v635 = vand.u32 %v634, 4294901760
    %636 = vmatpush1.msra.mxu0 %v635
    %637 = vmatprep.subr.mxu0 0.0
    %v638 = vand.u32 %v173, 4294901760
    %v639 = vsub.f32 %v173, %v638
    %v640 = vand.u32 %v639, 4294901760
    %641 = vmatpush1.msra.mxu0 %v640
    %642 = vmatprep.subr.mxu0 0.0
    %v643 = vand.u32 %v174, 4294901760
    %v644 = vsub.f32 %v174, %v643
    %v645 = vand.u32 %v644, 4294901760
    %646 = vmatpush1.msra.mxu0 %v645
    %647 = vmatprep.subr.mxu0 0.0
    %v648 = vand.u32 %v175, 4294901760
    %v649 = vsub.f32 %v175, %v648
    %v650 = vand.u32 %v649, 4294901760
    %651 = vmatpush1.msra.mxu0 %v650
    %652 = vmatprep.subr.mxu0 0.0
    %v653 = vand.u32 %v176, 4294901760
    %v654 = vsub.f32 %v176, %v653
    %v655 = vand.u32 %v654, 4294901760
    %656 = vmatpush1.msra.mxu0 %v655
    %657 = vmatprep.subr.mxu0 0.0
    %v658 = vand.u32 %v177, 4294901760
    %v659 = vsub.f32 %v177, %v658
    %v660 = vand.u32 %v659, 4294901760
    %661 = vmatpush1.msra.mxu0 %v660
    %662 = vmatprep.subr.mxu0 0.0
    %v663 = vand.u32 %v178, 4294901760
    %v664 = vsub.f32 %v178, %v663
    %v665 = vand.u32 %v664, 4294901760
    %666 = vmatpush1.msra.mxu0 %v665
    %667 = vmatprep.subr.mxu0 0.0
    %v668 = vand.u32 %v179, 4294901760
    %v669 = vsub.f32 %v179, %v668
    %v670 = vand.u32 %v669, 4294901760
    %671 = vmatpush1.msra.mxu0 %v670
    %672 = vmatprep.subr.mxu0 0.0
    %v673 = vand.u32 %v180, 4294901760
    %v674 = vsub.f32 %v180, %v673
    %v675 = vand.u32 %v674, 4294901760
    %676 = vmatpush1.msra.mxu0 %v675
    %677 = vmatprep.subr.mxu0 0.0
    %v678 = vand.u32 %v181, 4294901760
    %v679 = vsub.f32 %v181, %v678
    %v680 = vand.u32 %v679, 4294901760
    %681 = vmatpush1.msra.mxu0 %v680
    %682 = vmatprep.subr.mxu0 0.0
    %v683 = vand.u32 %v182, 4294901760
    %v684 = vsub.f32 %v182, %v683
    %v685 = vand.u32 %v684, 4294901760
    %686 = vmatpush1.msra.mxu0 %v685
    %687 = vmatprep.subr.mxu0 0.0
    %v688 = vand.u32 %v183, 4294901760
    %v689 = vsub.f32 %v183, %v688
    %v690 = vand.u32 %v689, 4294901760
    %691 = vmatpush1.msra.mxu0 %v690
    %692 = vmatprep.subr.mxu0 0.0
    %v693 = vand.u32 %v184, 4294901760
    %v694 = vsub.f32 %v184, %v693
    %v695 = vand.u32 %v694, 4294901760
    %696 = vmatpush1.msra.mxu0 %v695
    %697 = vmatprep.subr.mxu0 0.0
    %v698 = vand.u32 %v185, 4294901760
    %v699 = vsub.f32 %v185, %v698
    %v700 = vand.u32 %v699, 4294901760
    %701 = vmatpush1.msra.mxu0 %v700
    %702 = vmatprep.subr.mxu0 0.0
    %v703 = vand.u32 %v186, 4294901760
    %v704 = vsub.f32 %v186, %v703
    %v705 = vand.u32 %v704, 4294901760
    %706 = vmatpush1.msra.mxu0 %v705
    %707 = vmatprep.subr.mxu0 0.0
    %v708 = vand.u32 %v187, 4294901760
    %v709 = vsub.f32 %v187, %v708
    %v710 = vand.u32 %v709, 4294901760
    %711 = vmatpush1.msra.mxu0 %v710
    %712 = vmatprep.subr.mxu0 0.0
    %713 = vmatpush1.msra.mxu0 0.0
    %714 = vmatprep.subr.mxu0 0.0
    %715 = vmatpush1.msra.mxu0 0.0
    %716 = vmatprep.subr.mxu0 0.0
    %717 = vmatpush1.msra.mxu0 0.0
    %718 = vmatprep.subr.mxu0 0.0
    %719 = vmatpush1.msra.mxu0 0.0
    %720 = vmatprep.subr.mxu0 0.0
    %721 = vmatpush1.msra.mxu0 0.0
    %722 = vmatprep.subr.mxu0 0.0
    %723 = vmatpush1.msra.mxu0 0.0
    %724 = vmatprep.subr.mxu0 0.0
    %725 = vmatpush1.msra.mxu0 0.0
    %726 = vmatprep.subr.mxu0 0.0
    %727 = vmatpush1.msra.mxu0 0.0
    %728 = vmatprep.subr.mxu0 0.0
    %729 = vmatpush1.msra.mxu0 0.0
    %730 = vmatprep.subr.mxu0 0.0
    %731 = vmatpush1.msra.mxu0 0.0
    %732 = vmatprep.subr.mxu0 0.0
    %733 = vmatpush1.msra.mxu0 0.0
    %734 = vmatprep.subr.mxu0 0.0
    %735 = vmatpush1.msra.mxu0 0.0
    %736 = vmatprep.subr.mxu0 0.0
    %737 = vmatpush1.msra.mxu0 0.0
    %738 = vmatprep.subr.mxu0 0.0
    %739 = vmatpush1.msra.mxu0 0.0
    %740 = vmatprep.subr.mxu0 0.0
    %741 = vmatpush1.msra.mxu0 0.0
    %742 = vmatprep.subr.mxu0 0.0
    %743 = vmatpush1.msra.mxu0 0.0
    %744 = vmatprep.mubr.f32.mxu0 0.0
    %v745 = vand.u32 %v196, 4294901760
    %746 = vmatmul.mubr.f32.gmra.mrb[0].mxu0 %v745
    %v747 = vpop.f32.mrb[0].mxu0
    %v748 = vadd.f32 %v629, %v747
    %v749 = vpop.f32.mrb[0].mxu0
    %750 = vdwg.mxu0
    %751 = vmatprep.subr.mxu0 0.0
    %v752 = vand.u32 %v172, 4294901760
    %753 = vmatpush1.msra.mxu0 %v752
    %754 = vmatprep.subr.mxu0 0.0
    %v755 = vand.u32 %v173, 4294901760
    %756 = vmatpush1.msra.mxu0 %v755
    %757 = vmatprep.subr.mxu0 0.0
    %v758 = vand.u32 %v174, 4294901760
    %759 = vmatpush1.msra.mxu0 %v758
    %760 = vmatprep.subr.mxu0 0.0
    %v761 = vand.u32 %v175, 4294901760
    %762 = vmatpush1.msra.mxu0 %v761
    %763 = vmatprep.subr.mxu0 0.0
    %v764 = vand.u32 %v176, 4294901760
    %765 = vmatpush1.msra.mxu0 %v764
    %766 = vmatprep.subr.mxu0 0.0
    %v767 = vand.u32 %v177, 4294901760
    %768 = vmatpush1.msra.mxu0 %v767
    %769 = vmatprep.subr.mxu0 0.0
    %v770 = vand.u32 %v178, 4294901760
    %771 = vmatpush1.msra.mxu0 %v770
    %772 = vmatprep.subr.mxu0 0.0
    %v773 = vand.u32 %v179, 4294901760
    %774 = vmatpush1.msra.mxu0 %v773
    %775 = vmatprep.subr.mxu0 0.0
    %v776 = vand.u32 %v180, 4294901760
    %777 = vmatpush1.msra.mxu0 %v776
    %778 = vmatprep.subr.mxu0 0.0
    %v779 = vand.u32 %v181, 4294901760
    %780 = vmatpush1.msra.mxu0 %v779
    %781 = vmatprep.subr.mxu0 0.0
    %v782 = vand.u32 %v182, 4294901760
    %783 = vmatpush1.msra.mxu0 %v782
    %784 = vmatprep.subr.mxu0 0.0
    %v785 = vand.u32 %v183, 4294901760
    %786 = vmatpush1.msra.mxu0 %v785
    %787 = vmatprep.subr.mxu0 0.0
    %v788 = vand.u32 %v184, 4294901760
    %789 = vmatpush1.msra.mxu0 %v788
    %790 = vmatprep.subr.mxu0 0.0
    %v791 = vand.u32 %v185, 4294901760
    %792 = vmatpush1.msra.mxu0 %v791
    %793 = vmatprep.subr.mxu0 0.0
    %v794 = vand.u32 %v186, 4294901760
    %795 = vmatpush1.msra.mxu0 %v794
    %796 = vmatprep.subr.mxu0 0.0
    %v797 = vand.u32 %v187, 4294901760
    %798 = vmatpush1.msra.mxu0 %v797
    %799 = vmatprep.subr.mxu0 0.0
    %800 = vmatpush1.msra.mxu0 0.0
    %801 = vmatprep.subr.mxu0 0.0
    %802 = vmatpush1.msra.mxu0 0.0
    %803 = vmatprep.subr.mxu0 0.0
    %804 = vmatpush1.msra.mxu0 0.0
    %805 = vmatprep.subr.mxu0 0.0
    %806 = vmatpush1.msra.mxu0 0.0
    %807 = vmatprep.subr.mxu0 0.0
    %808 = vmatpush1.msra.mxu0 0.0
    %809 = vmatprep.subr.mxu0 0.0
    %810 = vmatpush1.msra.mxu0 0.0
    %811 = vmatprep.subr.mxu0 0.0
    %812 = vmatpush1.msra.mxu0 0.0
    %813 = vmatprep.subr.mxu0 0.0
    %814 = vmatpush1.msra.mxu0 0.0
    %815 = vmatprep.subr.mxu0 0.0
    %816 = vmatpush1.msra.mxu0 0.0
    %817 = vmatprep.subr.mxu0 0.0
    %818 = vmatpush1.msra.mxu0 0.0
    %819 = vmatprep.subr.mxu0 0.0
    %820 = vmatpush1.msra.mxu0 0.0
    %821 = vmatprep.subr.mxu0 0.0
    %822 = vmatpush1.msra.mxu0 0.0
    %823 = vmatprep.subr.mxu0 0.0
    %824 = vmatpush1.msra.mxu0 0.0
    %825 = vmatprep.subr.mxu0 0.0
    %826 = vmatpush1.msra.mxu0 0.0
    %827 = vmatprep.subr.mxu0 0.0
    %828 = vmatpush1.msra.mxu0 0.0
    %829 = vmatprep.subr.mxu0 0.0
    %830 = vmatpush1.msra.mxu0 0.0
    %831 = vmatprep.mubr.f32.mxu0 0.0
    %v832 = vand.u32 %v196, 4294901760
    %833 = vmatmul.mubr.f32.gmra.mrb[0].mxu0 %v832
    %v834 = vpop.f32.mrb[0].mxu0
    %v835 = vadd.f32 %v748, %v834
    %v836 = vpop.f32.mrb[0].mxu0
    %837 = vdwg.mxu0
    %v838 = vlog2.pop %v835
    %v839 = vmul.f32 %v838, 0.6931472
    %v840 = vadd.f32 %v839, %v193
    %v842 = vlaneseq
    %v843 = vshrl.u32 %v842, 7
    %v844 = vsub.s32 0, %v843
    %v845 = vrot.slane %v188, %v844
    %v847 = vadd.f32 %v840, %v845
    %v848 = vadd.f32 %v847, %v190
    %vm849 = vcmp.gt.f32.partialorder %v191, 0.5
    %v850 = vsel %vm849, 1, 0
    %851 = vset.pattern.permute.xlu0 0
    %852 = vperm.xlu0 %851, %v850
    %v853 = vpop.permute.xlu0 %852
    %vm854 = vcmp.eq.s32.totalorder %v853, 1
    %v855 = vsel %vm854, %v848, %v189
    %s856 = scalar_lea.vmem %s0, 8
    %v857 = vld [vmem:[%s856] sm:$0xff]
    %s858 = scalar_lea.vmem %s1, 8
    %v859 = vld [vmem:[%s858] sm:$0xff]
    %860 = vmax.xlane.f32.xlu0 %v855
    %v861 = vpop.xlane.xlu0 %860
    %v862 = vsub.f32 %v855, %v861
    %v863 = vmul.f32 %v862, 1.442695
    %v864 = vpow.pop %v863
    %865 = vmatprep.subr.mxu0 0.0
    %v866 = vand.u32 %v172, 4294901760
    %867 = vmatpush1.msra.mxu0 %v866
    %868 = vmatprep.subr.mxu0 0.0
    %v869 = vand.u32 %v173, 4294901760
    %870 = vmatpush1.msra.mxu0 %v869
    %871 = vmatprep.subr.mxu0 0.0
    %v872 = vand.u32 %v174, 4294901760
    %873 = vmatpush1.msra.mxu0 %v872
    %874 = vmatprep.subr.mxu0 0.0
    %v875 = vand.u32 %v175, 4294901760
    %876 = vmatpush1.msra.mxu0 %v875
    %877 = vmatprep.subr.mxu0 0.0
    %v878 = vand.u32 %v176, 4294901760
    %879 = vmatpush1.msra.mxu0 %v878
    %880 = vmatprep.subr.mxu0 0.0
    %v881 = vand.u32 %v177, 4294901760
    %882 = vmatpush1.msra.mxu0 %v881
    %883 = vmatprep.subr.mxu0 0.0
    %v884 = vand.u32 %v178, 4294901760
    %885 = vmatpush1.msra.mxu0 %v884
    %886 = vmatprep.subr.mxu0 0.0
    %v887 = vand.u32 %v179, 4294901760
    %888 = vmatpush1.msra.mxu0 %v887
    %889 = vmatprep.subr.mxu0 0.0
    %v890 = vand.u32 %v180, 4294901760
    %891 = vmatpush1.msra.mxu0 %v890
    %892 = vmatprep.subr.mxu0 0.0
    %v893 = vand.u32 %v181, 4294901760
    %894 = vmatpush1.msra.mxu0 %v893
    %895 = vmatprep.subr.mxu0 0.0
    %v896 = vand.u32 %v182, 4294901760
    %897 = vmatpush1.msra.mxu0 %v896
    %898 = vmatprep.subr.mxu0 0.0
    %v899 = vand.u32 %v183, 4294901760
    %900 = vmatpush1.msra.mxu0 %v899
    %901 = vmatprep.subr.mxu0 0.0
    %v902 = vand.u32 %v184, 4294901760
    %903 = vmatpush1.msra.mxu0 %v902
    %904 = vmatprep.subr.mxu0 0.0
    %v905 = vand.u32 %v185, 4294901760
    %906 = vmatpush1.msra.mxu0 %v905
    %907 = vmatprep.subr.mxu0 0.0
    %v908 = vand.u32 %v186, 4294901760
    %909 = vmatpush1.msra.mxu0 %v908
    %910 = vmatprep.subr.mxu0 0.0
    %v911 = vand.u32 %v187, 4294901760
    %912 = vmatpush1.msra.mxu0 %v911
    %913 = vmatprep.subr.mxu0 0.0
    %914 = vmatpush1.msra.mxu0 0.0
    %915 = vmatprep.subr.mxu0 0.0
    %916 = vmatpush1.msra.mxu0 0.0
    %917 = vmatprep.subr.mxu0 0.0
    %918 = vmatpush1.msra.mxu0 0.0
    %919 = vmatprep.subr.mxu0 0.0
    %920 = vmatpush1.msra.mxu0 0.0
    %921 = vmatprep.subr.mxu0 0.0
    %922 = vmatpush1.msra.mxu0 0.0
    %923 = vmatprep.subr.mxu0 0.0
    %924 = vmatpush1.msra.mxu0 0.0
    %925 = vmatprep.subr.mxu0 0.0
    %926 = vmatpush1.msra.mxu0 0.0
    %927 = vmatprep.subr.mxu0 0.0
    %928 = vmatpush1.msra.mxu0 0.0
    %929 = vmatprep.subr.mxu0 0.0
    %930 = vmatpush1.msra.mxu0 0.0
    %931 = vmatprep.subr.mxu0 0.0
    %932 = vmatpush1.msra.mxu0 0.0
    %933 = vmatprep.subr.mxu0 0.0
    %934 = vmatpush1.msra.mxu0 0.0
    %935 = vmatprep.subr.mxu0 0.0
    %936 = vmatpush1.msra.mxu0 0.0
    %937 = vmatprep.subr.mxu0 0.0
    %938 = vmatpush1.msra.mxu0 0.0
    %939 = vmatprep.subr.mxu0 0.0
    %940 = vmatpush1.msra.mxu0 0.0
    %941 = vmatprep.subr.mxu0 0.0
    %942 = vmatpush1.msra.mxu0 0.0
    %943 = vmatprep.subr.mxu0 0.0
    %944 = vmatpush1.msra.mxu0 0.0
    %945 = vmatprep.mubr.f32.mxu0 0.0
    %v946 = vand.u32 %v864, 4294901760
    %v947 = vsub.f32 %v864, %v946
    %v948 = vand.u32 %v947, 4294901760
    %v949 = vsub.f32 %v947, %v948
    %v950 = vand.u32 %v949, 4294901760
    %951 = vmatmul.mubr.f32.gmra.mrb[0].mxu0 %v950
    %v952 = vpop.f32.mrb[0].mxu0
    %v953 = vadd.f32 0.0, %v952
    %v954 = vpop.f32.mrb[0].mxu0
    %955 = vdwg.mxu0
    %956 = vmatprep.subr.mxu0 0.0
    %v957 = vand.u32 %v172, 4294901760
    %v958 = vsub.f32 %v172, %v957
    %v959 = vand.u32 %v958, 4294901760
    %v960 = vsub.f32 %v958, %v959
    %v961 = vand.u32 %v960, 4294901760
    %962 = vmatpush1.msra.mxu0 %v961
    %963 = vmatprep.subr.mxu0 0.0
    %v964 = vand.u32 %v173, 4294901760
    %v965 = vsub.f32 %v173, %v964
    %v966 = vand.u32 %v965, 4294901760
    %v967 = vsub.f32 %v965, %v966
    %v968 = vand.u32 %v967, 4294901760
    %969 = vmatpush1.msra.mxu0 %v968
    %970 = vmatprep.subr.mxu0 0.0
    %v971 = vand.u32 %v174, 4294901760
    %v972 = vsub.f32 %v174, %v971
    %v973 = vand.u32 %v972, 4294901760
    %v974 = vsub.f32 %v972, %v973
    %v975 = vand.u32 %v974, 4294901760
    %976 = vmatpush1.msra.mxu0 %v975
    %977 = vmatprep.subr.mxu0 0.0
    %v978 = vand.u32 %v175, 4294901760
    %v979 = vsub.f32 %v175, %v978
    %v980 = vand.u32 %v979, 4294901760
    %v981 = vsub.f32 %v979, %v980
    %v982 = vand.u32 %v981, 4294901760
    %983 = vmatpush1.msra.mxu0 %v982
    %984 = vmatprep.subr.mxu0 0.0
    %v985 = vand.u32 %v176, 4294901760
    %v986 = vsub.f32 %v176, %v985
    %v987 = vand.u32 %v986, 4294901760
    %v988 = vsub.f32 %v986, %v987
    %v989 = vand.u32 %v988, 4294901760
    %990 = vmatpush1.msra.mxu0 %v989
    %991 = vmatprep.subr.mxu0 0.0
    %v992 = vand.u32 %v177, 4294901760
    %v993 = vsub.f32 %v177, %v992
    %v994 = vand.u32 %v993, 4294901760
    %v995 = vsub.f32 %v993, %v994
    %v996 = vand.u32 %v995, 4294901760
    %997 = vmatpush1.msra.mxu0 %v996
    %998 = vmatprep.subr.mxu0 0.0
    %v999 = vand.u32 %v178, 4294901760
    %v1000 = vsub.f32 %v178, %v999
    %v1001 = vand.u32 %v1000, 4294901760
    %v1002 = vsub.f32 %v1000, %v1001
    %v1003 = vand.u32 %v1002, 4294901760
    %1004 = vmatpush1.msra.mxu0 %v1003
    %1005 = vmatprep.subr.mxu0 0.0
    %v1006 = vand.u32 %v179, 4294901760
    %v1007 = vsub.f32 %v179, %v1006
    %v1008 = vand.u32 %v1007, 4294901760
    %v1009 = vsub.f32 %v1007, %v1008
    %v1010 = vand.u32 %v1009, 4294901760
    %1011 = vmatpush1.msra.mxu0 %v1010
    %1012 = vmatprep.subr.mxu0 0.0
    %v1013 = vand.u32 %v180, 4294901760
    %v1014 = vsub.f32 %v180, %v1013
    %v1015 = vand.u32 %v1014, 4294901760
    %v1016 = vsub.f32 %v1014, %v1015
    %v1017 = vand.u32 %v1016, 4294901760
    %1018 = vmatpush1.msra.mxu0 %v1017
    %1019 = vmatprep.subr.mxu0 0.0
    %v1020 = vand.u32 %v181, 4294901760
    %v1021 = vsub.f32 %v181, %v1020
    %v1022 = vand.u32 %v1021, 4294901760
    %v1023 = vsub.f32 %v1021, %v1022
    %v1024 = vand.u32 %v1023, 4294901760
    %1025 = vmatpush1.msra.mxu0 %v1024
    %1026 = vmatprep.subr.mxu0 0.0
    %v1027 = vand.u32 %v182, 4294901760
    %v1028 = vsub.f32 %v182, %v1027
    %v1029 = vand.u32 %v1028, 4294901760
    %v1030 = vsub.f32 %v1028, %v1029
    %v1031 = vand.u32 %v1030, 4294901760
    %1032 = vmatpush1.msra.mxu0 %v1031
    %1033 = vmatprep.subr.mxu0 0.0
    %v1034 = vand.u32 %v183, 4294901760
    %v1035 = vsub.f32 %v183, %v1034
    %v1036 = vand.u32 %v1035, 4294901760
    %v1037 = vsub.f32 %v1035, %v1036
    %v1038 = vand.u32 %v1037, 4294901760
    %1039 = vmatpush1.msra.mxu0 %v1038
    %1040 = vmatprep.subr.mxu0 0.0
    %v1041 = vand.u32 %v184, 4294901760
    %v1042 = vsub.f32 %v184, %v1041
    %v1043 = vand.u32 %v1042, 4294901760
    %v1044 = vsub.f32 %v1042, %v1043
    %v1045 = vand.u32 %v1044, 4294901760
    %1046 = vmatpush1.msra.mxu0 %v1045
    %1047 = vmatprep.subr.mxu0 0.0
    %v1048 = vand.u32 %v185, 4294901760
    %v1049 = vsub.f32 %v185, %v1048
    %v1050 = vand.u32 %v1049, 4294901760
    %v1051 = vsub.f32 %v1049, %v1050
    %v1052 = vand.u32 %v1051, 4294901760
    %1053 = vmatpush1.msra.mxu0 %v1052
    %1054 = vmatprep.subr.mxu0 0.0
    %v1055 = vand.u32 %v186, 4294901760
    %v1056 = vsub.f32 %v186, %v1055
    %v1057 = vand.u32 %v1056, 4294901760
    %v1058 = vsub.f32 %v1056, %v1057
    %v1059 = vand.u32 %v1058, 4294901760
    %1060 = vmatpush1.msra.mxu0 %v1059
    %1061 = vmatprep.subr.mxu0 0.0
    %v1062 = vand.u32 %v187, 4294901760
    %v1063 = vsub.f32 %v187, %v1062
    %v1064 = vand.u32 %v1063, 4294901760
    %v1065 = vsub.f32 %v1063, %v1064
    %v1066 = vand.u32 %v1065, 4294901760
    %1067 = vmatpush1.msra.mxu0 %v1066
    %1068 = vmatprep.subr.mxu0 0.0
    %1069 = vmatpush1.msra.mxu0 0.0
    %1070 = vmatprep.subr.mxu0 0.0
    %1071 = vmatpush1.msra.mxu0 0.0
    %1072 = vmatprep.subr.mxu0 0.0
    %1073 = vmatpush1.msra.mxu0 0.0
    %1074 = vmatprep.subr.mxu0 0.0
    %1075 = vmatpush1.msra.mxu0 0.0
    %1076 = vmatprep.subr.mxu0 0.0
    %1077 = vmatpush1.msra.mxu0 0.0
    %1078 = vmatprep.subr.mxu0 0.0
    %1079 = vmatpush1.msra.mxu0 0.0
    %1080 = vmatprep.subr.mxu0 0.0
    %1081 = vmatpush1.msra.mxu0 0.0
    %1082 = vmatprep.subr.mxu0 0.0
    %1083 = vmatpush1.msra.mxu0 0.0
    %1084 = vmatprep.subr.mxu0 0.0
    %1085 = vmatpush1.msra.mxu0 0.0
    %1086 = vmatprep.subr.mxu0 0.0
    %1087 = vmatpush1.msra.mxu0 0.0
    %1088 = vmatprep.subr.mxu0 0.0
    %1089 = vmatpush1.msra.mxu0 0.0
    %1090 = vmatprep.subr.mxu0 0.0
    %1091 = vmatpush1.msra.mxu0 0.0
    %1092 = vmatprep.subr.mxu0 0.0
    %1093 = vmatpush1.msra.mxu0 0.0
    %1094 = vmatprep.subr.mxu0 0.0
    %1095 = vmatpush1.msra.mxu0 0.0
    %1096 = vmatprep.subr.mxu0 0.0
    %1097 = vmatpush1.msra.mxu0 0.0
    %1098 = vmatprep.subr.mxu0 0.0
    %1099 = vmatpush1.msra.mxu0 0.0
    %1100 = vmatprep.mubr.f32.mxu0 0.0
    %v1101 = vand.u32 %v864, 4294901760
    %1102 = vmatmul.mubr.f32.gmra.mrb[0].mxu0 %v1101
    %v1103 = vpop.f32.mrb[0].mxu0
    %v1104 = vadd.f32 %v953, %v1103
    %v1105 = vpop.f32.mrb[0].mxu0
    %1106 = vdwg.mxu0
    %1107 = vmatprep.subr.mxu0 0.0
    %v1108 = vand.u32 %v172, 4294901760
    %v1109 = vsub.f32 %v172, %v1108
    %1110 = vmatpush1.msra.mxu0 %v1109
    %1111 = vmatprep.subr.mxu0 0.0
    %v1112 = vand.u32 %v173, 4294901760
    %v1113 = vsub.f32 %v173, %v1112
    %1114 = vmatpush1.msra.mxu0 %v1113
    %1115 = vmatprep.subr.mxu0 0.0
    %v1116 = vand.u32 %v174, 4294901760
    %v1117 = vsub.f32 %v174, %v1116
    %1118 = vmatpush1.msra.mxu0 %v1117
    %1119 = vmatprep.subr.mxu0 0.0
    %v1120 = vand.u32 %v175, 4294901760
    %v1121 = vsub.f32 %v175, %v1120
    %1122 = vmatpush1.msra.mxu0 %v1121
    %1123 = vmatprep.subr.mxu0 0.0
    %v1124 = vand.u32 %v176, 4294901760
    %v1125 = vsub.f32 %v176, %v1124
    %1126 = vmatpush1.msra.mxu0 %v1125
    %1127 = vmatprep.subr.mxu0 0.0
    %v1128 = vand.u32 %v177, 4294901760
    %v1129 = vsub.f32 %v177, %v1128
    %1130 = vmatpush1.msra.mxu0 %v1129
    %1131 = vmatprep.subr.mxu0 0.0
    %v1132 = vand.u32 %v178, 4294901760
    %v1133 = vsub.f32 %v178, %v1132
    %1134 = vmatpush1.msra.mxu0 %v1133
    %1135 = vmatprep.subr.mxu0 0.0
    %v1136 = vand.u32 %v179, 4294901760
    %v1137 = vsub.f32 %v179, %v1136
    %1138 = vmatpush1.msra.mxu0 %v1137
    %1139 = vmatprep.subr.mxu0 0.0
    %v1140 = vand.u32 %v180, 4294901760
    %v1141 = vsub.f32 %v180, %v1140
    %1142 = vmatpush1.msra.mxu0 %v1141
    %1143 = vmatprep.subr.mxu0 0.0
    %v1144 = vand.u32 %v181, 4294901760
    %v1145 = vsub.f32 %v181, %v1144
    %1146 = vmatpush1.msra.mxu0 %v1145
    %1147 = vmatprep.subr.mxu0 0.0
    %v1148 = vand.u32 %v182, 4294901760
    %v1149 = vsub.f32 %v182, %v1148
    %1150 = vmatpush1.msra.mxu0 %v1149
    %1151 = vmatprep.subr.mxu0 0.0
    %v1152 = vand.u32 %v183, 4294901760
    %v1153 = vsub.f32 %v183, %v1152
    %1154 = vmatpush1.msra.mxu0 %v1153
    %1155 = vmatprep.subr.mxu0 0.0
    %v1156 = vand.u32 %v184, 4294901760
    %v1157 = vsub.f32 %v184, %v1156
    %1158 = vmatpush1.msra.mxu0 %v1157
    %1159 = vmatprep.subr.mxu0 0.0
    %v1160 = vand.u32 %v185, 4294901760
    %v1161 = vsub.f32 %v185, %v1160
    %1162 = vmatpush1.msra.mxu0 %v1161
    %1163 = vmatprep.subr.mxu0 0.0
    %v1164 = vand.u32 %v186, 4294901760
    %v1165 = vsub.f32 %v186, %v1164
    %1166 = vmatpush1.msra.mxu0 %v1165
    %1167 = vmatprep.subr.mxu0 0.0
    %v1168 = vand.u32 %v187, 4294901760
    %v1169 = vsub.f32 %v187, %v1168
    %1170 = vmatpush1.msra.mxu0 %v1169
    %1171 = vmatprep.subr.mxu0 0.0
    %1172 = vmatpush1.msra.mxu0 0.0
    %1173 = vmatprep.subr.mxu0 0.0
    %1174 = vmatpush1.msra.mxu0 0.0
    %1175 = vmatprep.subr.mxu0 0.0
    %1176 = vmatpush1.msra.mxu0 0.0
    %1177 = vmatprep.subr.mxu0 0.0
    %1178 = vmatpush1.msra.mxu0 0.0
    %1179 = vmatprep.subr.mxu0 0.0
    %1180 = vmatpush1.msra.mxu0 0.0
    %1181 = vmatprep.subr.mxu0 0.0
    %1182 = vmatpush1.msra.mxu0 0.0
    %1183 = vmatprep.subr.mxu0 0.0
    %1184 = vmatpush1.msra.mxu0 0.0
    %1185 = vmatprep.subr.mxu0 0.0
    %1186 = vmatpush1.msra.mxu0 0.0
    %1187 = vmatprep.subr.mxu0 0.0
    %1188 = vmatpush1.msra.mxu0 0.0
    %1189 = vmatprep.subr.mxu0 0.0
    %1190 = vmatpush1.msra.mxu0 0.0
    %1191 = vmatprep.subr.mxu0 0.0
    %1192 = vmatpush1.msra.mxu0 0.0
    %1193 = vmatprep.subr.mxu0 0.0
    %1194 = vmatpush1.msra.mxu0 0.0
    %1195 = vmatprep.subr.mxu0 0.0
    %1196 = vmatpush1.msra.mxu0 0.0
    %1197 = vmatprep.subr.mxu0 0.0
    %1198 = vmatpush1.msra.mxu0 0.0
    %1199 = vmatprep.subr.mxu0 0.0
    %1200 = vmatpush1.msra.mxu0 0.0
    %1201 = vmatprep.subr.mxu0 0.0
    %1202 = vmatpush1.msra.mxu0 0.0
    %1203 = vmatprep.mubr.f32.mxu0 0.0
    %v1204 = vand.u32 %v864, 4294901760
    %v1205 = vsub.f32 %v864, %v1204
    %1206 = vmatmul.mubr.f32.gmra.mrb[0].mxu0 %v1205
    %v1207 = vpop.f32.mrb[0].mxu0
    %v1208 = vadd.f32 %v1104, %v1207
    %v1209 = vpop.f32.mrb[0].mxu0
    %1210 = vdwg.mxu0
    %1211 = vmatprep.subr.mxu0 0.0
    %v1212 = vand.u32 %v172, 4294901760
    %1213 = vmatpush1.msra.mxu0 %v1212
    %1214 = vmatprep.subr.mxu0 0.0
    %v1215 = vand.u32 %v173, 4294901760
    %1216 = vmatpush1.msra.mxu0 %v1215
    %1217 = vmatprep.subr.mxu0 0.0
    %v1218 = vand.u32 %v174, 4294901760
    %1219 = vmatpush1.msra.mxu0 %v1218
    %1220 = vmatprep.subr.mxu0 0.0
    %v1221 = vand.u32 %v175, 4294901760
    %1222 = vmatpush1.msra.mxu0 %v1221
    %1223 = vmatprep.subr.mxu0 0.0
    %v1224 = vand.u32 %v176, 4294901760
    %1225 = vmatpush1.msra.mxu0 %v1224
    %1226 = vmatprep.subr.mxu0 0.0
    %v1227 = vand.u32 %v177, 4294901760
    %1228 = vmatpush1.msra.mxu0 %v1227
    %1229 = vmatprep.subr.mxu0 0.0
    %v1230 = vand.u32 %v178, 4294901760
    %1231 = vmatpush1.msra.mxu0 %v1230
    %1232 = vmatprep.subr.mxu0 0.0
    %v1233 = vand.u32 %v179, 4294901760
    %1234 = vmatpush1.msra.mxu0 %v1233
    %1235 = vmatprep.subr.mxu0 0.0
    %v1236 = vand.u32 %v180, 4294901760
    %1237 = vmatpush1.msra.mxu0 %v1236
    %1238 = vmatprep.subr.mxu0 0.0
    %v1239 = vand.u32 %v181, 4294901760
    %1240 = vmatpush1.msra.mxu0 %v1239
    %1241 = vmatprep.subr.mxu0 0.0
    %v1242 = vand.u32 %v182, 4294901760
    %1243 = vmatpush1.msra.mxu0 %v1242
    %1244 = vmatprep.subr.mxu0 0.0
    %v1245 = vand.u32 %v183, 4294901760
    %1246 = vmatpush1.msra.mxu0 %v1245
    %1247 = vmatprep.subr.mxu0 0.0
    %v1248 = vand.u32 %v184, 4294901760
    %1249 = vmatpush1.msra.mxu0 %v1248
    %1250 = vmatprep.subr.mxu0 0.0
    %v1251 = vand.u32 %v185, 4294901760
    %1252 = vmatpush1.msra.mxu0 %v1251
    %1253 = vmatprep.subr.mxu0 0.0
    %v1254 = vand.u32 %v186, 4294901760
    %1255 = vmatpush1.msra.mxu0 %v1254
    %1256 = vmatprep.subr.mxu0 0.0
    %v1257 = vand.u32 %v187, 4294901760
    %1258 = vmatpush1.msra.mxu0 %v1257
    %1259 = vmatprep.subr.mxu0 0.0
    %1260 = vmatpush1.msra.mxu0 0.0
    %1261 = vmatprep.subr.mxu0 0.0
    %1262 = vmatpush1.msra.mxu0 0.0
    %1263 = vmatprep.subr.mxu0 0.0
    %1264 = vmatpush1.msra.mxu0 0.0
    %1265 = vmatprep.subr.mxu0 0.0
    %1266 = vmatpush1.msra.mxu0 0.0
    %1267 = vmatprep.subr.mxu0 0.0
    %1268 = vmatpush1.msra.mxu0 0.0
    %1269 = vmatprep.subr.mxu0 0.0
    %1270 = vmatpush1.msra.mxu0 0.0
    %1271 = vmatprep.subr.mxu0 0.0
    %1272 = vmatpush1.msra.mxu0 0.0
    %1273 = vmatprep.subr.mxu0 0.0
    %1274 = vmatpush1.msra.mxu0 0.0
    %1275 = vmatprep.subr.mxu0 0.0
    %1276 = vmatpush1.msra.mxu0 0.0
    %1277 = vmatprep.subr.mxu0 0.0
    %1278 = vmatpush1.msra.mxu0 0.0
    %1279 = vmatprep.subr.mxu0 0.0
    %1280 = vmatpush1.msra.mxu0 0.0
    %1281 = vmatprep.subr.mxu0 0.0
    %1282 = vmatpush1.msra.mxu0 0.0
    %1283 = vmatprep.subr.mxu0 0.0
    %1284 = vmatpush1.msra.mxu0 0.0
    %1285 = vmatprep.subr.mxu0 0.0
    %1286 = vmatpush1.msra.mxu0 0.0
    %1287 = vmatprep.subr.mxu0 0.0
    %1288 = vmatpush1.msra.mxu0 0.0
    %1289 = vmatprep.subr.mxu0 0.0
    %1290 = vmatpush1.msra.mxu0 0.0
    %1291 = vmatprep.mubr.f32.mxu0 0.0
    %v1292 = vand.u32 %v864, 4294901760
    %v1293 = vsub.f32 %v864, %v1292
    %v1294 = vand.u32 %v1293, 4294901760
    %1295 = vmatmul.mubr.f32.gmra.mrb[0].mxu0 %v1294
    %v1296 = vpop.f32.mrb[0].mxu0
    %v1297 = vadd.f32 %v1208, %v1296
    %v1298 = vpop.f32.mrb[0].mxu0
    %1299 = vdwg.mxu0
    %1300 = vmatprep.subr.mxu0 0.0
    %v1301 = vand.u32 %v172, 4294901760
    %v1302 = vsub.f32 %v172, %v1301
    %v1303 = vand.u32 %v1302, 4294901760
    %1304 = vmatpush1.msra.mxu0 %v1303
    %1305 = vmatprep.subr.mxu0 0.0
    %v1306 = vand.u32 %v173, 4294901760
    %v1307 = vsub.f32 %v173, %v1306
    %v1308 = vand.u32 %v1307, 4294901760
    %1309 = vmatpush1.msra.mxu0 %v1308
    %1310 = vmatprep.subr.mxu0 0.0
    %v1311 = vand.u32 %v174, 4294901760
    %v1312 = vsub.f32 %v174, %v1311
    %v1313 = vand.u32 %v1312, 4294901760
    %1314 = vmatpush1.msra.mxu0 %v1313
    %1315 = vmatprep.subr.mxu0 0.0
    %v1316 = vand.u32 %v175, 4294901760
    %v1317 = vsub.f32 %v175, %v1316
    %v1318 = vand.u32 %v1317, 4294901760
    %1319 = vmatpush1.msra.mxu0 %v1318
    %1320 = vmatprep.subr.mxu0 0.0
    %v1321 = vand.u32 %v176, 4294901760
    %v1322 = vsub.f32 %v176, %v1321
    %v1323 = vand.u32 %v1322, 4294901760
    %1324 = vmatpush1.msra.mxu0 %v1323
    %1325 = vmatprep.subr.mxu0 0.0
    %v1326 = vand.u32 %v177, 4294901760
    %v1327 = vsub.f32 %v177, %v1326
    %v1328 = vand.u32 %v1327, 4294901760
    %1329 = vmatpush1.msra.mxu0 %v1328
    %1330 = vmatprep.subr.mxu0 0.0
    %v1331 = vand.u32 %v178, 4294901760
    %v1332 = vsub.f32 %v178, %v1331
    %v1333 = vand.u32 %v1332, 4294901760
    %1334 = vmatpush1.msra.mxu0 %v1333
    %1335 = vmatprep.subr.mxu0 0.0
    %v1336 = vand.u32 %v179, 4294901760
    %v1337 = vsub.f32 %v179, %v1336
    %v1338 = vand.u32 %v1337, 4294901760
    %1339 = vmatpush1.msra.mxu0 %v1338
    %1340 = vmatprep.subr.mxu0 0.0
    %v1341 = vand.u32 %v180, 4294901760
    %v1342 = vsub.f32 %v180, %v1341
    %v1343 = vand.u32 %v1342, 4294901760
    %1344 = vmatpush1.msra.mxu0 %v1343
    %1345 = vmatprep.subr.mxu0 0.0
    %v1346 = vand.u32 %v181, 4294901760
    %v1347 = vsub.f32 %v181, %v1346
    %v1348 = vand.u32 %v1347, 4294901760
    %1349 = vmatpush1.msra.mxu0 %v1348
    %1350 = vmatprep.subr.mxu0 0.0
    %v1351 = vand.u32 %v182, 4294901760
    %v1352 = vsub.f32 %v182, %v1351
    %v1353 = vand.u32 %v1352, 4294901760
    %1354 = vmatpush1.msra.mxu0 %v1353
    %1355 = vmatprep.subr.mxu0 0.0
    %v1356 = vand.u32 %v183, 4294901760
    %v1357 = vsub.f32 %v183, %v1356
    %v1358 = vand.u32 %v1357, 4294901760
    %1359 = vmatpush1.msra.mxu0 %v1358
    %1360 = vmatprep.subr.mxu0 0.0
    %v1361 = vand.u32 %v184, 4294901760
    %v1362 = vsub.f32 %v184, %v1361
    %v1363 = vand.u32 %v1362, 4294901760
    %1364 = vmatpush1.msra.mxu0 %v1363
    %1365 = vmatprep.subr.mxu0 0.0
    %v1366 = vand.u32 %v185, 4294901760
    %v1367 = vsub.f32 %v185, %v1366
    %v1368 = vand.u32 %v1367, 4294901760
    %1369 = vmatpush1.msra.mxu0 %v1368
    %1370 = vmatprep.subr.mxu0 0.0
    %v1371 = vand.u32 %v186, 4294901760
    %v1372 = vsub.f32 %v186, %v1371
    %v1373 = vand.u32 %v1372, 4294901760
    %1374 = vmatpush1.msra.mxu0 %v1373
    %1375 = vmatprep.subr.mxu0 0.0
    %v1376 = vand.u32 %v187, 4294901760
    %v1377 = vsub.f32 %v187, %v1376
    %v1378 = vand.u32 %v1377, 4294901760
    %1379 = vmatpush1.msra.mxu0 %v1378
    %1380 = vmatprep.subr.mxu0 0.0
    %1381 = vmatpush1.msra.mxu0 0.0
    %1382 = vmatprep.subr.mxu0 0.0
    %1383 = vmatpush1.msra.mxu0 0.0
    %1384 = vmatprep.subr.mxu0 0.0
    %1385 = vmatpush1.msra.mxu0 0.0
    %1386 = vmatprep.subr.mxu0 0.0
    %1387 = vmatpush1.msra.mxu0 0.0
    %1388 = vmatprep.subr.mxu0 0.0
    %1389 = vmatpush1.msra.mxu0 0.0
    %1390 = vmatprep.subr.mxu0 0.0
    %1391 = vmatpush1.msra.mxu0 0.0
    %1392 = vmatprep.subr.mxu0 0.0
    %1393 = vmatpush1.msra.mxu0 0.0
    %1394 = vmatprep.subr.mxu0 0.0
    %1395 = vmatpush1.msra.mxu0 0.0
    %1396 = vmatprep.subr.mxu0 0.0
    %1397 = vmatpush1.msra.mxu0 0.0
    %1398 = vmatprep.subr.mxu0 0.0
    %1399 = vmatpush1.msra.mxu0 0.0
    %1400 = vmatprep.subr.mxu0 0.0
    %1401 = vmatpush1.msra.mxu0 0.0
    %1402 = vmatprep.subr.mxu0 0.0
    %1403 = vmatpush1.msra.mxu0 0.0
    %1404 = vmatprep.subr.mxu0 0.0
    %1405 = vmatpush1.msra.mxu0 0.0
    %1406 = vmatprep.subr.mxu0 0.0
    %1407 = vmatpush1.msra.mxu0 0.0
    %1408 = vmatprep.subr.mxu0 0.0
    %1409 = vmatpush1.msra.mxu0 0.0
    %1410 = vmatprep.subr.mxu0 0.0
    %1411 = vmatpush1.msra.mxu0 0.0
    %1412 = vmatprep.mubr.f32.mxu0 0.0
    %v1413 = vand.u32 %v864, 4294901760
    %1414 = vmatmul.mubr.f32.gmra.mrb[0].mxu0 %v1413
    %v1415 = vpop.f32.mrb[0].mxu0
    %v1416 = vadd.f32 %v1297, %v1415
    %v1417 = vpop.f32.mrb[0].mxu0
    %1418 = vdwg.mxu0
    %1419 = vmatprep.subr.mxu0 0.0
    %v1420 = vand.u32 %v172, 4294901760
    %1421 = vmatpush1.msra.mxu0 %v1420
    %1422 = vmatprep.subr.mxu0 0.0
    %v1423 = vand.u32 %v173, 4294901760
    %1424 = vmatpush1.msra.mxu0 %v1423
    %1425 = vmatprep.subr.mxu0 0.0
    %v1426 = vand.u32 %v174, 4294901760
    %1427 = vmatpush1.msra.mxu0 %v1426
    %1428 = vmatprep.subr.mxu0 0.0
    %v1429 = vand.u32 %v175, 4294901760
    %1430 = vmatpush1.msra.mxu0 %v1429
    %1431 = vmatprep.subr.mxu0 0.0
    %v1432 = vand.u32 %v176, 4294901760
    %1433 = vmatpush1.msra.mxu0 %v1432
    %1434 = vmatprep.subr.mxu0 0.0
    %v1435 = vand.u32 %v177, 4294901760
    %1436 = vmatpush1.msra.mxu0 %v1435
    %1437 = vmatprep.subr.mxu0 0.0
    %v1438 = vand.u32 %v178, 4294901760
    %1439 = vmatpush1.msra.mxu0 %v1438
    %1440 = vmatprep.subr.mxu0 0.0
    %v1441 = vand.u32 %v179, 4294901760
    %1442 = vmatpush1.msra.mxu0 %v1441
    %1443 = vmatprep.subr.mxu0 0.0
    %v1444 = vand.u32 %v180, 4294901760
    %1445 = vmatpush1.msra.mxu0 %v1444
    %1446 = vmatprep.subr.mxu0 0.0
    %v1447 = vand.u32 %v181, 4294901760
    %1448 = vmatpush1.msra.mxu0 %v1447
    %1449 = vmatprep.subr.mxu0 0.0
    %v1450 = vand.u32 %v182, 4294901760
    %1451 = vmatpush1.msra.mxu0 %v1450
    %1452 = vmatprep.subr.mxu0 0.0
    %v1453 = vand.u32 %v183, 4294901760
    %1454 = vmatpush1.msra.mxu0 %v1453
    %1455 = vmatprep.subr.mxu0 0.0
    %v1456 = vand.u32 %v184, 4294901760
    %1457 = vmatpush1.msra.mxu0 %v1456
    %1458 = vmatprep.subr.mxu0 0.0
    %v1459 = vand.u32 %v185, 4294901760
    %1460 = vmatpush1.msra.mxu0 %v1459
    %1461 = vmatprep.subr.mxu0 0.0
    %v1462 = vand.u32 %v186, 4294901760
    %1463 = vmatpush1.msra.mxu0 %v1462
    %1464 = vmatprep.subr.mxu0 0.0
    %v1465 = vand.u32 %v187, 4294901760
    %1466 = vmatpush1.msra.mxu0 %v1465
    %1467 = vmatprep.subr.mxu0 0.0
    %1468 = vmatpush1.msra.mxu0 0.0
    %1469 = vmatprep.subr.mxu0 0.0
    %1470 = vmatpush1.msra.mxu0 0.0
    %1471 = vmatprep.subr.mxu0 0.0
    %1472 = vmatpush1.msra.mxu0 0.0
    %1473 = vmatprep.subr.mxu0 0.0
    %1474 = vmatpush1.msra.mxu0 0.0
    %1475 = vmatprep.subr.mxu0 0.0
    %1476 = vmatpush1.msra.mxu0 0.0
    %1477 = vmatprep.subr.mxu0 0.0
    %1478 = vmatpush1.msra.mxu0 0.0
    %1479 = vmatprep.subr.mxu0 0.0
    %1480 = vmatpush1.msra.mxu0 0.0
    %1481 = vmatprep.subr.mxu0 0.0
    %1482 = vmatpush1.msra.mxu0 0.0
    %1483 = vmatprep.subr.mxu0 0.0
    %1484 = vmatpush1.msra.mxu0 0.0
    %1485 = vmatprep.subr.mxu0 0.0
    %1486 = vmatpush1.msra.mxu0 0.0
    %1487 = vmatprep.subr.mxu0 0.0
    %1488 = vmatpush1.msra.mxu0 0.0
    %1489 = vmatprep.subr.mxu0 0.0
    %1490 = vmatpush1.msra.mxu0 0.0
    %1491 = vmatprep.subr.mxu0 0.0
    %1492 = vmatpush1.msra.mxu0 0.0
    %1493 = vmatprep.subr.mxu0 0.0
    %1494 = vmatpush1.msra.mxu0 0.0
    %1495 = vmatprep.subr.mxu0 0.0
    %1496 = vmatpush1.msra.mxu0 0.0
    %1497 = vmatprep.subr.mxu0 0.0
    %1498 = vmatpush1.msra.mxu0 0.0
    %1499 = vmatprep.mubr.f32.mxu0 0.0
    %v1500 = vand.u32 %v864, 4294901760
    %1501 = vmatmul.mubr.f32.gmra.mrb[0].mxu0 %v1500
    %v1502 = vpop.f32.mrb[0].mxu0
    %v1503 = vadd.f32 %v1416, %v1502
    %v1504 = vpop.f32.mrb[0].mxu0
    %1505 = vdwg.mxu0
    %v1506 = vlog2.pop %v1503
    %v1507 = vmul.f32 %v1506, 0.6931472
    %v1508 = vadd.f32 %v1507, %v861
    %v1509 = vadd.f32 %v1508, %v845
    %v1510 = vadd.f32 %v1509, %v857
    %vm1511 = vcmp.gt.f32.partialorder %v859, 0.5
    %v1512 = vsel %vm1511, 1, 0
    %1513 = vset.pattern.permute.xlu0 0
    %1514 = vperm.xlu0 %1513, %v1512
    %v1515 = vpop.permute.xlu0 %1514
    %vm1516 = vcmp.eq.s32.totalorder %v1515, 1
    %v1517 = vsel %vm1516, %v1510, %v855
    %s1518 = scalar_lea.vmem %s0, 16
    %v1519 = vld [vmem:[%s1518] sm:$0xff]
    %s1520 = scalar_lea.vmem %s1, 16
    %v1521 = vld [vmem:[%s1520] sm:$0xff]
    %1522 = vmax.xlane.f32.xlu0 %v1517
    %v1523 = vpop.xlane.xlu0 %1522
    %v1524 = vsub.f32 %v1517, %v1523
    %v1525 = vmul.f32 %v1524, 1.442695
    %v1526 = vpow.pop %v1525
    %1527 = vmatprep.subr.mxu0 0.0
    %v1528 = vand.u32 %v172, 4294901760
    %1529 = vmatpush1.msra.mxu0 %v1528
    %1530 = vmatprep.subr.mxu0 0.0
    %v1531 = vand.u32 %v173, 4294901760
    %1532 = vmatpush1.msra.mxu0 %v1531
    %1533 = vmatprep.subr.mxu0 0.0
    %v1534 = vand.u32 %v174, 4294901760
    %1535 = vmatpush1.msra.mxu0 %v1534
    %1536 = vmatprep.subr.mxu0 0.0
    %v1537 = vand.u32 %v175, 4294901760
    %1538 = vmatpush1.msra.mxu0 %v1537
    %1539 = vmatprep.subr.mxu0 0.0
    %v1540 = vand.u32 %v176, 4294901760
    %1541 = vmatpush1.msra.mxu0 %v1540
    %1542 = vmatprep.subr.mxu0 0.0
    %v1543 = vand.u32 %v177, 4294901760
    %1544 = vmatpush1.msra.mxu0 %v1543
    %1545 = vmatprep.subr.mxu0 0.0
    %v1546 = vand.u32 %v178, 4294901760
    %1547 = vmatpush1.msra.mxu0 %v1546
    %1548 = vmatprep.subr.mxu0 0.0
    %v1549 = vand.u32 %v179, 4294901760
    %1550 = vmatpush1.msra.mxu0 %v1549
    %1551 = vmatprep.subr.mxu0 0.0
    %v1552 = vand.u32 %v180, 4294901760
    %1553 = vmatpush1.msra.mxu0 %v1552
    %1554 = vmatprep.subr.mxu0 0.0
    %v1555 = vand.u32 %v181, 4294901760
    %1556 = vmatpush1.msra.mxu0 %v1555
    %1557 = vmatprep.subr.mxu0 0.0
    %v1558 = vand.u32 %v182, 4294901760
    %1559 = vmatpush1.msra.mxu0 %v1558
    %1560 = vmatprep.subr.mxu0 0.0
    %v1561 = vand.u32 %v183, 4294901760
    %1562 = vmatpush1.msra.mxu0 %v1561
    %1563 = vmatprep.subr.mxu0 0.0
    %v1564 = vand.u32 %v184, 4294901760
    %1565 = vmatpush1.msra.mxu0 %v1564
    %1566 = vmatprep.subr.mxu0 0.0
    %v1567 = vand.u32 %v185, 4294901760
    %1568 = vmatpush1.msra.mxu0 %v1567
    %1569 = vmatprep.subr.mxu0 0.0
    %v1570 = vand.u32 %v186, 4294901760
    %1571 = vmatpush1.msra.mxu0 %v1570
    %1572 = vmatprep.subr.mxu0 0.0
    %v1573 = vand.u32 %v187, 4294901760
    %1574 = vmatpush1.msra.mxu0 %v1573
    %1575 = vmatprep.subr.mxu0 0.0
    %1576 = vmatpush1.msra.mxu0 0.0
    %1577 = vmatprep.subr.mxu0 0.0
    %1578 = vmatpush1.msra.mxu0 0.0
    %1579 = vmatprep.subr.mxu0 0.0
    %1580 = vmatpush1.msra.mxu0 0.0
    %1581 = vmatprep.subr.mxu0 0.0
    %1582 = vmatpush1.msra.mxu0 0.0
    %1583 = vmatprep.subr.mxu0 0.0
    %1584 = vmatpush1.msra.mxu0 0.0
    %1585 = vmatprep.subr.mxu0 0.0
    %1586 = vmatpush1.msra.mxu0 0.0
    %1587 = vmatprep.subr.mxu0 0.0
    %1588 = vmatpush1.msra.mxu0 0.0
    %1589 = vmatprep.subr.mxu0 0.0
    %1590 = vmatpush1.msra.mxu0 0.0
    %1591 = vmatprep.subr.mxu0 0.0
    %1592 = vmatpush1.msra.mxu0 0.0
    %1593 = vmatprep.subr.mxu0 0.0
    %1594 = vmatpush1.msra.mxu0 0.0
    %1595 = vmatprep.subr.mxu0 0.0
    %1596 = vmatpush1.msra.mxu0 0.0
    %1597 = vmatprep.subr.mxu0 0.0
    %1598 = vmatpush1.msra.mxu0 0.0
    %1599 = vmatprep.subr.mxu0 0.0
    %1600 = vmatpush1.msra.mxu0 0.0
    %1601 = vmatprep.subr.mxu0 0.0
    %1602 = vmatpush1.msra.mxu0 0.0
    %1603 = vmatprep.subr.mxu0 0.0
    %1604 = vmatpush1.msra.mxu0 0.0
    %1605 = vmatprep.subr.mxu0 0.0
    %1606 = vmatpush1.msra.mxu0 0.0
    %1607 = vmatprep.mubr.f32.mxu0 0.0
    %v1608 = vand.u32 %v1526, 4294901760
    %v1609 = vsub.f32 %v1526, %v1608
    %v1610 = vand.u32 %v1609, 4294901760
    %v1611 = vsub.f32 %v1609, %v1610
    %v1612 = vand.u32 %v1611, 4294901760
    %1613 = vmatmul.mubr.f32.gmra.mrb[0].mxu0 %v1612
    %v1614 = vpop.f32.mrb[0].mxu0
    %v1615 = vadd.f32 0.0, %v1614
    %v1616 = vpop.f32.mrb[0].mxu0
    %1617 = vdwg.mxu0
    %1618 = vmatprep.subr.mxu0 0.0
    %v1619 = vand.u32 %v172, 4294901760
    %v1620 = vsub.f32 %v172, %v1619
    %v1621 = vand.u32 %v1620, 4294901760
    %v1622 = vsub.f32 %v1620, %v1621
    %v1623 = vand.u32 %v1622, 4294901760
    %1624 = vmatpush1.msra.mxu0 %v1623
    %1625 = vmatprep.subr.mxu0 0.0
    %v1626 = vand.u32 %v173, 4294901760
    %v1627 = vsub.f32 %v173, %v1626
    %v1628 = vand.u32 %v1627, 4294901760
    %v1629 = vsub.f32 %v1627, %v1628
    %v1630 = vand.u32 %v1629, 4294901760
    %1631 = vmatpush1.msra.mxu0 %v1630
    %1632 = vmatprep.subr.mxu0 0.0
    %v1633 = vand.u32 %v174, 4294901760
    %v1634 = vsub.f32 %v174, %v1633
    %v1635 = vand.u32 %v1634, 4294901760
    %v1636 = vsub.f32 %v1634, %v1635
    %v1637 = vand.u32 %v1636, 4294901760
    %1638 = vmatpush1.msra.mxu0 %v1637
    %1639 = vmatprep.subr.mxu0 0.0
    %v1640 = vand.u32 %v175, 4294901760
    %v1641 = vsub.f32 %v175, %v1640
    %v1642 = vand.u32 %v1641, 4294901760
    %v1643 = vsub.f32 %v1641, %v1642
    %v1644 = vand.u32 %v1643, 4294901760
    %1645 = vmatpush1.msra.mxu0 %v1644
    %1646 = vmatprep.subr.mxu0 0.0
    %v1647 = vand.u32 %v176, 4294901760
    %v1648 = vsub.f32 %v176, %v1647
    %v1649 = vand.u32 %v1648, 4294901760
    %v1650 = vsub.f32 %v1648, %v1649
    %v1651 = vand.u32 %v1650, 4294901760
    %1652 = vmatpush1.msra.mxu0 %v1651
    %1653 = vmatprep.subr.mxu0 0.0
    %v1654 = vand.u32 %v177, 4294901760
    %v1655 = vsub.f32 %v177, %v1654
    %v1656 = vand.u32 %v1655, 4294901760
    %v1657 = vsub.f32 %v1655, %v1656
    %v1658 = vand.u32 %v1657, 4294901760
    %1659 = vmatpush1.msra.mxu0 %v1658
    %1660 = vmatprep.subr.mxu0 0.0
    %v1661 = vand.u32 %v178, 4294901760
    %v1662 = vsub.f32 %v178, %v1661
    %v1663 = vand.u32 %v1662, 4294901760
    %v1664 = vsub.f32 %v1662, %v1663
    %v1665 = vand.u32 %v1664, 4294901760
    %1666 = vmatpush1.msra.mxu0 %v1665
    %1667 = vmatprep.subr.mxu0 0.0
    %v1668 = vand.u32 %v179, 4294901760
    %v1669 = vsub.f32 %v179, %v1668
    %v1670 = vand.u32 %v1669, 4294901760
    %v1671 = vsub.f32 %v1669, %v1670
    %v1672 = vand.u32 %v1671, 4294901760
    %1673 = vmatpush1.msra.mxu0 %v1672
    %1674 = vmatprep.subr.mxu0 0.0
    %v1675 = vand.u32 %v180, 4294901760
    %v1676 = vsub.f32 %v180, %v1675
    %v1677 = vand.u32 %v1676, 4294901760
    %v1678 = vsub.f32 %v1676, %v1677
    %v1679 = vand.u32 %v1678, 4294901760
    %1680 = vmatpush1.msra.mxu0 %v1679
    %1681 = vmatprep.subr.mxu0 0.0
    %v1682 = vand.u32 %v181, 4294901760
    %v1683 = vsub.f32 %v181, %v1682
    %v1684 = vand.u32 %v1683, 4294901760
    %v1685 = vsub.f32 %v1683, %v1684
    %v1686 = vand.u32 %v1685, 4294901760
    %1687 = vmatpush1.msra.mxu0 %v1686
    %1688 = vmatprep.subr.mxu0 0.0
    %v1689 = vand.u32 %v182, 4294901760
    %v1690 = vsub.f32 %v182, %v1689
    %v1691 = vand.u32 %v1690, 4294901760
    %v1692 = vsub.f32 %v1690, %v1691
    %v1693 = vand.u32 %v1692, 4294901760
    %1694 = vmatpush1.msra.mxu0 %v1693
    %1695 = vmatprep.subr.mxu0 0.0
    %v1696 = vand.u32 %v183, 4294901760
    %v1697 = vsub.f32 %v183, %v1696
    %v1698 = vand.u32 %v1697, 4294901760
    %v1699 = vsub.f32 %v1697, %v1698
    %v1700 = vand.u32 %v1699, 4294901760
    %1701 = vmatpush1.msra.mxu0 %v1700
    %1702 = vmatprep.subr.mxu0 0.0
    %v1703 = vand.u32 %v184, 4294901760
    %v1704 = vsub.f32 %v184, %v1703
    %v1705 = vand.u32 %v1704, 4294901760
    %v1706 = vsub.f32 %v1704, %v1705
    %v1707 = vand.u32 %v1706, 4294901760
    %1708 = vmatpush1.msra.mxu0 %v1707
    %1709 = vmatprep.subr.mxu0 0.0
    %v1710 = vand.u32 %v185, 4294901760
    %v1711 = vsub.f32 %v185, %v1710
    %v1712 = vand.u32 %v1711, 4294901760
    %v1713 = vsub.f32 %v1711, %v1712
    %v1714 = vand.u32 %v1713, 4294901760
    %1715 = vmatpush1.msra.mxu0 %v1714
    %1716 = vmatprep.subr.mxu0 0.0
    %v1717 = vand.u32 %v186, 4294901760
    %v1718 = vsub.f32 %v186, %v1717
    %v1719 = vand.u32 %v1718, 4294901760
    %v1720 = vsub.f32 %v1718, %v1719
    %v1721 = vand.u32 %v1720, 4294901760
    %1722 = vmatpush1.msra.mxu0 %v1721
    %1723 = vmatprep.subr.mxu0 0.0
    %v1724 = vand.u32 %v187, 4294901760
    %v1725 = vsub.f32 %v187, %v1724
    %v1726 = vand.u32 %v1725, 4294901760
    %v1727 = vsub.f32 %v1725, %v1726
    %v1728 = vand.u32 %v1727, 4294901760
    %1729 = vmatpush1.msra.mxu0 %v1728
    %1730 = vmatprep.subr.mxu0 0.0
    %1731 = vmatpush1.msra.mxu0 0.0
    %1732 = vmatprep.subr.mxu0 0.0
    %1733 = vmatpush1.msra.mxu0 0.0
    %1734 = vmatprep.subr.mxu0 0.0
    %1735 = vmatpush1.msra.mxu0 0.0
    %1736 = vmatprep.subr.mxu0 0.0
    %1737 = vmatpush1.msra.mxu0 0.0
    %1738 = vmatprep.subr.mxu0 0.0
    %1739 = vmatpush1.msra.mxu0 0.0
    %1740 = vmatprep.subr.mxu0 0.0
    %1741 = vmatpush1.msra.mxu0 0.0
    %1742 = vmatprep.subr.mxu0 0.0
    %1743 = vmatpush1.msra.mxu0 0.0
    %1744 = vmatprep.subr.mxu0 0.0
    %1745 = vmatpush1.msra.mxu0 0.0
    %1746 = vmatprep.subr.mxu0 0.0
    %1747 = vmatpush1.msra.mxu0 0.0
    %1748 = vmatprep.subr.mxu0 0.0
    %1749 = vmatpush1.msra.mxu0 0.0
    %1750 = vmatprep.subr.mxu0 0.0
    %1751 = vmatpush1.msra.mxu0 0.0
    %1752 = vmatprep.subr.mxu0 0.0
    %1753 = vmatpush1.msra.mxu0 0.0
    %1754 = vmatprep.subr.mxu0 0.0
    %1755 = vmatpush1.msra.mxu0 0.0
    %1756 = vmatprep.subr.mxu0 0.0
    %1757 = vmatpush1.msra.mxu0 0.0
    %1758 = vmatprep.subr.mxu0 0.0
    %1759 = vmatpush1.msra.mxu0 0.0
    %1760 = vmatprep.subr.mxu0 0.0
    %1761 = vmatpush1.msra.mxu0 0.0
    %1762 = vmatprep.mubr.f32.mxu0 0.0
    %v1763 = vand.u32 %v1526, 4294901760
    %1764 = vmatmul.mubr.f32.gmra.mrb[0].mxu0 %v1763
    %v1765 = vpop.f32.mrb[0].mxu0
    %v1766 = vadd.f32 %v1615, %v1765
    %v1767 = vpop.f32.mrb[0].mxu0
    %1768 = vdwg.mxu0
    %1769 = vmatprep.subr.mxu0 0.0
    %v1770 = vand.u32 %v172, 4294901760
    %v1771 = vsub.f32 %v172, %v1770
    %1772 = vmatpush1.msra.mxu0 %v1771
    %1773 = vmatprep.subr.mxu0 0.0
    %v1774 = vand.u32 %v173, 4294901760
    %v1775 = vsub.f32 %v173, %v1774
    %1776 = vmatpush1.msra.mxu0 %v1775
    %1777 = vmatprep.subr.mxu0 0.0
    %v1778 = vand.u32 %v174, 4294901760
    %v1779 = vsub.f32 %v174, %v1778
    %1780 = vmatpush1.msra.mxu0 %v1779
    %1781 = vmatprep.subr.mxu0 0.0
    %v1782 = vand.u32 %v175, 4294901760
    %v1783 = vsub.f32 %v175, %v1782
    %1784 = vmatpush1.msra.mxu0 %v1783
    %1785 = vmatprep.subr.mxu0 0.0
    %v1786 = vand.u32 %v176, 4294901760
    %v1787 = vsub.f32 %v176, %v1786
    %1788 = vmatpush1.msra.mxu0 %v1787
    %1789 = vmatprep.subr.mxu0 0.0
    %v1790 = vand.u32 %v177, 4294901760
    %v1791 = vsub.f32 %v177, %v1790
    %1792 = vmatpush1.msra.mxu0 %v1791
    %1793 = vmatprep.subr.mxu0 0.0
    %v1794 = vand.u32 %v178, 4294901760
    %v1795 = vsub.f32 %v178, %v1794
    %1796 = vmatpush1.msra.mxu0 %v1795
    %1797 = vmatprep.subr.mxu0 0.0
    %v1798 = vand.u32 %v179, 4294901760
    %v1799 = vsub.f32 %v179, %v1798
    %1800 = vmatpush1.msra.mxu0 %v1799
    %1801 = vmatprep.subr.mxu0 0.0
    %v1802 = vand.u32 %v180, 4294901760
    %v1803 = vsub.f32 %v180, %v1802
    %1804 = vmatpush1.msra.mxu0 %v1803
    %1805 = vmatprep.subr.mxu0 0.0
    %v1806 = vand.u32 %v181, 4294901760
    %v1807 = vsub.f32 %v181, %v1806
    %1808 = vmatpush1.msra.mxu0 %v1807
    %1809 = vmatprep.subr.mxu0 0.0
    %v1810 = vand.u32 %v182, 4294901760
    %v1811 = vsub.f32 %v182, %v1810
    %1812 = vmatpush1.msra.mxu0 %v1811
    %1813 = vmatprep.subr.mxu0 0.0
    %v1814 = vand.u32 %v183, 4294901760
    %v1815 = vsub.f32 %v183, %v1814
    %1816 = vmatpush1.msra.mxu0 %v1815
    %1817 = vmatprep.subr.mxu0 0.0
    %v1818 = vand.u32 %v184, 4294901760
    %v1819 = vsub.f32 %v184, %v1818
    %1820 = vmatpush1.msra.mxu0 %v1819
    %1821 = vmatprep.subr.mxu0 0.0
    %v1822 = vand.u32 %v185, 4294901760
    %v1823 = vsub.f32 %v185, %v1822
    %1824 = vmatpush1.msra.mxu0 %v1823
    %1825 = vmatprep.subr.mxu0 0.0
    %v1826 = vand.u32 %v186, 4294901760
    %v1827 = vsub.f32 %v186, %v1826
    %1828 = vmatpush1.msra.mxu0 %v1827
    %1829 = vmatprep.subr.mxu0 0.0
    %v1830 = vand.u32 %v187, 4294901760
    %v1831 = vsub.f32 %v187, %v1830
    %1832 = vmatpush1.msra.mxu0 %v1831
    %1833 = vmatprep.subr.mxu0 0.0
    %1834 = vmatpush1.msra.mxu0 0.0
    %1835 = vmatprep.subr.mxu0 0.0
    %1836 = vmatpush1.msra.mxu0 0.0
    %1837 = vmatprep.subr.mxu0 0.0
    %1838 = vmatpush1.msra.mxu0 0.0
    %1839 = vmatprep.subr.mxu0 0.0
    %1840 = vmatpush1.msra.mxu0 0.0
    %1841 = vmatprep.subr.mxu0 0.0
    %1842 = vmatpush1.msra.mxu0 0.0
    %1843 = vmatprep.subr.mxu0 0.0
    %1844 = vmatpush1.msra.mxu0 0.0
    %1845 = vmatprep.subr.mxu0 0.0
    %1846 = vmatpush1.msra.mxu0 0.0
    %1847 = vmatprep.subr.mxu0 0.0
    %1848 = vmatpush1.msra.mxu0 0.0
    %1849 = vmatprep.subr.mxu0 0.0
    %1850 = vmatpush1.msra.mxu0 0.0
    %1851 = vmatprep.subr.mxu0 0.0
    %1852 = vmatpush1.msra.mxu0 0.0
    %1853 = vmatprep.subr.mxu0 0.0
    %1854 = vmatpush1.msra.mxu0 0.0
    %1855 = vmatprep.subr.mxu0 0.0
    %1856 = vmatpush1.msra.mxu0 0.0
    %1857 = vmatprep.subr.mxu0 0.0
    %1858 = vmatpush1.msra.mxu0 0.0
    %1859 = vmatprep.subr.mxu0 0.0
    %1860 = vmatpush1.msra.mxu0 0.0
    %1861 = vmatprep.subr.mxu0 0.0
    %1862 = vmatpush1.msra.mxu0 0.0
    %1863 = vmatprep.subr.mxu0 0.0
    %1864 = vmatpush1.msra.mxu0 0.0
    %1865 = vmatprep.mubr.f32.mxu0 0.0
    %v1866 = vand.u32 %v1526, 4294901760
    %v1867 = vsub.f32 %v1526, %v1866
    %1868 = vmatmul.mubr.f32.gmra.mrb[0].mxu0 %v1867
    %v1869 = vpop.f32.mrb[0].mxu0
    %v1870 = vadd.f32 %v1766, %v1869
    %v1871 = vpop.f32.mrb[0].mxu0
    %1872 = vdwg.mxu0
    %1873 = vmatprep.subr.mxu0 0.0
    %v1874 = vand.u32 %v172, 4294901760
    %1875 = vmatpush1.msra.mxu0 %v1874
    %1876 = vmatprep.subr.mxu0 0.0
    %v1877 = vand.u32 %v173, 4294901760
    %1878 = vmatpush1.msra.mxu0 %v1877
    %1879 = vmatprep.subr.mxu0 0.0
    %v1880 = vand.u32 %v174, 4294901760
    %1881 = vmatpush1.msra.mxu0 %v1880
    %1882 = vmatprep.subr.mxu0 0.0
    %v1883 = vand.u32 %v175, 4294901760
    %1884 = vmatpush1.msra.mxu0 %v1883
    %1885 = vmatprep.subr.mxu0 0.0
    %v1886 = vand.u32 %v176, 4294901760
    %1887 = vmatpush1.msra.mxu0 %v1886
    %1888 = vmatprep.subr.mxu0 0.0
    %v1889 = vand.u32 %v177, 4294901760
    %1890 = vmatpush1.msra.mxu0 %v1889
    %1891 = vmatprep.subr.mxu0 0.0
    %v1892 = vand.u32 %v178, 4294901760
    %1893 = vmatpush1.msra.mxu0 %v1892
    %1894 = vmatprep.subr.mxu0 0.0
    %v1895 = vand.u32 %v179, 4294901760
    %1896 = vmatpush1.msra.mxu0 %v1895
    %1897 = vmatprep.subr.mxu0 0.0
    %v1898 = vand.u32 %v180, 4294901760
    %1899 = vmatpush1.msra.mxu0 %v1898
    %1900 = vmatprep.subr.mxu0 0.0
    %v1901 = vand.u32 %v181, 4294901760
    %1902 = vmatpush1.msra.mxu0 %v1901
    %1903 = vmatprep.subr.mxu0 0.0
    %v1904 = vand.u32 %v182, 4294901760
    %1905 = vmatpush1.msra.mxu0 %v1904
    %1906 = vmatprep.subr.mxu0 0.0
    %v1907 = vand.u32 %v183, 4294901760
    %1908 = vmatpush1.msra.mxu0 %v1907
    %1909 = vmatprep.subr.mxu0 0.0
    %v1910 = vand.u32 %v184, 4294901760
    %1911 = vmatpush1.msra.mxu0 %v1910
    %1912 = vmatprep.subr.mxu0 0.0
    %v1913 = vand.u32 %v185, 4294901760
    %1914 = vmatpush1.msra.mxu0 %v1913
    %1915 = vmatprep.subr.mxu0 0.0
    %v1916 = vand.u32 %v186, 4294901760
    %1917 = vmatpush1.msra.mxu0 %v1916
    %1918 = vmatprep.subr.mxu0 0.0
    %v1919 = vand.u32 %v187, 4294901760
    %1920 = vmatpush1.msra.mxu0 %v1919
    %1921 = vmatprep.subr.mxu0 0.0
    %1922 = vmatpush1.msra.mxu0 0.0
    %1923 = vmatprep.subr.mxu0 0.0
    %1924 = vmatpush1.msra.mxu0 0.0
    %1925 = vmatprep.subr.mxu0 0.0
    %1926 = vmatpush1.msra.mxu0 0.0
    %1927 = vmatprep.subr.mxu0 0.0
    %1928 = vmatpush1.msra.mxu0 0.0
    %1929 = vmatprep.subr.mxu0 0.0
    %1930 = vmatpush1.msra.mxu0 0.0
    %1931 = vmatprep.subr.mxu0 0.0
    %1932 = vmatpush1.msra.mxu0 0.0
    %1933 = vmatprep.subr.mxu0 0.0
    %1934 = vmatpush1.msra.mxu0 0.0
    %1935 = vmatprep.subr.mxu0 0.0
    %1936 = vmatpush1.msra.mxu0 0.0
    %1937 = vmatprep.subr.mxu0 0.0
    %1938 = vmatpush1.msra.mxu0 0.0
    %1939 = vmatprep.subr.mxu0 0.0
    %1940 = vmatpush1.msra.mxu0 0.0
    %1941 = vmatprep.subr.mxu0 0.0
    %1942 = vmatpush1.msra.mxu0 0.0
    %1943 = vmatprep.subr.mxu0 0.0
    %1944 = vmatpush1.msra.mxu0 0.0
    %1945 = vmatprep.subr.mxu0 0.0
    %1946 = vmatpush1.msra.mxu0 0.0
    %1947 = vmatprep.subr.mxu0 0.0
    %1948 = vmatpush1.msra.mxu0 0.0
    %1949 = vmatprep.subr.mxu0 0.0
    %1950 = vmatpush1.msra.mxu0 0.0
    %1951 = vmatprep.subr.mxu0 0.0
    %1952 = vmatpush1.msra.mxu0 0.0
    %1953 = vmatprep.mubr.f32.mxu0 0.0
    %v1954 = vand.u32 %v1526, 4294901760
    %v1955 = vsub.f32 %v1526, %v1954
    %v1956 = vand.u32 %v1955, 4294901760
    %1957 = vmatmul.mubr.f32.gmra.mrb[0].mxu0 %v1956
    %v1958 = vpop.f32.mrb[0].mxu0
    %v1959 = vadd.f32 %v1870, %v1958
    %v1960 = vpop.f32.mrb[0].mxu0
    %1961 = vdwg.mxu0
    %1962 = vmatprep.subr.mxu0 0.0
    %v1963 = vand.u32 %v172, 4294901760
    %v1964 = vsub.f32 %v172, %v1963
    %v1965 = vand.u32 %v1964, 4294901760
    %1966 = vmatpush1.msra.mxu0 %v1965
    %1967 = vmatprep.subr.mxu0 0.0
    %v1968 = vand.u32 %v173, 4294901760
    %v1969 = vsub.f32 %v173, %v1968
    %v1970 = vand.u32 %v1969, 4294901760
    %1971 = vmatpush1.msra.mxu0 %v1970
    %1972 = vmatprep.subr.mxu0 0.0
    %v1973 = vand.u32 %v174, 4294901760
    %v1974 = vsub.f32 %v174, %v1973
    %v1975 = vand.u32 %v1974, 4294901760
    %1976 = vmatpush1.msra.mxu0 %v1975
    %1977 = vmatprep.subr.mxu0 0.0
    %v1978 = vand.u32 %v175, 4294901760
    %v1979 = vsub.f32 %v175, %v1978
    %v1980 = vand.u32 %v1979, 4294901760
    %1981 = vmatpush1.msra.mxu0 %v1980
    %1982 = vmatprep.subr.mxu0 0.0
    %v1983 = vand.u32 %v176, 4294901760
    %v1984 = vsub.f32 %v176, %v1983
    %v1985 = vand.u32 %v1984, 4294901760
    %1986 = vmatpush1.msra.mxu0 %v1985
    %1987 = vmatprep.subr.mxu0 0.0
    %v1988 = vand.u32 %v177, 4294901760
    %v1989 = vsub.f32 %v177, %v1988
    %v1990 = vand.u32 %v1989, 4294901760
    %1991 = vmatpush1.msra.mxu0 %v1990
    %1992 = vmatprep.subr.mxu0 0.0
    %v1993 = vand.u32 %v178, 4294901760
    %v1994 = vsub.f32 %v178, %v1993
    %v1995 = vand.u32 %v1994, 4294901760
    %1996 = vmatpush1.msra.mxu0 %v1995
    %1997 = vmatprep.subr.mxu0 0.0
    %v1998 = vand.u32 %v179, 4294901760
    %v1999 = vsub.f32 %v179, %v1998
    %v2000 = vand.u32 %v1999, 4294901760
    %2001 = vmatpush1.msra.mxu0 %v2000
    %2002 = vmatprep.subr.mxu0 0.0
    %v2003 = vand.u32 %v180, 4294901760
    %v2004 = vsub.f32 %v180, %v2003
    %v2005 = vand.u32 %v2004, 4294901760
    %2006 = vmatpush1.msra.mxu0 %v2005
    %2007 = vmatprep.subr.mxu0 0.0
    %v2008 = vand.u32 %v181, 4294901760
    %v2009 = vsub.f32 %v181, %v2008
    %v2010 = vand.u32 %v2009, 4294901760
    %2011 = vmatpush1.msra.mxu0 %v2010
    %2012 = vmatprep.subr.mxu0 0.0
    %v2013 = vand.u32 %v182, 4294901760
    %v2014 = vsub.f32 %v182, %v2013
    %v2015 = vand.u32 %v2014, 4294901760
    %2016 = vmatpush1.msra.mxu0 %v2015
    %2017 = vmatprep.subr.mxu0 0.0
    %v2018 = vand.u32 %v183, 4294901760
    %v2019 = vsub.f32 %v183, %v2018
    %v2020 = vand.u32 %v2019, 4294901760
    %2021 = vmatpush1.msra.mxu0 %v2020
    %2022 = vmatprep.subr.mxu0 0.0
    %v2023 = vand.u32 %v184, 4294901760
    %v2024 = vsub.f32 %v184, %v2023
    %v2025 = vand.u32 %v2024, 4294901760
    %2026 = vmatpush1.msra.mxu0 %v2025
    %2027 = vmatprep.subr.mxu0 0.0
    %v2028 = vand.u32 %v185, 4294901760
    %v2029 = vsub.f32 %v185, %v2028
    %v2030 = vand.u32 %v2029, 4294901760
    %2031 = vmatpush1.msra.mxu0 %v2030
    %2032 = vmatprep.subr.mxu0 0.0
    %v2033 = vand.u32 %v186, 4294901760
    %v2034 = vsub.f32 %v186, %v2033
    %v2035 = vand.u32 %v2034, 4294901760
    %2036 = vmatpush1.msra.mxu0 %v2035
    %2037 = vmatprep.subr.mxu0 0.0
    %v2038 = vand.u32 %v187, 4294901760
    %v2039 = vsub.f32 %v187, %v2038
    %v2040 = vand.u32 %v2039, 4294901760
    %2041 = vmatpush1.msra.mxu0 %v2040
    %2042 = vmatprep.subr.mxu0 0.0
    %2043 = vmatpush1.msra.mxu0 0.0
    %2044 = vmatprep.subr.mxu0 0.0
    %2045 = vmatpush1.msra.mxu0 0.0
    %2046 = vmatprep.subr.mxu0 0.0
    %2047 = vmatpush1.msra.mxu0 0.0
    %2048 = vmatprep.subr.mxu0 0.0
    %2049 = vmatpush1.msra.mxu0 0.0
    %2050 = vmatprep.subr.mxu0 0.0
    %2051 = vmatpush1.msra.mxu0 0.0
    %2052 = vmatprep.subr.mxu0 0.0
    %2053 = vmatpush1.msra.mxu0 0.0
    %2054 = vmatprep.subr.mxu0 0.0
    %2055 = vmatpush1.msra.mxu0 0.0
    %2056 = vmatprep.subr.mxu0 0.0
    %2057 = vmatpush1.msra.mxu0 0.0
    %2058 = vmatprep.subr.mxu0 0.0
    %2059 = vmatpush1.msra.mxu0 0.0
    %2060 = vmatprep.subr.mxu0 0.0
    %2061 = vmatpush1.msra.mxu0 0.0
    %2062 = vmatprep.subr.mxu0 0.0
    %2063 = vmatpush1.msra.mxu0 0.0
    %2064 = vmatprep.subr.mxu0 0.0
    %2065 = vmatpush1.msra.mxu0 0.0
    %2066 = vmatprep.subr.mxu0 0.0
    %2067 = vmatpush1.msra.mxu0 0.0
    %2068 = vmatprep.subr.mxu0 0.0
    %2069 = vmatpush1.msra.mxu0 0.0
    %2070 = vmatprep.subr.mxu0 0.0
    %2071 = vmatpush1.msra.mxu0 0.0
    %2072 = vmatprep.subr.mxu0 0.0
    %2073 = vmatpush1.msra.mxu0 0.0
    %2074 = vmatprep.mubr.f32.mxu0 0.0
    %v2075 = vand.u32 %v1526, 4294901760
    %2076 = vmatmul.mubr.f32.gmra.mrb[0].mxu0 %v2075
    %v2077 = vpop.f32.mrb[0].mxu0
    %v2078 = vadd.f32 %v1959, %v2077
    %v2079 = vpop.f32.mrb[0].mxu0
    %2080 = vdwg.mxu0
    %2081 = vmatprep.subr.mxu0 0.0
    %v2082 = vand.u32 %v172, 4294901760
    %2083 = vmatpush1.msra.mxu0 %v2082
    %2084 = vmatprep.subr.mxu0 0.0
    %v2085 = vand.u32 %v173, 4294901760
    %2086 = vmatpush1.msra.mxu0 %v2085
    %2087 = vmatprep.subr.mxu0 0.0
    %v2088 = vand.u32 %v174, 4294901760
    %2089 = vmatpush1.msra.mxu0 %v2088
    %2090 = vmatprep.subr.mxu0 0.0
    %v2091 = vand.u32 %v175, 4294901760
    %2092 = vmatpush1.msra.mxu0 %v2091
    %2093 = vmatprep.subr.mxu0 0.0
    %v2094 = vand.u32 %v176, 4294901760
    %2095 = vmatpush1.msra.mxu0 %v2094
    %2096 = vmatprep.subr.mxu0 0.0
    %v2097 = vand.u32 %v177, 4294901760
    %2098 = vmatpush1.msra.mxu0 %v2097
    %2099 = vmatprep.subr.mxu0 0.0
    %v2100 = vand.u32 %v178, 4294901760
    %2101 = vmatpush1.msra.mxu0 %v2100
    %2102 = vmatprep.subr.mxu0 0.0
    %v2103 = vand.u32 %v179, 4294901760
    %2104 = vmatpush1.msra.mxu0 %v2103
    %2105 = vmatprep.subr.mxu0 0.0
    %v2106 = vand.u32 %v180, 4294901760
    %2107 = vmatpush1.msra.mxu0 %v2106
    %2108 = vmatprep.subr.mxu0 0.0
    %v2109 = vand.u32 %v181, 4294901760
    %2110 = vmatpush1.msra.mxu0 %v2109
    %2111 = vmatprep.subr.mxu0 0.0
    %v2112 = vand.u32 %v182, 4294901760
    %2113 = vmatpush1.msra.mxu0 %v2112
    %2114 = vmatprep.subr.mxu0 0.0
    %v2115 = vand.u32 %v183, 4294901760
    %2116 = vmatpush1.msra.mxu0 %v2115
    %2117 = vmatprep.subr.mxu0 0.0
    %v2118 = vand.u32 %v184, 4294901760
    %2119 = vmatpush1.msra.mxu0 %v2118
    %2120 = vmatprep.subr.mxu0 0.0
    %v2121 = vand.u32 %v185, 4294901760
    %2122 = vmatpush1.msra.mxu0 %v2121
    %2123 = vmatprep.subr.mxu0 0.0
    %v2124 = vand.u32 %v186, 4294901760
    %2125 = vmatpush1.msra.mxu0 %v2124
    %2126 = vmatprep.subr.mxu0 0.0
    %v2127 = vand.u32 %v187, 4294901760
    %2128 = vmatpush1.msra.mxu0 %v2127
    %2129 = vmatprep.subr.mxu0 0.0
    %2130 = vmatpush1.msra.mxu0 0.0
    %2131 = vmatprep.subr.mxu0 0.0
    %2132 = vmatpush1.msra.mxu0 0.0
    %2133 = vmatprep.subr.mxu0 0.0
    %2134 = vmatpush1.msra.mxu0 0.0
    %2135 = vmatprep.subr.mxu0 0.0
    %2136 = vmatpush1.msra.mxu0 0.0
    %2137 = vmatprep.subr.mxu0 0.0
    %2138 = vmatpush1.msra.mxu0 0.0
    %2139 = vmatprep.subr.mxu0 0.0
    %2140 = vmatpush1.msra.mxu0 0.0
    %2141 = vmatprep.subr.mxu0 0.0
    %2142 = vmatpush1.msra.mxu0 0.0
    %2143 = vmatprep.subr.mxu0 0.0
    %2144 = vmatpush1.msra.mxu0 0.0
    %2145 = vmatprep.subr.mxu0 0.0
    %2146 = vmatpush1.msra.mxu0 0.0
    %2147 = vmatprep.subr.mxu0 0.0
    %2148 = vmatpush1.msra.mxu0 0.0
    %2149 = vmatprep.subr.mxu0 0.0
    %2150 = vmatpush1.msra.mxu0 0.0
    %2151 = vmatprep.subr.mxu0 0.0
    %2152 = vmatpush1.msra.mxu0 0.0
    %2153 = vmatprep.subr.mxu0 0.0
    %2154 = vmatpush1.msra.mxu0 0.0
    %2155 = vmatprep.subr.mxu0 0.0
    %2156 = vmatpush1.msra.mxu0 0.0
    %2157 = vmatprep.subr.mxu0 0.0
    %2158 = vmatpush1.msra.mxu0 0.0
    %2159 = vmatprep.subr.mxu0 0.0
    %2160 = vmatpush1.msra.mxu0 0.0
    %2161 = vmatprep.mubr.f32.mxu0 0.0
    %v2162 = vand.u32 %v1526, 4294901760
    %2163 = vmatmul.mubr.f32.gmra.mrb[0].mxu0 %v2162
    %v2164 = vpop.f32.mrb[0].mxu0
    %v2165 = vadd.f32 %v2078, %v2164
    %v2166 = vpop.f32.mrb[0].mxu0
    %2167 = vdwg.mxu0
    %v2168 = vlog2.pop %v2165
    %v2169 = vmul.f32 %v2168, 0.6931472
    %v2170 = vadd.f32 %v2169, %v1523
    %v2171 = vadd.f32 %v2170, %v845
    %v2172 = vadd.f32 %v2171, %v1519
    %vm2173 = vcmp.gt.f32.partialorder %v1521, 0.5
    %v2174 = vsel %vm2173, 1, 0
    %2175 = vset.pattern.permute.xlu0 0
    %2176 = vperm.xlu0 %2175, %v2174
    %v2177 = vpop.permute.xlu0 %2176
    %vm2178 = vcmp.eq.s32.totalorder %v2177, 1
    %v2179 = vsel %vm2178, %v2172, %v1517
    %s2180 = scalar_lea.vmem %s0, 24
    %v2181 = vld [vmem:[%s2180] sm:$0xff]
    %s2182 = scalar_lea.vmem %s1, 24
    %v2183 = vld [vmem:[%s2182] sm:$0xff]
    %2184 = vmax.xlane.f32.xlu0 %v2179
    %v2185 = vpop.xlane.xlu0 %2184
    %v2186 = vsub.f32 %v2179, %v2185
    %v2187 = vmul.f32 %v2186, 1.442695
    %v2188 = vpow.pop %v2187
    %2189 = vmatprep.subr.mxu0 0.0
    %v2190 = vand.u32 %v172, 4294901760
    %2191 = vmatpush1.msra.mxu0 %v2190
    %2192 = vmatprep.subr.mxu0 0.0
    %v2193 = vand.u32 %v173, 4294901760
    %2194 = vmatpush1.msra.mxu0 %v2193
    %2195 = vmatprep.subr.mxu0 0.0
    %v2196 = vand.u32 %v174, 4294901760
    %2197 = vmatpush1.msra.mxu0 %v2196
    %2198 = vmatprep.subr.mxu0 0.0
    %v2199 = vand.u32 %v175, 4294901760
    %2200 = vmatpush1.msra.mxu0 %v2199
    %2201 = vmatprep.subr.mxu0 0.0
    %v2202 = vand.u32 %v176, 4294901760
    %2203 = vmatpush1.msra.mxu0 %v2202
    %2204 = vmatprep.subr.mxu0 0.0
    %v2205 = vand.u32 %v177, 4294901760
    %2206 = vmatpush1.msra.mxu0 %v2205
    %2207 = vmatprep.subr.mxu0 0.0
    %v2208 = vand.u32 %v178, 4294901760
    %2209 = vmatpush1.msra.mxu0 %v2208
    %2210 = vmatprep.subr.mxu0 0.0
    %v2211 = vand.u32 %v179, 4294901760
    %2212 = vmatpush1.msra.mxu0 %v2211
    %2213 = vmatprep.subr.mxu0 0.0
    %v2214 = vand.u32 %v180, 4294901760
    %2215 = vmatpush1.msra.mxu0 %v2214
    %2216 = vmatprep.subr.mxu0 0.0
    %v2217 = vand.u32 %v181, 4294901760
    %2218 = vmatpush1.msra.mxu0 %v2217
    %2219 = vmatprep.subr.mxu0 0.0
    %v2220 = vand.u32 %v182, 4294901760
    %2221 = vmatpush1.msra.mxu0 %v2220
    %2222 = vmatprep.subr.mxu0 0.0
    %v2223 = vand.u32 %v183, 4294901760
    %2224 = vmatpush1.msra.mxu0 %v2223
    %2225 = vmatprep.subr.mxu0 0.0
    %v2226 = vand.u32 %v184, 4294901760
    %2227 = vmatpush1.msra.mxu0 %v2226
    %2228 = vmatprep.subr.mxu0 0.0
    %v2229 = vand.u32 %v185, 4294901760
    %2230 = vmatpush1.msra.mxu0 %v2229
    %2231 = vmatprep.subr.mxu0 0.0
    %v2232 = vand.u32 %v186, 4294901760
    %2233 = vmatpush1.msra.mxu0 %v2232
    %2234 = vmatprep.subr.mxu0 0.0
    %v2235 = vand.u32 %v187, 4294901760
    %2236 = vmatpush1.msra.mxu0 %v2235
    %2237 = vmatprep.subr.mxu0 0.0
    %2238 = vmatpush1.msra.mxu0 0.0
    %2239 = vmatprep.subr.mxu0 0.0
    %2240 = vmatpush1.msra.mxu0 0.0
    %2241 = vmatprep.subr.mxu0 0.0
    %2242 = vmatpush1.msra.mxu0 0.0
    %2243 = vmatprep.subr.mxu0 0.0
    %2244 = vmatpush1.msra.mxu0 0.0
    %2245 = vmatprep.subr.mxu0 0.0
    %2246 = vmatpush1.msra.mxu0 0.0
    %2247 = vmatprep.subr.mxu0 0.0
    %2248 = vmatpush1.msra.mxu0 0.0
    %2249 = vmatprep.subr.mxu0 0.0
    %2250 = vmatpush1.msra.mxu0 0.0
    %2251 = vmatprep.subr.mxu0 0.0
    %2252 = vmatpush1.msra.mxu0 0.0
    %2253 = vmatprep.subr.mxu0 0.0
    %2254 = vmatpush1.msra.mxu0 0.0
    %2255 = vmatprep.subr.mxu0 0.0
    %2256 = vmatpush1.msra.mxu0 0.0
    %2257 = vmatprep.subr.mxu0 0.0
    %2258 = vmatpush1.msra.mxu0 0.0
    %2259 = vmatprep.subr.mxu0 0.0
    %2260 = vmatpush1.msra.mxu0 0.0
    %2261 = vmatprep.subr.mxu0 0.0
    %2262 = vmatpush1.msra.mxu0 0.0
    %2263 = vmatprep.subr.mxu0 0.0
    %2264 = vmatpush1.msra.mxu0 0.0
    %2265 = vmatprep.subr.mxu0 0.0
    %2266 = vmatpush1.msra.mxu0 0.0
    %2267 = vmatprep.subr.mxu0 0.0
    %2268 = vmatpush1.msra.mxu0 0.0
    %2269 = vmatprep.mubr.f32.mxu0 0.0
    %v2270 = vand.u32 %v2188, 4294901760
    %v2271 = vsub.f32 %v2188, %v2270
    %v2272 = vand.u32 %v2271, 4294901760
    %v2273 = vsub.f32 %v2271, %v2272
    %v2274 = vand.u32 %v2273, 4294901760
    %2275 = vmatmul.mubr.f32.gmra.mrb[0].mxu0 %v2274
    %v2276 = vpop.f32.mrb[0].mxu0
    %v2277 = vadd.f32 0.0, %v2276
    %v2278 = vpop.f32.mrb[0].mxu0
    %2279 = vdwg.mxu0
    %2280 = vmatprep.subr.mxu0 0.0
    %v2281 = vand.u32 %v172, 4294901760
    %v2282 = vsub.f32 %v172, %v2281
    %v2283 = vand.u32 %v2282, 4294901760
    %v2284 = vsub.f32 %v2282, %v2283
    %v2285 = vand.u32 %v2284, 4294901760
    %2286 = vmatpush1.msra.mxu0 %v2285
    %2287 = vmatprep.subr.mxu0 0.0
    %v2288 = vand.u32 %v173, 4294901760
    %v2289 = vsub.f32 %v173, %v2288
    %v2290 = vand.u32 %v2289, 4294901760
    %v2291 = vsub.f32 %v2289, %v2290
    %v2292 = vand.u32 %v2291, 4294901760
    %2293 = vmatpush1.msra.mxu0 %v2292
    %2294 = vmatprep.subr.mxu0 0.0
    %v2295 = vand.u32 %v174, 4294901760
    %v2296 = vsub.f32 %v174, %v2295
    %v2297 = vand.u32 %v2296, 4294901760
    %v2298 = vsub.f32 %v2296, %v2297
    %v2299 = vand.u32 %v2298, 4294901760
    %2300 = vmatpush1.msra.mxu0 %v2299
    %2301 = vmatprep.subr.mxu0 0.0
    %v2302 = vand.u32 %v175, 4294901760
    %v2303 = vsub.f32 %v175, %v2302
    %v2304 = vand.u32 %v2303, 4294901760
    %v2305 = vsub.f32 %v2303, %v2304
    %v2306 = vand.u32 %v2305, 4294901760
    %2307 = vmatpush1.msra.mxu0 %v2306
    %2308 = vmatprep.subr.mxu0 0.0
    %v2309 = vand.u32 %v176, 4294901760
    %v2310 = vsub.f32 %v176, %v2309
    %v2311 = vand.u32 %v2310, 4294901760
    %v2312 = vsub.f32 %v2310, %v2311
    %v2313 = vand.u32 %v2312, 4294901760
    %2314 = vmatpush1.msra.mxu0 %v2313
    %2315 = vmatprep.subr.mxu0 0.0
    %v2316 = vand.u32 %v177, 4294901760
    %v2317 = vsub.f32 %v177, %v2316
    %v2318 = vand.u32 %v2317, 4294901760
    %v2319 = vsub.f32 %v2317, %v2318
    %v2320 = vand.u32 %v2319, 4294901760
    %2321 = vmatpush1.msra.mxu0 %v2320
    %2322 = vmatprep.subr.mxu0 0.0
    %v2323 = vand.u32 %v178, 4294901760
    %v2324 = vsub.f32 %v178, %v2323
    %v2325 = vand.u32 %v2324, 4294901760
    %v2326 = vsub.f32 %v2324, %v2325
    %v2327 = vand.u32 %v2326, 4294901760
    %2328 = vmatpush1.msra.mxu0 %v2327
    %2329 = vmatprep.subr.mxu0 0.0
    %v2330 = vand.u32 %v179, 4294901760
    %v2331 = vsub.f32 %v179, %v2330
    %v2332 = vand.u32 %v2331, 4294901760
    %v2333 = vsub.f32 %v2331, %v2332
    %v2334 = vand.u32 %v2333, 4294901760
    %2335 = vmatpush1.msra.mxu0 %v2334
    %2336 = vmatprep.subr.mxu0 0.0
    %v2337 = vand.u32 %v180, 4294901760
    %v2338 = vsub.f32 %v180, %v2337
    %v2339 = vand.u32 %v2338, 4294901760
    %v2340 = vsub.f32 %v2338, %v2339
    %v2341 = vand.u32 %v2340, 4294901760
    %2342 = vmatpush1.msra.mxu0 %v2341
    %2343 = vmatprep.subr.mxu0 0.0
    %v2344 = vand.u32 %v181, 4294901760
    %v2345 = vsub.f32 %v181, %v2344
    %v2346 = vand.u32 %v2345, 4294901760
    %v2347 = vsub.f32 %v2345, %v2346
    %v2348 = vand.u32 %v2347, 4294901760
    %2349 = vmatpush1.msra.mxu0 %v2348
    %2350 = vmatprep.subr.mxu0 0.0
    %v2351 = vand.u32 %v182, 4294901760
    %v2352 = vsub.f32 %v182, %v2351
    %v2353 = vand.u32 %v2352, 4294901760
    %v2354 = vsub.f32 %v2352, %v2353
    %v2355 = vand.u32 %v2354, 4294901760
    %2356 = vmatpush1.msra.mxu0 %v2355
    %2357 = vmatprep.subr.mxu0 0.0
    %v2358 = vand.u32 %v183, 4294901760
    %v2359 = vsub.f32 %v183, %v2358
    %v2360 = vand.u32 %v2359, 4294901760
    %v2361 = vsub.f32 %v2359, %v2360
    %v2362 = vand.u32 %v2361, 4294901760
    %2363 = vmatpush1.msra.mxu0 %v2362
    %2364 = vmatprep.subr.mxu0 0.0
    %v2365 = vand.u32 %v184, 4294901760
    %v2366 = vsub.f32 %v184, %v2365
    %v2367 = vand.u32 %v2366, 4294901760
    %v2368 = vsub.f32 %v2366, %v2367
    %v2369 = vand.u32 %v2368, 4294901760
    %2370 = vmatpush1.msra.mxu0 %v2369
    %2371 = vmatprep.subr.mxu0 0.0
    %v2372 = vand.u32 %v185, 4294901760
    %v2373 = vsub.f32 %v185, %v2372
    %v2374 = vand.u32 %v2373, 4294901760
    %v2375 = vsub.f32 %v2373, %v2374
    %v2376 = vand.u32 %v2375, 4294901760
    %2377 = vmatpush1.msra.mxu0 %v2376
    %2378 = vmatprep.subr.mxu0 0.0
    %v2379 = vand.u32 %v186, 4294901760
    %v2380 = vsub.f32 %v186, %v2379
    %v2381 = vand.u32 %v2380, 4294901760
    %v2382 = vsub.f32 %v2380, %v2381
    %v2383 = vand.u32 %v2382, 4294901760
    %2384 = vmatpush1.msra.mxu0 %v2383
    %2385 = vmatprep.subr.mxu0 0.0
    %v2386 = vand.u32 %v187, 4294901760
    %v2387 = vsub.f32 %v187, %v2386
    %v2388 = vand.u32 %v2387, 4294901760
    %v2389 = vsub.f32 %v2387, %v2388
    %v2390 = vand.u32 %v2389, 4294901760
    %2391 = vmatpush1.msra.mxu0 %v2390
    %2392 = vmatprep.subr.mxu0 0.0
    %2393 = vmatpush1.msra.mxu0 0.0
    %2394 = vmatprep.subr.mxu0 0.0
    %2395 = vmatpush1.msra.mxu0 0.0
    %2396 = vmatprep.subr.mxu0 0.0
    %2397 = vmatpush1.msra.mxu0 0.0
    %2398 = vmatprep.subr.mxu0 0.0
    %2399 = vmatpush1.msra.mxu0 0.0
    %2400 = vmatprep.subr.mxu0 0.0
    %2401 = vmatpush1.msra.mxu0 0.0
    %2402 = vmatprep.subr.mxu0 0.0
    %2403 = vmatpush1.msra.mxu0 0.0
    %2404 = vmatprep.subr.mxu0 0.0
    %2405 = vmatpush1.msra.mxu0 0.0
    %2406 = vmatprep.subr.mxu0 0.0
    %2407 = vmatpush1.msra.mxu0 0.0
    %2408 = vmatprep.subr.mxu0 0.0
    %2409 = vmatpush1.msra.mxu0 0.0
    %2410 = vmatprep.subr.mxu0 0.0
    %2411 = vmatpush1.msra.mxu0 0.0
    %2412 = vmatprep.subr.mxu0 0.0
    %2413 = vmatpush1.msra.mxu0 0.0
    %2414 = vmatprep.subr.mxu0 0.0
    %2415 = vmatpush1.msra.mxu0 0.0
    %2416 = vmatprep.subr.mxu0 0.0
    %2417 = vmatpush1.msra.mxu0 0.0
    %2418 = vmatprep.subr.mxu0 0.0
    %2419 = vmatpush1.msra.mxu0 0.0
    %2420 = vmatprep.subr.mxu0 0.0
    %2421 = vmatpush1.msra.mxu0 0.0
    %2422 = vmatprep.subr.mxu0 0.0
    %2423 = vmatpush1.msra.mxu0 0.0
    %2424 = vmatprep.mubr.f32.mxu0 0.0
    %v2425 = vand.u32 %v2188, 4294901760
    %2426 = vmatmul.mubr.f32.gmra.mrb[0].mxu0 %v2425
    %v2427 = vpop.f32.mrb[0].mxu0
    %v2428 = vadd.f32 %v2277, %v2427
    %v2429 = vpop.f32.mrb[0].mxu0
    %2430 = vdwg.mxu0
    %2431 = vmatprep.subr.mxu0 0.0
    %v2432 = vand.u32 %v172, 4294901760
    %v2433 = vsub.f32 %v172, %v2432
    %2434 = vmatpush1.msra.mxu0 %v2433
    %2435 = vmatprep.subr.mxu0 0.0
    %v2436 = vand.u32 %v173, 4294901760
    %v2437 = vsub.f32 %v173, %v2436
    %2438 = vmatpush1.msra.mxu0 %v2437
    %2439 = vmatprep.subr.mxu0 0.0
    %v2440 = vand.u32 %v174, 4294901760
    %v2441 = vsub.f32 %v174, %v2440
    %2442 = vmatpush1.msra.mxu0 %v2441
    %2443 = vmatprep.subr.mxu0 0.0
    %v2444 = vand.u32 %v175, 4294901760
    %v2445 = vsub.f32 %v175, %v2444
    %2446 = vmatpush1.msra.mxu0 %v2445
    %2447 = vmatprep.subr.mxu0 0.0
    %v2448 = vand.u32 %v176, 4294901760
    %v2449 = vsub.f32 %v176, %v2448
    %2450 = vmatpush1.msra.mxu0 %v2449
    %2451 = vmatprep.subr.mxu0 0.0
    %v2452 = vand.u32 %v177, 4294901760
    %v2453 = vsub.f32 %v177, %v2452
    %2454 = vmatpush1.msra.mxu0 %v2453
    %2455 = vmatprep.subr.mxu0 0.0
    %v2456 = vand.u32 %v178, 4294901760
    %v2457 = vsub.f32 %v178, %v2456
    %2458 = vmatpush1.msra.mxu0 %v2457
    %2459 = vmatprep.subr.mxu0 0.0
    %v2460 = vand.u32 %v179, 4294901760
    %v2461 = vsub.f32 %v179, %v2460
    %2462 = vmatpush1.msra.mxu0 %v2461
    %2463 = vmatprep.subr.mxu0 0.0
    %v2464 = vand.u32 %v180, 4294901760
    %v2465 = vsub.f32 %v180, %v2464
    %2466 = vmatpush1.msra.mxu0 %v2465
    %2467 = vmatprep.subr.mxu0 0.0
    %v2468 = vand.u32 %v181, 4294901760
    %v2469 = vsub.f32 %v181, %v2468
    %2470 = vmatpush1.msra.mxu0 %v2469
    %2471 = vmatprep.subr.mxu0 0.0
    %v2472 = vand.u32 %v182, 4294901760
    %v2473 = vsub.f32 %v182, %v2472
    %2474 = vmatpush1.msra.mxu0 %v2473
    %2475 = vmatprep.subr.mxu0 0.0
    %v2476 = vand.u32 %v183, 4294901760
    %v2477 = vsub.f32 %v183, %v2476
    %2478 = vmatpush1.msra.mxu0 %v2477
    %2479 = vmatprep.subr.mxu0 0.0
    %v2480 = vand.u32 %v184, 4294901760
    %v2481 = vsub.f32 %v184, %v2480
    %2482 = vmatpush1.msra.mxu0 %v2481
    %2483 = vmatprep.subr.mxu0 0.0
    %v2484 = vand.u32 %v185, 4294901760
    %v2485 = vsub.f32 %v185, %v2484
    %2486 = vmatpush1.msra.mxu0 %v2485
    %2487 = vmatprep.subr.mxu0 0.0
    %v2488 = vand.u32 %v186, 4294901760
    %v2489 = vsub.f32 %v186, %v2488
    %2490 = vmatpush1.msra.mxu0 %v2489
    %2491 = vmatprep.subr.mxu0 0.0
    %v2492 = vand.u32 %v187, 4294901760
    %v2493 = vsub.f32 %v187, %v2492
    %2494 = vmatpush1.msra.mxu0 %v2493
    %2495 = vmatprep.subr.mxu0 0.0
    %2496 = vmatpush1.msra.mxu0 0.0
    %2497 = vmatprep.subr.mxu0 0.0
    %2498 = vmatpush1.msra.mxu0 0.0
    %2499 = vmatprep.subr.mxu0 0.0
    %2500 = vmatpush1.msra.mxu0 0.0
    %2501 = vmatprep.subr.mxu0 0.0
    %2502 = vmatpush1.msra.mxu0 0.0
    %2503 = vmatprep.subr.mxu0 0.0
    %2504 = vmatpush1.msra.mxu0 0.0
    %2505 = vmatprep.subr.mxu0 0.0
    %2506 = vmatpush1.msra.mxu0 0.0
    %2507 = vmatprep.subr.mxu0 0.0
    %2508 = vmatpush1.msra.mxu0 0.0
    %2509 = vmatprep.subr.mxu0 0.0
    %2510 = vmatpush1.msra.mxu0 0.0
    %2511 = vmatprep.subr.mxu0 0.0
    %2512 = vmatpush1.msra.mxu0 0.0
    %2513 = vmatprep.subr.mxu0 0.0
    %2514 = vmatpush1.msra.mxu0 0.0
    %2515 = vmatprep.subr.mxu0 0.0
    %2516 = vmatpush1.msra.mxu0 0.0
    %2517 = vmatprep.subr.mxu0 0.0
    %2518 = vmatpush1.msra.mxu0 0.0
    %2519 = vmatprep.subr.mxu0 0.0
    %2520 = vmatpush1.msra.mxu0 0.0
    %2521 = vmatprep.subr.mxu0 0.0
    %2522 = vmatpush1.msra.mxu0 0.0
    %2523 = vmatprep.subr.mxu0 0.0
    %2524 = vmatpush1.msra.mxu0 0.0
    %2525 = vmatprep.subr.mxu0 0.0
    %2526 = vmatpush1.msra.mxu0 0.0
    %2527 = vmatprep.mubr.f32.mxu0 0.0
    %v2528 = vand.u32 %v2188, 4294901760
    %v2529 = vsub.f32 %v2188, %v2528
    %2530 = vmatmul.mubr.f32.gmra.mrb[0].mxu0 %v2529
    %v2531 = vpop.f32.mrb[0].mxu0
    %v2532 = vadd.f32 %v2428, %v2531
    %v2533 = vpop.f32.mrb[0].mxu0
    %2534 = vdwg.mxu0
    %2535 = vmatprep.subr.mxu0 0.0
    %v2536 = vand.u32 %v172, 4294901760
    %2537 = vmatpush1.msra.mxu0 %v2536
    %2538 = vmatprep.subr.mxu0 0.0
    %v2539 = vand.u32 %v173, 4294901760
    %2540 = vmatpush1.msra.mxu0 %v2539
    %2541 = vmatprep.subr.mxu0 0.0
    %v2542 = vand.u32 %v174, 4294901760
    %2543 = vmatpush1.msra.mxu0 %v2542
    %2544 = vmatprep.subr.mxu0 0.0
    %v2545 = vand.u32 %v175, 4294901760
    %2546 = vmatpush1.msra.mxu0 %v2545
    %2547 = vmatprep.subr.mxu0 0.0
    %v2548 = vand.u32 %v176, 4294901760
    %2549 = vmatpush1.msra.mxu0 %v2548
    %2550 = vmatprep.subr.mxu0 0.0
    %v2551 = vand.u32 %v177, 4294901760
    %2552 = vmatpush1.msra.mxu0 %v2551
    %2553 = vmatprep.subr.mxu0 0.0
    %v2554 = vand.u32 %v178, 4294901760
    %2555 = vmatpush1.msra.mxu0 %v2554
    %2556 = vmatprep.subr.mxu0 0.0
    %v2557 = vand.u32 %v179, 4294901760
    %2558 = vmatpush1.msra.mxu0 %v2557
    %2559 = vmatprep.subr.mxu0 0.0
    %v2560 = vand.u32 %v180, 4294901760
    %2561 = vmatpush1.msra.mxu0 %v2560
    %2562 = vmatprep.subr.mxu0 0.0
    %v2563 = vand.u32 %v181, 4294901760
    %2564 = vmatpush1.msra.mxu0 %v2563
    %2565 = vmatprep.subr.mxu0 0.0
    %v2566 = vand.u32 %v182, 4294901760
    %2567 = vmatpush1.msra.mxu0 %v2566
    %2568 = vmatprep.subr.mxu0 0.0
    %v2569 = vand.u32 %v183, 4294901760
    %2570 = vmatpush1.msra.mxu0 %v2569
    %2571 = vmatprep.subr.mxu0 0.0
    %v2572 = vand.u32 %v184, 4294901760
    %2573 = vmatpush1.msra.mxu0 %v2572
    %2574 = vmatprep.subr.mxu0 0.0
    %v2575 = vand.u32 %v185, 4294901760
    %2576 = vmatpush1.msra.mxu0 %v2575
    %2577 = vmatprep.subr.mxu0 0.0
    %v2578 = vand.u32 %v186, 4294901760
    %2579 = vmatpush1.msra.mxu0 %v2578
    %2580 = vmatprep.subr.mxu0 0.0
    %v2581 = vand.u32 %v187, 4294901760
    %2582 = vmatpush1.msra.mxu0 %v2581
    %2583 = vmatprep.subr.mxu0 0.0
    %2584 = vmatpush1.msra.mxu0 0.0
    %2585 = vmatprep.subr.mxu0 0.0
    %2586 = vmatpush1.msra.mxu0 0.0
    %2587 = vmatprep.subr.mxu0 0.0
    %2588 = vmatpush1.msra.mxu0 0.0
    %2589 = vmatprep.subr.mxu0 0.0
    %2590 = vmatpush1.msra.mxu0 0.0
    %2591 = vmatprep.subr.mxu0 0.0
    %2592 = vmatpush1.msra.mxu0 0.0
    %2593 = vmatprep.subr.mxu0 0.0
    %2594 = vmatpush1.msra.mxu0 0.0
    %2595 = vmatprep.subr.mxu0 0.0
    %2596 = vmatpush1.msra.mxu0 0.0
    %2597 = vmatprep.subr.mxu0 0.0
    %2598 = vmatpush1.msra.mxu0 0.0
    %2599 = vmatprep.subr.mxu0 0.0
    %2600 = vmatpush1.msra.mxu0 0.0
    %2601 = vmatprep.subr.mxu0 0.0
    %2602 = vmatpush1.msra.mxu0 0.0
    %2603 = vmatprep.subr.mxu0 0.0
    %2604 = vmatpush1.msra.mxu0 0.0
    %2605 = vmatprep.subr.mxu0 0.0
    %2606 = vmatpush1.msra.mxu0 0.0
    %2607 = vmatprep.subr.mxu0 0.0
    %2608 = vmatpush1.msra.mxu0 0.0
    %2609 = vmatprep.subr.mxu0 0.0
    %2610 = vmatpush1.msra.mxu0 0.0
    %2611 = vmatprep.subr.mxu0 0.0
    %2612 = vmatpush1.msra.mxu0 0.0
    %2613 = vmatprep.subr.mxu0 0.0
    %2614 = vmatpush1.msra.mxu0 0.0
    %2615 = vmatprep.mubr.f32.mxu0 0.0
    %v2616 = vand.u32 %v2188, 4294901760
    %v2617 = vsub.f32 %v2188, %v2616
    %v2618 = vand.u32 %v2617, 4294901760
    %2619 = vmatmul.mubr.f32.gmra.mrb[0].mxu0 %v2618
    %v2620 = vpop.f32.mrb[0].mxu0
    %v2621 = vadd.f32 %v2532, %v2620
    %v2622 = vpop.f32.mrb[0].mxu0
    %2623 = vdwg.mxu0
    %2624 = vmatprep.subr.mxu0 0.0
    %v2625 = vand.u32 %v172, 4294901760
    %v2626 = vsub.f32 %v172, %v2625
    %v2627 = vand.u32 %v2626, 4294901760
    %2628 = vmatpush1.msra.mxu0 %v2627
    %2629 = vmatprep.subr.mxu0 0.0
    %v2630 = vand.u32 %v173, 4294901760
    %v2631 = vsub.f32 %v173, %v2630
    %v2632 = vand.u32 %v2631, 4294901760
    %2633 = vmatpush1.msra.mxu0 %v2632
    %2634 = vmatprep.subr.mxu0 0.0
    %v2635 = vand.u32 %v174, 4294901760
    %v2636 = vsub.f32 %v174, %v2635
    %v2637 = vand.u32 %v2636, 4294901760
    %2638 = vmatpush1.msra.mxu0 %v2637
    %2639 = vmatprep.subr.mxu0 0.0
    %v2640 = vand.u32 %v175, 4294901760
    %v2641 = vsub.f32 %v175, %v2640
    %v2642 = vand.u32 %v2641, 4294901760
    %2643 = vmatpush1.msra.mxu0 %v2642
    %2644 = vmatprep.subr.mxu0 0.0
    %v2645 = vand.u32 %v176, 4294901760
    %v2646 = vsub.f32 %v176, %v2645
    %v2647 = vand.u32 %v2646, 4294901760
    %2648 = vmatpush1.msra.mxu0 %v2647
    %2649 = vmatprep.subr.mxu0 0.0
    %v2650 = vand.u32 %v177, 4294901760
    %v2651 = vsub.f32 %v177, %v2650
    %v2652 = vand.u32 %v2651, 4294901760
    %2653 = vmatpush1.msra.mxu0 %v2652
    %2654 = vmatprep.subr.mxu0 0.0
    %v2655 = vand.u32 %v178, 4294901760
    %v2656 = vsub.f32 %v178, %v2655
    %v2657 = vand.u32 %v2656, 4294901760
    %2658 = vmatpush1.msra.mxu0 %v2657
    %2659 = vmatprep.subr.mxu0 0.0
    %v2660 = vand.u32 %v179, 4294901760
    %v2661 = vsub.f32 %v179, %v2660
    %v2662 = vand.u32 %v2661, 4294901760
    %2663 = vmatpush1.msra.mxu0 %v2662
    %2664 = vmatprep.subr.mxu0 0.0
    %v2665 = vand.u32 %v180, 4294901760
    %v2666 = vsub.f32 %v180, %v2665
    %v2667 = vand.u32 %v2666, 4294901760
    %2668 = vmatpush1.msra.mxu0 %v2667
    %2669 = vmatprep.subr.mxu0 0.0
    %v2670 = vand.u32 %v181, 4294901760
    %v2671 = vsub.f32 %v181, %v2670
    %v2672 = vand.u32 %v2671, 4294901760
    %2673 = vmatpush1.msra.mxu0 %v2672
    %2674 = vmatprep.subr.mxu0 0.0
    %v2675 = vand.u32 %v182, 4294901760
    %v2676 = vsub.f32 %v182, %v2675
    %v2677 = vand.u32 %v2676, 4294901760
    %2678 = vmatpush1.msra.mxu0 %v2677
    %2679 = vmatprep.subr.mxu0 0.0
    %v2680 = vand.u32 %v183, 4294901760
    %v2681 = vsub.f32 %v183, %v2680
    %v2682 = vand.u32 %v2681, 4294901760
    %2683 = vmatpush1.msra.mxu0 %v2682
    %2684 = vmatprep.subr.mxu0 0.0
    %v2685 = vand.u32 %v184, 4294901760
    %v2686 = vsub.f32 %v184, %v2685
    %v2687 = vand.u32 %v2686, 4294901760
    %2688 = vmatpush1.msra.mxu0 %v2687
    %2689 = vmatprep.subr.mxu0 0.0
    %v2690 = vand.u32 %v185, 4294901760
    %v2691 = vsub.f32 %v185, %v2690
    %v2692 = vand.u32 %v2691, 4294901760
    %2693 = vmatpush1.msra.mxu0 %v2692
    %2694 = vmatprep.subr.mxu0 0.0
    %v2695 = vand.u32 %v186, 4294901760
    %v2696 = vsub.f32 %v186, %v2695
    %v2697 = vand.u32 %v2696, 4294901760
    %2698 = vmatpush1.msra.mxu0 %v2697
    %2699 = vmatprep.subr.mxu0 0.0
    %v2700 = vand.u32 %v187, 4294901760
    %v2701 = vsub.f32 %v187, %v2700
    %v2702 = vand.u32 %v2701, 4294901760
    %2703 = vmatpush1.msra.mxu0 %v2702
    %2704 = vmatprep.subr.mxu0 0.0
    %2705 = vmatpush1.msra.mxu0 0.0
    %2706 = vmatprep.subr.mxu0 0.0
    %2707 = vmatpush1.msra.mxu0 0.0
    %2708 = vmatprep.subr.mxu0 0.0
    %2709 = vmatpush1.msra.mxu0 0.0
    %2710 = vmatprep.subr.mxu0 0.0
    %2711 = vmatpush1.msra.mxu0 0.0
    %2712 = vmatprep.subr.mxu0 0.0
    %2713 = vmatpush1.msra.mxu0 0.0
    %2714 = vmatprep.subr.mxu0 0.0
    %2715 = vmatpush1.msra.mxu0 0.0
    %2716 = vmatprep.subr.mxu0 0.0
    %2717 = vmatpush1.msra.mxu0 0.0
    %2718 = vmatprep.subr.mxu0 0.0
    %2719 = vmatpush1.msra.mxu0 0.0
    %2720 = vmatprep.subr.mxu0 0.0
    %2721 = vmatpush1.msra.mxu0 0.0
    %2722 = vmatprep.subr.mxu0 0.0
    %2723 = vmatpush1.msra.mxu0 0.0
    %2724 = vmatprep.subr.mxu0 0.0
    %2725 = vmatpush1.msra.mxu0 0.0
    %2726 = vmatprep.subr.mxu0 0.0
    %2727 = vmatpush1.msra.mxu0 0.0
    %2728 = vmatprep.subr.mxu0 0.0
    %2729 = vmatpush1.msra.mxu0 0.0
    %2730 = vmatprep.subr.mxu0 0.0
    %2731 = vmatpush1.msra.mxu0 0.0
    %2732 = vmatprep.subr.mxu0 0.0
    %2733 = vmatpush1.msra.mxu0 0.0
    %2734 = vmatprep.subr.mxu0 0.0
    %2735 = vmatpush1.msra.mxu0 0.0
    %2736 = vmatprep.mubr.f32.mxu0 0.0
    %v2737 = vand.u32 %v2188, 4294901760
    %2738 = vmatmul.mubr.f32.gmra.mrb[0].mxu0 %v2737
    %v2739 = vpop.f32.mrb[0].mxu0
    %v2740 = vadd.f32 %v2621, %v2739
    %v2741 = vpop.f32.mrb[0].mxu0
    %2742 = vdwg.mxu0
    %2743 = vmatprep.subr.mxu0 0.0
    %v2744 = vand.u32 %v172, 4294901760
    %2745 = vmatpush1.msra.mxu0 %v2744
    %2746 = vmatprep.subr.mxu0 0.0
    %v2747 = vand.u32 %v173, 4294901760
    %2748 = vmatpush1.msra.mxu0 %v2747
    %2749 = vmatprep.subr.mxu0 0.0
    %v2750 = vand.u32 %v174, 4294901760
    %2751 = vmatpush1.msra.mxu0 %v2750
    %2752 = vmatprep.subr.mxu0 0.0
    %v2753 = vand.u32 %v175, 4294901760
    %2754 = vmatpush1.msra.mxu0 %v2753
    %2755 = vmatprep.subr.mxu0 0.0
    %v2756 = vand.u32 %v176, 4294901760
    %2757 = vmatpush1.msra.mxu0 %v2756
    %2758 = vmatprep.subr.mxu0 0.0
    %v2759 = vand.u32 %v177, 4294901760
    %2760 = vmatpush1.msra.mxu0 %v2759
    %2761 = vmatprep.subr.mxu0 0.0
    %v2762 = vand.u32 %v178, 4294901760
    %2763 = vmatpush1.msra.mxu0 %v2762
    %2764 = vmatprep.subr.mxu0 0.0
    %v2765 = vand.u32 %v179, 4294901760
    %2766 = vmatpush1.msra.mxu0 %v2765
    %2767 = vmatprep.subr.mxu0 0.0
    %v2768 = vand.u32 %v180, 4294901760
    %2769 = vmatpush1.msra.mxu0 %v2768
    %2770 = vmatprep.subr.mxu0 0.0
    %v2771 = vand.u32 %v181, 4294901760
    %2772 = vmatpush1.msra.mxu0 %v2771
    %2773 = vmatprep.subr.mxu0 0.0
    %v2774 = vand.u32 %v182, 4294901760
    %2775 = vmatpush1.msra.mxu0 %v2774
    %2776 = vmatprep.subr.mxu0 0.0
    %v2777 = vand.u32 %v183, 4294901760
    %2778 = vmatpush1.msra.mxu0 %v2777
    %2779 = vmatprep.subr.mxu0 0.0
    %v2780 = vand.u32 %v184, 4294901760
    %2781 = vmatpush1.msra.mxu0 %v2780
    %2782 = vmatprep.subr.mxu0 0.0
    %v2783 = vand.u32 %v185, 4294901760
    %2784 = vmatpush1.msra.mxu0 %v2783
    %2785 = vmatprep.subr.mxu0 0.0
    %v2786 = vand.u32 %v186, 4294901760
    %2787 = vmatpush1.msra.mxu0 %v2786
    %2788 = vmatprep.subr.mxu0 0.0
    %v2789 = vand.u32 %v187, 4294901760
    %2790 = vmatpush1.msra.mxu0 %v2789
    %2791 = vmatprep.subr.mxu0 0.0
    %2792 = vmatpush1.msra.mxu0 0.0
    %2793 = vmatprep.subr.mxu0 0.0
    %2794 = vmatpush1.msra.mxu0 0.0
    %2795 = vmatprep.subr.mxu0 0.0
    %2796 = vmatpush1.msra.mxu0 0.0
    %2797 = vmatprep.subr.mxu0 0.0
    %2798 = vmatpush1.msra.mxu0 0.0
    %2799 = vmatprep.subr.mxu0 0.0
    %2800 = vmatpush1.msra.mxu0 0.0
    %2801 = vmatprep.subr.mxu0 0.0
    %2802 = vmatpush1.msra.mxu0 0.0
    %2803 = vmatprep.subr.mxu0 0.0
    %2804 = vmatpush1.msra.mxu0 0.0
    %2805 = vmatprep.subr.mxu0 0.0
    %2806 = vmatpush1.msra.mxu0 0.0
    %2807 = vmatprep.subr.mxu0 0.0
    %2808 = vmatpush1.msra.mxu0 0.0
    %2809 = vmatprep.subr.mxu0 0.0
    %2810 = vmatpush1.msra.mxu0 0.0
    %2811 = vmatprep.subr.mxu0 0.0
    %2812 = vmatpush1.msra.mxu0 0.0
    %2813 = vmatprep.subr.mxu0 0.0
    %2814 = vmatpush1.msra.mxu0 0.0
    %2815 = vmatprep.subr.mxu0 0.0
    %2816 = vmatpush1.msra.mxu0 0.0
    %2817 = vmatprep.subr.mxu0 0.0
    %2818 = vmatpush1.msra.mxu0 0.0
    %2819 = vmatprep.subr.mxu0 0.0
    %2820 = vmatpush1.msra.mxu0 0.0
    %2821 = vmatprep.subr.mxu0 0.0
    %2822 = vmatpush1.msra.mxu0 0.0
    %2823 = vmatprep.mubr.f32.mxu0 0.0
    %v2824 = vand.u32 %v2188, 4294901760
    %2825 = vmatmul.mubr.f32.gmra.mrb[0].mxu0 %v2824
    %v2826 = vpop.f32.mrb[0].mxu0
    %v2827 = vadd.f32 %v2740, %v2826
    %v2828 = vpop.f32.mrb[0].mxu0
    %2829 = vdwg.mxu0
    %v2830 = vlog2.pop %v2827
    %v2831 = vmul.f32 %v2830, 0.6931472
    %v2832 = vadd.f32 %v2831, %v2185
    %v2833 = vadd.f32 %v2832, %v845
    %v2834 = vadd.f32 %v2833, %v2181
    %vm2835 = vcmp.gt.f32.partialorder %v2183, 0.5
    %v2836 = vsel %vm2835, 1, 0
    %2837 = vset.pattern.permute.xlu0 0
    %2838 = vperm.xlu0 %2837, %v2836
    %v2839 = vpop.permute.xlu0 %2838
    %vm2840 = vcmp.eq.s32.totalorder %v2839, 1
    %v2841 = vsel %vm2840, %v2834, %v2179
    %s2842 = scalar_lea.vmem %s0, 32
    %v2843 = vld [vmem:[%s2842] sm:$0xff]
    %s2844 = scalar_lea.vmem %s1, 32
    %v2845 = vld [vmem:[%s2844] sm:$0xff]
    %2846 = vmax.xlane.f32.xlu0 %v2841
    %v2847 = vpop.xlane.xlu0 %2846
    %v2848 = vsub.f32 %v2841, %v2847
    %v2849 = vmul.f32 %v2848, 1.442695
    %v2850 = vpow.pop %v2849
    %2851 = vmatprep.subr.mxu0 0.0
    %v2852 = vand.u32 %v172, 4294901760
    %2853 = vmatpush1.msra.mxu0 %v2852
    %2854 = vmatprep.subr.mxu0 0.0
    %v2855 = vand.u32 %v173, 4294901760
    %2856 = vmatpush1.msra.mxu0 %v2855
    %2857 = vmatprep.subr.mxu0 0.0
    %v2858 = vand.u32 %v174, 4294901760
    %2859 = vmatpush1.msra.mxu0 %v2858
    %2860 = vmatprep.subr.mxu0 0.0
    %v2861 = vand.u32 %v175, 4294901760
    %2862 = vmatpush1.msra.mxu0 %v2861
    %2863 = vmatprep.subr.mxu0 0.0
    %v2864 = vand.u32 %v176, 4294901760
    %2865 = vmatpush1.msra.mxu0 %v2864
    %2866 = vmatprep.subr.mxu0 0.0
    %v2867 = vand.u32 %v177, 4294901760
    %2868 = vmatpush1.msra.mxu0 %v2867
    %2869 = vmatprep.subr.mxu0 0.0
    %v2870 = vand.u32 %v178, 4294901760
    %2871 = vmatpush1.msra.mxu0 %v2870
    %2872 = vmatprep.subr.mxu0 0.0
    %v2873 = vand.u32 %v179, 4294901760
    %2874 = vmatpush1.msra.mxu0 %v2873
    %2875 = vmatprep.subr.mxu0 0.0
    %v2876 = vand.u32 %v180, 4294901760
    %2877 = vmatpush1.msra.mxu0 %v2876
    %2878 = vmatprep.subr.mxu0 0.0
    %v2879 = vand.u32 %v181, 4294901760
    %2880 = vmatpush1.msra.mxu0 %v2879
    %2881 = vmatprep.subr.mxu0 0.0
    %v2882 = vand.u32 %v182, 4294901760
    %2883 = vmatpush1.msra.mxu0 %v2882
    %2884 = vmatprep.subr.mxu0 0.0
    %v2885 = vand.u32 %v183, 4294901760
    %2886 = vmatpush1.msra.mxu0 %v2885
    %2887 = vmatprep.subr.mxu0 0.0
    %v2888 = vand.u32 %v184, 4294901760
    %2889 = vmatpush1.msra.mxu0 %v2888
    %2890 = vmatprep.subr.mxu0 0.0
    %v2891 = vand.u32 %v185, 4294901760
    %2892 = vmatpush1.msra.mxu0 %v2891
    %2893 = vmatprep.subr.mxu0 0.0
    %v2894 = vand.u32 %v186, 4294901760
    %2895 = vmatpush1.msra.mxu0 %v2894
    %2896 = vmatprep.subr.mxu0 0.0
    %v2897 = vand.u32 %v187, 4294901760
    %2898 = vmatpush1.msra.mxu0 %v2897
    %2899 = vmatprep.subr.mxu0 0.0
    %2900 = vmatpush1.msra.mxu0 0.0
    %2901 = vmatprep.subr.mxu0 0.0
    %2902 = vmatpush1.msra.mxu0 0.0
    %2903 = vmatprep.subr.mxu0 0.0
    %2904 = vmatpush1.msra.mxu0 0.0
    %2905 = vmatprep.subr.mxu0 0.0
    %2906 = vmatpush1.msra.mxu0 0.0
    %2907 = vmatprep.subr.mxu0 0.0
    %2908 = vmatpush1.msra.mxu0 0.0
    %2909 = vmatprep.subr.mxu0 0.0
    %2910 = vmatpush1.msra.mxu0 0.0
    %2911 = vmatprep.subr.mxu0 0.0
    %2912 = vmatpush1.msra.mxu0 0.0
    %2913 = vmatprep.subr.mxu0 0.0
    %2914 = vmatpush1.msra.mxu0 0.0
    %2915 = vmatprep.subr.mxu0 0.0
    %2916 = vmatpush1.msra.mxu0 0.0
    %2917 = vmatprep.subr.mxu0 0.0
    %2918 = vmatpush1.msra.mxu0 0.0
    %2919 = vmatprep.subr.mxu0 0.0
    %2920 = vmatpush1.msra.mxu0 0.0
    %2921 = vmatprep.subr.mxu0 0.0
    %2922 = vmatpush1.msra.mxu0 0.0
    %2923 = vmatprep.subr.mxu0 0.0
    %2924 = vmatpush1.msra.mxu0 0.0
    %2925 = vmatprep.subr.mxu0 0.0
    %2926 = vmatpush1.msra.mxu0 0.0
    %2927 = vmatprep.subr.mxu0 0.0
    %2928 = vmatpush1.msra.mxu0 0.0
    %2929 = vmatprep.subr.mxu0 0.0
    %2930 = vmatpush1.msra.mxu0 0.0
    %2931 = vmatprep.mubr.f32.mxu0 0.0
    %v2932 = vand.u32 %v2850, 4294901760
    %v2933 = vsub.f32 %v2850, %v2932
    %v2934 = vand.u32 %v2933, 4294901760
    %v2935 = vsub.f32 %v2933, %v2934
    %v2936 = vand.u32 %v2935, 4294901760
    %2937 = vmatmul.mubr.f32.gmra.mrb[0].mxu0 %v2936
    %v2938 = vpop.f32.mrb[0].mxu0
    %v2939 = vadd.f32 0.0, %v2938
    %v2940 = vpop.f32.mrb[0].mxu0
    %2941 = vdwg.mxu0
    %2942 = vmatprep.subr.mxu0 0.0
    %v2943 = vand.u32 %v172, 4294901760
    %v2944 = vsub.f32 %v172, %v2943
    %v2945 = vand.u32 %v2944, 4294901760
    %v2946 = vsub.f32 %v2944, %v2945
    %v2947 = vand.u32 %v2946, 4294901760
    %2948 = vmatpush1.msra.mxu0 %v2947
    %2949 = vmatprep.subr.mxu0 0.0
    %v2950 = vand.u32 %v173, 4294901760
    %v2951 = vsub.f32 %v173, %v2950
    %v2952 = vand.u32 %v2951, 4294901760
    %v2953 = vsub.f32 %v2951, %v2952
    %v2954 = vand.u32 %v2953, 4294901760
    %2955 = vmatpush1.msra.mxu0 %v2954
    %2956 = vmatprep.subr.mxu0 0.0
    %v2957 = vand.u32 %v174, 4294901760
    %v2958 = vsub.f32 %v174, %v2957
    %v2959 = vand.u32 %v2958, 4294901760
    %v2960 = vsub.f32 %v2958, %v2959
    %v2961 = vand.u32 %v2960, 4294901760
    %2962 = vmatpush1.msra.mxu0 %v2961
    %2963 = vmatprep.subr.mxu0 0.0
    %v2964 = vand.u32 %v175, 4294901760
    %v2965 = vsub.f32 %v175, %v2964
    %v2966 = vand.u32 %v2965, 4294901760
    %v2967 = vsub.f32 %v2965, %v2966
    %v2968 = vand.u32 %v2967, 4294901760
    %2969 = vmatpush1.msra.mxu0 %v2968
    %2970 = vmatprep.subr.mxu0 0.0
    %v2971 = vand.u32 %v176, 4294901760
    %v2972 = vsub.f32 %v176, %v2971
    %v2973 = vand.u32 %v2972, 4294901760
    %v2974 = vsub.f32 %v2972, %v2973
    %v2975 = vand.u32 %v2974, 4294901760
    %2976 = vmatpush1.msra.mxu0 %v2975
    %2977 = vmatprep.subr.mxu0 0.0
    %v2978 = vand.u32 %v177, 4294901760
    %v2979 = vsub.f32 %v177, %v2978
    %v2980 = vand.u32 %v2979, 4294901760
    %v2981 = vsub.f32 %v2979, %v2980
    %v2982 = vand.u32 %v2981, 4294901760
    %2983 = vmatpush1.msra.mxu0 %v2982
    %2984 = vmatprep.subr.mxu0 0.0
    %v2985 = vand.u32 %v178, 4294901760
    %v2986 = vsub.f32 %v178, %v2985
    %v2987 = vand.u32 %v2986, 4294901760
    %v2988 = vsub.f32 %v2986, %v2987
    %v2989 = vand.u32 %v2988, 4294901760
    %2990 = vmatpush1.msra.mxu0 %v2989
    %2991 = vmatprep.subr.mxu0 0.0
    %v2992 = vand.u32 %v179, 4294901760
    %v2993 = vsub.f32 %v179, %v2992
    %v2994 = vand.u32 %v2993, 4294901760
    %v2995 = vsub.f32 %v2993, %v2994
    %v2996 = vand.u32 %v2995, 4294901760
    %2997 = vmatpush1.msra.mxu0 %v2996
    %2998 = vmatprep.subr.mxu0 0.0
    %v2999 = vand.u32 %v180, 4294901760
    %v3000 = vsub.f32 %v180, %v2999
    %v3001 = vand.u32 %v3000, 4294901760
    %v3002 = vsub.f32 %v3000, %v3001
    %v3003 = vand.u32 %v3002, 4294901760
    %3004 = vmatpush1.msra.mxu0 %v3003
    %3005 = vmatprep.subr.mxu0 0.0
    %v3006 = vand.u32 %v181, 4294901760
    %v3007 = vsub.f32 %v181, %v3006
    %v3008 = vand.u32 %v3007, 4294901760
    %v3009 = vsub.f32 %v3007, %v3008
    %v3010 = vand.u32 %v3009, 4294901760
    %3011 = vmatpush1.msra.mxu0 %v3010
    %3012 = vmatprep.subr.mxu0 0.0
    %v3013 = vand.u32 %v182, 4294901760
    %v3014 = vsub.f32 %v182, %v3013
    %v3015 = vand.u32 %v3014, 4294901760
    %v3016 = vsub.f32 %v3014, %v3015
    %v3017 = vand.u32 %v3016, 4294901760
    %3018 = vmatpush1.msra.mxu0 %v3017
    %3019 = vmatprep.subr.mxu0 0.0
    %v3020 = vand.u32 %v183, 4294901760
    %v3021 = vsub.f32 %v183, %v3020
    %v3022 = vand.u32 %v3021, 4294901760
    %v3023 = vsub.f32 %v3021, %v3022
    %v3024 = vand.u32 %v3023, 4294901760
    %3025 = vmatpush1.msra.mxu0 %v3024
    %3026 = vmatprep.subr.mxu0 0.0
    %v3027 = vand.u32 %v184, 4294901760
    %v3028 = vsub.f32 %v184, %v3027
    %v3029 = vand.u32 %v3028, 4294901760
    %v3030 = vsub.f32 %v3028, %v3029
    %v3031 = vand.u32 %v3030, 4294901760
    %3032 = vmatpush1.msra.mxu0 %v3031
    %3033 = vmatprep.subr.mxu0 0.0
    %v3034 = vand.u32 %v185, 4294901760
    %v3035 = vsub.f32 %v185, %v3034
    %v3036 = vand.u32 %v3035, 4294901760
    %v3037 = vsub.f32 %v3035, %v3036
    %v3038 = vand.u32 %v3037, 4294901760
    %3039 = vmatpush1.msra.mxu0 %v3038
    %3040 = vmatprep.subr.mxu0 0.0
    %v3041 = vand.u32 %v186, 4294901760
    %v3042 = vsub.f32 %v186, %v3041
    %v3043 = vand.u32 %v3042, 4294901760
    %v3044 = vsub.f32 %v3042, %v3043
    %v3045 = vand.u32 %v3044, 4294901760
    %3046 = vmatpush1.msra.mxu0 %v3045
    %3047 = vmatprep.subr.mxu0 0.0
    %v3048 = vand.u32 %v187, 4294901760
    %v3049 = vsub.f32 %v187, %v3048
    %v3050 = vand.u32 %v3049, 4294901760
    %v3051 = vsub.f32 %v3049, %v3050
    %v3052 = vand.u32 %v3051, 4294901760
    %3053 = vmatpush1.msra.mxu0 %v3052
    %3054 = vmatprep.subr.mxu0 0.0
    %3055 = vmatpush1.msra.mxu0 0.0
    %3056 = vmatprep.subr.mxu0 0.0
    %3057 = vmatpush1.msra.mxu0 0.0
    %3058 = vmatprep.subr.mxu0 0.0
    %3059 = vmatpush1.msra.mxu0 0.0
    %3060 = vmatprep.subr.mxu0 0.0
    %3061 = vmatpush1.msra.mxu0 0.0
    %3062 = vmatprep.subr.mxu0 0.0
    %3063 = vmatpush1.msra.mxu0 0.0
    %3064 = vmatprep.subr.mxu0 0.0
    %3065 = vmatpush1.msra.mxu0 0.0
    %3066 = vmatprep.subr.mxu0 0.0
    %3067 = vmatpush1.msra.mxu0 0.0
    %3068 = vmatprep.subr.mxu0 0.0
    %3069 = vmatpush1.msra.mxu0 0.0
    %3070 = vmatprep.subr.mxu0 0.0
    %3071 = vmatpush1.msra.mxu0 0.0
    %3072 = vmatprep.subr.mxu0 0.0
    %3073 = vmatpush1.msra.mxu0 0.0
    %3074 = vmatprep.subr.mxu0 0.0
    %3075 = vmatpush1.msra.mxu0 0.0
    %3076 = vmatprep.subr.mxu0 0.0
    %3077 = vmatpush1.msra.mxu0 0.0
    %3078 = vmatprep.subr.mxu0 0.0
    %3079 = vmatpush1.msra.mxu0 0.0
    %3080 = vmatprep.subr.mxu0 0.0
    %3081 = vmatpush1.msra.mxu0 0.0
    %3082 = vmatprep.subr.mxu0 0.0
    %3083 = vmatpush1.msra.mxu0 0.0
    %3084 = vmatprep.subr.mxu0 0.0
    %3085 = vmatpush1.msra.mxu0 0.0
    %3086 = vmatprep.mubr.f32.mxu0 0.0
    %v3087 = vand.u32 %v2850, 4294901760
    %3088 = vmatmul.mubr.f32.gmra.mrb[0].mxu0 %v3087
    %v3089 = vpop.f32.mrb[0].mxu0
    %v3090 = vadd.f32 %v2939, %v3089
    %v3091 = vpop.f32.mrb[0].mxu0
    %3092 = vdwg.mxu0
    %3093 = vmatprep.subr.mxu0 0.0
    %v3094 = vand.u32 %v172, 4294901760
    %v3095 = vsub.f32 %v172, %v3094
    %3096 = vmatpush1.msra.mxu0 %v3095
    %3097 = vmatprep.subr.mxu0 0.0
    %v3098 = vand.u32 %v173, 4294901760
    %v3099 = vsub.f32 %v173, %v3098
    %3100 = vmatpush1.msra.mxu0 %v3099
    %3101 = vmatprep.subr.mxu0 0.0
    %v3102 = vand.u32 %v174, 4294901760
    %v3103 = vsub.f32 %v174, %v3102
    %3104 = vmatpush1.msra.mxu0 %v3103
    %3105 = vmatprep.subr.mxu0 0.0
    %v3106 = vand.u32 %v175, 4294901760
    %v3107 = vsub.f32 %v175, %v3106
    %3108 = vmatpush1.msra.mxu0 %v3107
    %3109 = vmatprep.subr.mxu0 0.0
    %v3110 = vand.u32 %v176, 4294901760
    %v3111 = vsub.f32 %v176, %v3110
    %3112 = vmatpush1.msra.mxu0 %v3111
    %3113 = vmatprep.subr.mxu0 0.0
    %v3114 = vand.u32 %v177, 4294901760
    %v3115 = vsub.f32 %v177, %v3114
    %3116 = vmatpush1.msra.mxu0 %v3115
    %3117 = vmatprep.subr.mxu0 0.0
    %v3118 = vand.u32 %v178, 4294901760
    %v3119 = vsub.f32 %v178, %v3118
    %3120 = vmatpush1.msra.mxu0 %v3119
    %3121 = vmatprep.subr.mxu0 0.0
    %v3122 = vand.u32 %v179, 4294901760
    %v3123 = vsub.f32 %v179, %v3122
    %3124 = vmatpush1.msra.mxu0 %v3123
    %3125 = vmatprep.subr.mxu0 0.0
    %v3126 = vand.u32 %v180, 4294901760
    %v3127 = vsub.f32 %v180, %v3126
    %3128 = vmatpush1.msra.mxu0 %v3127
    %3129 = vmatprep.subr.mxu0 0.0
    %v3130 = vand.u32 %v181, 4294901760
    %v3131 = vsub.f32 %v181, %v3130
    %3132 = vmatpush1.msra.mxu0 %v3131
    %3133 = vmatprep.subr.mxu0 0.0
    %v3134 = vand.u32 %v182, 4294901760
    %v3135 = vsub.f32 %v182, %v3134
    %3136 = vmatpush1.msra.mxu0 %v3135
    %3137 = vmatprep.subr.mxu0 0.0
    %v3138 = vand.u32 %v183, 4294901760
    %v3139 = vsub.f32 %v183, %v3138
    %3140 = vmatpush1.msra.mxu0 %v3139
    %3141 = vmatprep.subr.mxu0 0.0
    %v3142 = vand.u32 %v184, 4294901760
    %v3143 = vsub.f32 %v184, %v3142
    %3144 = vmatpush1.msra.mxu0 %v3143
    %3145 = vmatprep.subr.mxu0 0.0
    %v3146 = vand.u32 %v185, 4294901760
    %v3147 = vsub.f32 %v185, %v3146
    %3148 = vmatpush1.msra.mxu0 %v3147
    %3149 = vmatprep.subr.mxu0 0.0
    %v3150 = vand.u32 %v186, 4294901760
    %v3151 = vsub.f32 %v186, %v3150
    %3152 = vmatpush1.msra.mxu0 %v3151
    %3153 = vmatprep.subr.mxu0 0.0
    %v3154 = vand.u32 %v187, 4294901760
    %v3155 = vsub.f32 %v187, %v3154
    %3156 = vmatpush1.msra.mxu0 %v3155
    %3157 = vmatprep.subr.mxu0 0.0
    %3158 = vmatpush1.msra.mxu0 0.0
    %3159 = vmatprep.subr.mxu0 0.0
    %3160 = vmatpush1.msra.mxu0 0.0
    %3161 = vmatprep.subr.mxu0 0.0
    %3162 = vmatpush1.msra.mxu0 0.0
    %3163 = vmatprep.subr.mxu0 0.0
    %3164 = vmatpush1.msra.mxu0 0.0
    %3165 = vmatprep.subr.mxu0 0.0
    %3166 = vmatpush1.msra.mxu0 0.0
    %3167 = vmatprep.subr.mxu0 0.0
    %3168 = vmatpush1.msra.mxu0 0.0
    %3169 = vmatprep.subr.mxu0 0.0
    %3170 = vmatpush1.msra.mxu0 0.0
    %3171 = vmatprep.subr.mxu0 0.0
    %3172 = vmatpush1.msra.mxu0 0.0
    %3173 = vmatprep.subr.mxu0 0.0
    %3174 = vmatpush1.msra.mxu0 0.0
    %3175 = vmatprep.subr.mxu0 0.0
    %3176 = vmatpush1.msra.mxu0 0.0
    %3177 = vmatprep.subr.mxu0 0.0
    %3178 = vmatpush1.msra.mxu0 0.0
    %3179 = vmatprep.subr.mxu0 0.0
    %3180 = vmatpush1.msra.mxu0 0.0
    %3181 = vmatprep.subr.mxu0 0.0
    %3182 = vmatpush1.msra.mxu0 0.0
    %3183 = vmatprep.subr.mxu0 0.0
    %3184 = vmatpush1.msra.mxu0 0.0
    %3185 = vmatprep.subr.mxu0 0.0
    %3186 = vmatpush1.msra.mxu0 0.0
    %3187 = vmatprep.subr.mxu0 0.0
    %3188 = vmatpush1.msra.mxu0 0.0
    %3189 = vmatprep.mubr.f32.mxu0 0.0
    %v3190 = vand.u32 %v2850, 4294901760
    %v3191 = vsub.f32 %v2850, %v3190
    %3192 = vmatmul.mubr.f32.gmra.mrb[0].mxu0 %v3191
    %v3193 = vpop.f32.mrb[0].mxu0
    %v3194 = vadd.f32 %v3090, %v3193
    %v3195 = vpop.f32.mrb[0].mxu0
    %3196 = vdwg.mxu0
    %3197 = vmatprep.subr.mxu0 0.0
    %v3198 = vand.u32 %v172, 4294901760
    %3199 = vmatpush1.msra.mxu0 %v3198
    %3200 = vmatprep.subr.mxu0 0.0
    %v3201 = vand.u32 %v173, 4294901760
    %3202 = vmatpush1.msra.mxu0 %v3201
    %3203 = vmatprep.subr.mxu0 0.0
    %v3204 = vand.u32 %v174, 4294901760
    %3205 = vmatpush1.msra.mxu0 %v3204
    %3206 = vmatprep.subr.mxu0 0.0
    %v3207 = vand.u32 %v175, 4294901760
    %3208 = vmatpush1.msra.mxu0 %v3207
    %3209 = vmatprep.subr.mxu0 0.0
    %v3210 = vand.u32 %v176, 4294901760
    %3211 = vmatpush1.msra.mxu0 %v3210
    %3212 = vmatprep.subr.mxu0 0.0
    %v3213 = vand.u32 %v177, 4294901760
    %3214 = vmatpush1.msra.mxu0 %v3213
    %3215 = vmatprep.subr.mxu0 0.0
    %v3216 = vand.u32 %v178, 4294901760
    %3217 = vmatpush1.msra.mxu0 %v3216
    %3218 = vmatprep.subr.mxu0 0.0
    %v3219 = vand.u32 %v179, 4294901760
    %3220 = vmatpush1.msra.mxu0 %v3219
    %3221 = vmatprep.subr.mxu0 0.0
    %v3222 = vand.u32 %v180, 4294901760
    %3223 = vmatpush1.msra.mxu0 %v3222
    %3224 = vmatprep.subr.mxu0 0.0
    %v3225 = vand.u32 %v181, 4294901760
    %3226 = vmatpush1.msra.mxu0 %v3225
    %3227 = vmatprep.subr.mxu0 0.0
    %v3228 = vand.u32 %v182, 4294901760
    %3229 = vmatpush1.msra.mxu0 %v3228
    %3230 = vmatprep.subr.mxu0 0.0
    %v3231 = vand.u32 %v183, 4294901760
    %3232 = vmatpush1.msra.mxu0 %v3231
    %3233 = vmatprep.subr.mxu0 0.0
    %v3234 = vand.u32 %v184, 4294901760
    %3235 = vmatpush1.msra.mxu0 %v3234
    %3236 = vmatprep.subr.mxu0 0.0
    %v3237 = vand.u32 %v185, 4294901760
    %3238 = vmatpush1.msra.mxu0 %v3237
    %3239 = vmatprep.subr.mxu0 0.0
    %v3240 = vand.u32 %v186, 4294901760
    %3241 = vmatpush1.msra.mxu0 %v3240
    %3242 = vmatprep.subr.mxu0 0.0
    %v3243 = vand.u32 %v187, 4294901760
    %3244 = vmatpush1.msra.mxu0 %v3243
    %3245 = vmatprep.subr.mxu0 0.0
    %3246 = vmatpush1.msra.mxu0 0.0
    %3247 = vmatprep.subr.mxu0 0.0
    %3248 = vmatpush1.msra.mxu0 0.0
    %3249 = vmatprep.subr.mxu0 0.0
    %3250 = vmatpush1.msra.mxu0 0.0
    %3251 = vmatprep.subr.mxu0 0.0
    %3252 = vmatpush1.msra.mxu0 0.0
    %3253 = vmatprep.subr.mxu0 0.0
    %3254 = vmatpush1.msra.mxu0 0.0
    %3255 = vmatprep.subr.mxu0 0.0
    %3256 = vmatpush1.msra.mxu0 0.0
    %3257 = vmatprep.subr.mxu0 0.0
    %3258 = vmatpush1.msra.mxu0 0.0
    %3259 = vmatprep.subr.mxu0 0.0
    %3260 = vmatpush1.msra.mxu0 0.0
    %3261 = vmatprep.subr.mxu0 0.0
    %3262 = vmatpush1.msra.mxu0 0.0
    %3263 = vmatprep.subr.mxu0 0.0
    %3264 = vmatpush1.msra.mxu0 0.0
    %3265 = vmatprep.subr.mxu0 0.0
    %3266 = vmatpush1.msra.mxu0 0.0
    %3267 = vmatprep.subr.mxu0 0.0
    %3268 = vmatpush1.msra.mxu0 0.0
    %3269 = vmatprep.subr.mxu0 0.0
    %3270 = vmatpush1.msra.mxu0 0.0
    %3271 = vmatprep.subr.mxu0 0.0
    %3272 = vmatpush1.msra.mxu0 0.0
    %3273 = vmatprep.subr.mxu0 0.0
    %3274 = vmatpush1.msra.mxu0 0.0
    %3275 = vmatprep.subr.mxu0 0.0
    %3276 = vmatpush1.msra.mxu0 0.0
    %3277 = vmatprep.mubr.f32.mxu0 0.0
    %v3278 = vand.u32 %v2850, 4294901760
    %v3279 = vsub.f32 %v2850, %v3278
    %v3280 = vand.u32 %v3279, 4294901760
    %3281 = vmatmul.mubr.f32.gmra.mrb[0].mxu0 %v3280
    %v3282 = vpop.f32.mrb[0].mxu0
    %v3283 = vadd.f32 %v3194, %v3282
    %v3284 = vpop.f32.mrb[0].mxu0
    %3285 = vdwg.mxu0
    %3286 = vmatprep.subr.mxu0 0.0
    %v3287 = vand.u32 %v172, 4294901760
    %v3288 = vsub.f32 %v172, %v3287
    %v3289 = vand.u32 %v3288, 4294901760
    %3290 = vmatpush1.msra.mxu0 %v3289
    %3291 = vmatprep.subr.mxu0 0.0
    %v3292 = vand.u32 %v173, 4294901760
    %v3293 = vsub.f32 %v173, %v3292
    %v3294 = vand.u32 %v3293, 4294901760
    %3295 = vmatpush1.msra.mxu0 %v3294
    %3296 = vmatprep.subr.mxu0 0.0
    %v3297 = vand.u32 %v174, 4294901760
    %v3298 = vsub.f32 %v174, %v3297
    %v3299 = vand.u32 %v3298, 4294901760
    %3300 = vmatpush1.msra.mxu0 %v3299
    %3301 = vmatprep.subr.mxu0 0.0
    %v3302 = vand.u32 %v175, 4294901760
    %v3303 = vsub.f32 %v175, %v3302
    %v3304 = vand.u32 %v3303, 4294901760
    %3305 = vmatpush1.msra.mxu0 %v3304
    %3306 = vmatprep.subr.mxu0 0.0
    %v3307 = vand.u32 %v176, 4294901760
    %v3308 = vsub.f32 %v176, %v3307
    %v3309 = vand.u32 %v3308, 4294901760
    %3310 = vmatpush1.msra.mxu0 %v3309
    %3311 = vmatprep.subr.mxu0 0.0
    %v3312 = vand.u32 %v177, 4294901760
    %v3313 = vsub.f32 %v177, %v3312
    %v3314 = vand.u32 %v3313, 4294901760
    %3315 = vmatpush1.msra.mxu0 %v3314
    %3316 = vmatprep.subr.mxu0 0.0
    %v3317 = vand.u32 %v178, 4294901760
    %v3318 = vsub.f32 %v178, %v3317
    %v3319 = vand.u32 %v3318, 4294901760
    %3320 = vmatpush1.msra.mxu0 %v3319
    %3321 = vmatprep.subr.mxu0 0.0
    %v3322 = vand.u32 %v179, 4294901760
    %v3323 = vsub.f32 %v179, %v3322
    %v3324 = vand.u32 %v3323, 4294901760
    %3325 = vmatpush1.msra.mxu0 %v3324
    %3326 = vmatprep.subr.mxu0 0.0
    %v3327 = vand.u32 %v180, 4294901760
    %v3328 = vsub.f32 %v180, %v3327
    %v3329 = vand.u32 %v3328, 4294901760
    %3330 = vmatpush1.msra.mxu0 %v3329
    %3331 = vmatprep.subr.mxu0 0.0
    %v3332 = vand.u32 %v181, 4294901760
    %v3333 = vsub.f32 %v181, %v3332
    %v3334 = vand.u32 %v3333, 4294901760
    %3335 = vmatpush1.msra.mxu0 %v3334
    %3336 = vmatprep.subr.mxu0 0.0
    %v3337 = vand.u32 %v182, 4294901760
    %v3338 = vsub.f32 %v182, %v3337
    %v3339 = vand.u32 %v3338, 4294901760
    %3340 = vmatpush1.msra.mxu0 %v3339
    %3341 = vmatprep.subr.mxu0 0.0
    %v3342 = vand.u32 %v183, 4294901760
    %v3343 = vsub.f32 %v183, %v3342
    %v3344 = vand.u32 %v3343, 4294901760
    %3345 = vmatpush1.msra.mxu0 %v3344
    %3346 = vmatprep.subr.mxu0 0.0
    %v3347 = vand.u32 %v184, 4294901760
    %v3348 = vsub.f32 %v184, %v3347
    %v3349 = vand.u32 %v3348, 4294901760
    %3350 = vmatpush1.msra.mxu0 %v3349
    %3351 = vmatprep.subr.mxu0 0.0
    %v3352 = vand.u32 %v185, 4294901760
    %v3353 = vsub.f32 %v185, %v3352
    %v3354 = vand.u32 %v3353, 4294901760
    %3355 = vmatpush1.msra.mxu0 %v3354
    %3356 = vmatprep.subr.mxu0 0.0
    %v3357 = vand.u32 %v186, 4294901760
    %v3358 = vsub.f32 %v186, %v3357
    %v3359 = vand.u32 %v3358, 4294901760
    %3360 = vmatpush1.msra.mxu0 %v3359
    %3361 = vmatprep.subr.mxu0 0.0
    %v3362 = vand.u32 %v187, 4294901760
    %v3363 = vsub.f32 %v187, %v3362
    %v3364 = vand.u32 %v3363, 4294901760
    %3365 = vmatpush1.msra.mxu0 %v3364
    %3366 = vmatprep.subr.mxu0 0.0
    %3367 = vmatpush1.msra.mxu0 0.0
    %3368 = vmatprep.subr.mxu0 0.0
    %3369 = vmatpush1.msra.mxu0 0.0
    %3370 = vmatprep.subr.mxu0 0.0
    %3371 = vmatpush1.msra.mxu0 0.0
    %3372 = vmatprep.subr.mxu0 0.0
    %3373 = vmatpush1.msra.mxu0 0.0
    %3374 = vmatprep.subr.mxu0 0.0
    %3375 = vmatpush1.msra.mxu0 0.0
    %3376 = vmatprep.subr.mxu0 0.0
    %3377 = vmatpush1.msra.mxu0 0.0
    %3378 = vmatprep.subr.mxu0 0.0
    %3379 = vmatpush1.msra.mxu0 0.0
    %3380 = vmatprep.subr.mxu0 0.0
    %3381 = vmatpush1.msra.mxu0 0.0
    %3382 = vmatprep.subr.mxu0 0.0
    %3383 = vmatpush1.msra.mxu0 0.0
    %3384 = vmatprep.subr.mxu0 0.0
    %3385 = vmatpush1.msra.mxu0 0.0
    %3386 = vmatprep.subr.mxu0 0.0
    %3387 = vmatpush1.msra.mxu0 0.0
    %3388 = vmatprep.subr.mxu0 0.0
    %3389 = vmatpush1.msra.mxu0 0.0
    %3390 = vmatprep.subr.mxu0 0.0
    %3391 = vmatpush1.msra.mxu0 0.0
    %3392 = vmatprep.subr.mxu0 0.0
    %3393 = vmatpush1.msra.mxu0 0.0
    %3394 = vmatprep.subr.mxu0 0.0
    %3395 = vmatpush1.msra.mxu0 0.0
    %3396 = vmatprep.subr.mxu0 0.0
    %3397 = vmatpush1.msra.mxu0 0.0
    %3398 = vmatprep.mubr.f32.mxu0 0.0
    %v3399 = vand.u32 %v2850, 4294901760
    %3400 = vmatmul.mubr.f32.gmra.mrb[0].mxu0 %v3399
    %v3401 = vpop.f32.mrb[0].mxu0
    %v3402 = vadd.f32 %v3283, %v3401
    %v3403 = vpop.f32.mrb[0].mxu0
    %3404 = vdwg.mxu0
    %3405 = vmatprep.subr.mxu0 0.0
    %v3406 = vand.u32 %v172, 4294901760
    %3407 = vmatpush1.msra.mxu0 %v3406
    %3408 = vmatprep.subr.mxu0 0.0
    %v3409 = vand.u32 %v173, 4294901760
    %3410 = vmatpush1.msra.mxu0 %v3409
    %3411 = vmatprep.subr.mxu0 0.0
    %v3412 = vand.u32 %v174, 4294901760
    %3413 = vmatpush1.msra.mxu0 %v3412
    %3414 = vmatprep.subr.mxu0 0.0
    %v3415 = vand.u32 %v175, 4294901760
    %3416 = vmatpush1.msra.mxu0 %v3415
    %3417 = vmatprep.subr.mxu0 0.0
    %v3418 = vand.u32 %v176, 4294901760
    %3419 = vmatpush1.msra.mxu0 %v3418
    %3420 = vmatprep.subr.mxu0 0.0
    %v3421 = vand.u32 %v177, 4294901760
    %3422 = vmatpush1.msra.mxu0 %v3421
    %3423 = vmatprep.subr.mxu0 0.0
    %v3424 = vand.u32 %v178, 4294901760
    %3425 = vmatpush1.msra.mxu0 %v3424
    %3426 = vmatprep.subr.mxu0 0.0
    %v3427 = vand.u32 %v179, 4294901760
    %3428 = vmatpush1.msra.mxu0 %v3427
    %3429 = vmatprep.subr.mxu0 0.0
    %v3430 = vand.u32 %v180, 4294901760
    %3431 = vmatpush1.msra.mxu0 %v3430
    %3432 = vmatprep.subr.mxu0 0.0
    %v3433 = vand.u32 %v181, 4294901760
    %3434 = vmatpush1.msra.mxu0 %v3433
    %3435 = vmatprep.subr.mxu0 0.0
    %v3436 = vand.u32 %v182, 4294901760
    %3437 = vmatpush1.msra.mxu0 %v3436
    %3438 = vmatprep.subr.mxu0 0.0
    %v3439 = vand.u32 %v183, 4294901760
    %3440 = vmatpush1.msra.mxu0 %v3439
    %3441 = vmatprep.subr.mxu0 0.0
    %v3442 = vand.u32 %v184, 4294901760
    %3443 = vmatpush1.msra.mxu0 %v3442
    %3444 = vmatprep.subr.mxu0 0.0
    %v3445 = vand.u32 %v185, 4294901760
    %3446 = vmatpush1.msra.mxu0 %v3445
    %3447 = vmatprep.subr.mxu0 0.0
    %v3448 = vand.u32 %v186, 4294901760
    %3449 = vmatpush1.msra.mxu0 %v3448
    %3450 = vmatprep.subr.mxu0 0.0
    %v3451 = vand.u32 %v187, 4294901760
    %3452 = vmatpush1.msra.mxu0 %v3451
    %3453 = vmatprep.subr.mxu0 0.0
    %3454 = vmatpush1.msra.mxu0 0.0
    %3455 = vmatprep.subr.mxu0 0.0
    %3456 = vmatpush1.msra.mxu0 0.0
    %3457 = vmatprep.subr.mxu0 0.0
    %3458 = vmatpush1.msra.mxu0 0.0
    %3459 = vmatprep.subr.mxu0 0.0
    %3460 = vmatpush1.msra.mxu0 0.0
    %3461 = vmatprep.subr.mxu0 0.0
    %3462 = vmatpush1.msra.mxu0 0.0
    %3463 = vmatprep.subr.mxu0 0.0
    %3464 = vmatpush1.msra.mxu0 0.0
    %3465 = vmatprep.subr.mxu0 0.0
    %3466 = vmatpush1.msra.mxu0 0.0
    %3467 = vmatprep.subr.mxu0 0.0
    %3468 = vmatpush1.msra.mxu0 0.0
    %3469 = vmatprep.subr.mxu0 0.0
    %3470 = vmatpush1.msra.mxu0 0.0
    %3471 = vmatprep.subr.mxu0 0.0
    %3472 = vmatpush1.msra.mxu0 0.0
    %3473 = vmatprep.subr.mxu0 0.0
    %3474 = vmatpush1.msra.mxu0 0.0
    %3475 = vmatprep.subr.mxu0 0.0
    %3476 = vmatpush1.msra.mxu0 0.0
    %3477 = vmatprep.subr.mxu0 0.0
    %3478 = vmatpush1.msra.mxu0 0.0
    %3479 = vmatprep.subr.mxu0 0.0
    %3480 = vmatpush1.msra.mxu0 0.0
    %3481 = vmatprep.subr.mxu0 0.0
    %3482 = vmatpush1.msra.mxu0 0.0
    %3483 = vmatprep.subr.mxu0 0.0
    %3484 = vmatpush1.msra.mxu0 0.0
    %3485 = vmatprep.mubr.f32.mxu0 0.0
    %v3486 = vand.u32 %v2850, 4294901760
    %3487 = vmatmul.mubr.f32.gmra.mrb[0].mxu0 %v3486
    %v3488 = vpop.f32.mrb[0].mxu0
    %v3489 = vadd.f32 %v3402, %v3488
    %v3490 = vpop.f32.mrb[0].mxu0
    %3491 = vdwg.mxu0
    %v3492 = vlog2.pop %v3489
    %v3493 = vmul.f32 %v3492, 0.6931472
    %v3494 = vadd.f32 %v3493, %v2847
    %v3495 = vadd.f32 %v3494, %v845
    %v3496 = vadd.f32 %v3495, %v2843
    %vm3497 = vcmp.gt.f32.partialorder %v2845, 0.5
    %v3498 = vsel %vm3497, 1, 0
    %3499 = vset.pattern.permute.xlu0 0
    %3500 = vperm.xlu0 %3499, %v3498
    %v3501 = vpop.permute.xlu0 %3500
    %vm3502 = vcmp.eq.s32.totalorder %v3501, 1
    %v3503 = vsel %vm3502, %v3496, %v2841
    %s3504 = scalar_lea.vmem %s0, 40
    %v3505 = vld [vmem:[%s3504] sm:$0xff]
    %s3506 = scalar_lea.vmem %s1, 40
    %v3507 = vld [vmem:[%s3506] sm:$0xff]
    %3508 = vmax.xlane.f32.xlu0 %v3503
    %v3509 = vpop.xlane.xlu0 %3508
    %v3510 = vsub.f32 %v3503, %v3509
    %v3511 = vmul.f32 %v3510, 1.442695
    %v3512 = vpow.pop %v3511
    %3513 = vmatprep.subr.mxu0 0.0
    %v3514 = vand.u32 %v172, 4294901760
    %3515 = vmatpush1.msra.mxu0 %v3514
    %3516 = vmatprep.subr.mxu0 0.0
    %v3517 = vand.u32 %v173, 4294901760
    %3518 = vmatpush1.msra.mxu0 %v3517
    %3519 = vmatprep.subr.mxu0 0.0
    %v3520 = vand.u32 %v174, 4294901760
    %3521 = vmatpush1.msra.mxu0 %v3520
    %3522 = vmatprep.subr.mxu0 0.0
    %v3523 = vand.u32 %v175, 4294901760
    %3524 = vmatpush1.msra.mxu0 %v3523
    %3525 = vmatprep.subr.mxu0 0.0
    %v3526 = vand.u32 %v176, 4294901760
    %3527 = vmatpush1.msra.mxu0 %v3526
    %3528 = vmatprep.subr.mxu0 0.0
    %v3529 = vand.u32 %v177, 4294901760
    %3530 = vmatpush1.msra.mxu0 %v3529
    %3531 = vmatprep.subr.mxu0 0.0
    %v3532 = vand.u32 %v178, 4294901760
    %3533 = vmatpush1.msra.mxu0 %v3532
    %3534 = vmatprep.subr.mxu0 0.0
    %v3535 = vand.u32 %v179, 4294901760
    %3536 = vmatpush1.msra.mxu0 %v3535
    %3537 = vmatprep.subr.mxu0 0.0
    %v3538 = vand.u32 %v180, 4294901760
    %3539 = vmatpush1.msra.mxu0 %v3538
    %3540 = vmatprep.subr.mxu0 0.0
    %v3541 = vand.u32 %v181, 4294901760
    %3542 = vmatpush1.msra.mxu0 %v3541
    %3543 = vmatprep.subr.mxu0 0.0
    %v3544 = vand.u32 %v182, 4294901760
    %3545 = vmatpush1.msra.mxu0 %v3544
    %3546 = vmatprep.subr.mxu0 0.0
    %v3547 = vand.u32 %v183, 4294901760
    %3548 = vmatpush1.msra.mxu0 %v3547
    %3549 = vmatprep.subr.mxu0 0.0
    %v3550 = vand.u32 %v184, 4294901760
    %3551 = vmatpush1.msra.mxu0 %v3550
    %3552 = vmatprep.subr.mxu0 0.0
    %v3553 = vand.u32 %v185, 4294901760
    %3554 = vmatpush1.msra.mxu0 %v3553
    %3555 = vmatprep.subr.mxu0 0.0
    %v3556 = vand.u32 %v186, 4294901760
    %3557 = vmatpush1.msra.mxu0 %v3556
    %3558 = vmatprep.subr.mxu0 0.0
    %v3559 = vand.u32 %v187, 4294901760
    %3560 = vmatpush1.msra.mxu0 %v3559
    %3561 = vmatprep.subr.mxu0 0.0
    %3562 = vmatpush1.msra.mxu0 0.0
    %3563 = vmatprep.subr.mxu0 0.0
    %3564 = vmatpush1.msra.mxu0 0.0
    %3565 = vmatprep.subr.mxu0 0.0
    %3566 = vmatpush1.msra.mxu0 0.0
    %3567 = vmatprep.subr.mxu0 0.0
    %3568 = vmatpush1.msra.mxu0 0.0
    %3569 = vmatprep.subr.mxu0 0.0
    %3570 = vmatpush1.msra.mxu0 0.0
    %3571 = vmatprep.subr.mxu0 0.0
    %3572 = vmatpush1.msra.mxu0 0.0
    %3573 = vmatprep.subr.mxu0 0.0
    %3574 = vmatpush1.msra.mxu0 0.0
    %3575 = vmatprep.subr.mxu0 0.0
    %3576 = vmatpush1.msra.mxu0 0.0
    %3577 = vmatprep.subr.mxu0 0.0
    %3578 = vmatpush1.msra.mxu0 0.0
    %3579 = vmatprep.subr.mxu0 0.0
    %3580 = vmatpush1.msra.mxu0 0.0
    %3581 = vmatprep.subr.mxu0 0.0
    %3582 = vmatpush1.msra.mxu0 0.0
    %3583 = vmatprep.subr.mxu0 0.0
    %3584 = vmatpush1.msra.mxu0 0.0
    %3585 = vmatprep.subr.mxu0 0.0
    %3586 = vmatpush1.msra.mxu0 0.0
    %3587 = vmatprep.subr.mxu0 0.0
    %3588 = vmatpush1.msra.mxu0 0.0
    %3589 = vmatprep.subr.mxu0 0.0
    %3590 = vmatpush1.msra.mxu0 0.0
    %3591 = vmatprep.subr.mxu0 0.0
    %3592 = vmatpush1.msra.mxu0 0.0
    %3593 = vmatprep.mubr.f32.mxu0 0.0
    %v3594 = vand.u32 %v3512, 4294901760
    %v3595 = vsub.f32 %v3512, %v3594
    %v3596 = vand.u32 %v3595, 4294901760
    %v3597 = vsub.f32 %v3595, %v3596
    %v3598 = vand.u32 %v3597, 4294901760
    %3599 = vmatmul.mubr.f32.gmra.mrb[0].mxu0 %v3598
    %v3600 = vpop.f32.mrb[0].mxu0
    %v3601 = vadd.f32 0.0, %v3600
    %v3602 = vpop.f32.mrb[0].mxu0
    %3603 = vdwg.mxu0
    %3604 = vmatprep.subr.mxu0 0.0
    %v3605 = vand.u32 %v172, 4294901760
    %v3606 = vsub.f32 %v172, %v3605
    %v3607 = vand.u32 %v3606, 4294901760
    %v3608 = vsub.f32 %v3606, %v3607
    %v3609 = vand.u32 %v3608, 4294901760
    %3610 = vmatpush1.msra.mxu0 %v3609
    %3611 = vmatprep.subr.mxu0 0.0
    %v3612 = vand.u32 %v173, 4294901760
    %v3613 = vsub.f32 %v173, %v3612
    %v3614 = vand.u32 %v3613, 4294901760
    %v3615 = vsub.f32 %v3613, %v3614
    %v3616 = vand.u32 %v3615, 4294901760
    %3617 = vmatpush1.msra.mxu0 %v3616
    %3618 = vmatprep.subr.mxu0 0.0
    %v3619 = vand.u32 %v174, 4294901760
    %v3620 = vsub.f32 %v174, %v3619
    %v3621 = vand.u32 %v3620, 4294901760
    %v3622 = vsub.f32 %v3620, %v3621
    %v3623 = vand.u32 %v3622, 4294901760
    %3624 = vmatpush1.msra.mxu0 %v3623
    %3625 = vmatprep.subr.mxu0 0.0
    %v3626 = vand.u32 %v175, 4294901760
    %v3627 = vsub.f32 %v175, %v3626
    %v3628 = vand.u32 %v3627, 4294901760
    %v3629 = vsub.f32 %v3627, %v3628
    %v3630 = vand.u32 %v3629, 4294901760
    %3631 = vmatpush1.msra.mxu0 %v3630
    %3632 = vmatprep.subr.mxu0 0.0
    %v3633 = vand.u32 %v176, 4294901760
    %v3634 = vsub.f32 %v176, %v3633
    %v3635 = vand.u32 %v3634, 4294901760
    %v3636 = vsub.f32 %v3634, %v3635
    %v3637 = vand.u32 %v3636, 4294901760
    %3638 = vmatpush1.msra.mxu0 %v3637
    %3639 = vmatprep.subr.mxu0 0.0
    %v3640 = vand.u32 %v177, 4294901760
    %v3641 = vsub.f32 %v177, %v3640
    %v3642 = vand.u32 %v3641, 4294901760
    %v3643 = vsub.f32 %v3641, %v3642
    %v3644 = vand.u32 %v3643, 4294901760
    %3645 = vmatpush1.msra.mxu0 %v3644
    %3646 = vmatprep.subr.mxu0 0.0
    %v3647 = vand.u32 %v178, 4294901760
    %v3648 = vsub.f32 %v178, %v3647
    %v3649 = vand.u32 %v3648, 4294901760
    %v3650 = vsub.f32 %v3648, %v3649
    %v3651 = vand.u32 %v3650, 4294901760
    %3652 = vmatpush1.msra.mxu0 %v3651
    %3653 = vmatprep.subr.mxu0 0.0
    %v3654 = vand.u32 %v179, 4294901760
    %v3655 = vsub.f32 %v179, %v3654
    %v3656 = vand.u32 %v3655, 4294901760
    %v3657 = vsub.f32 %v3655, %v3656
    %v3658 = vand.u32 %v3657, 4294901760
    %3659 = vmatpush1.msra.mxu0 %v3658
    %3660 = vmatprep.subr.mxu0 0.0
    %v3661 = vand.u32 %v180, 4294901760
    %v3662 = vsub.f32 %v180, %v3661
    %v3663 = vand.u32 %v3662, 4294901760
    %v3664 = vsub.f32 %v3662, %v3663
    %v3665 = vand.u32 %v3664, 4294901760
    %3666 = vmatpush1.msra.mxu0 %v3665
    %3667 = vmatprep.subr.mxu0 0.0
    %v3668 = vand.u32 %v181, 4294901760
    %v3669 = vsub.f32 %v181, %v3668
    %v3670 = vand.u32 %v3669, 4294901760
    %v3671 = vsub.f32 %v3669, %v3670
    %v3672 = vand.u32 %v3671, 4294901760
    %3673 = vmatpush1.msra.mxu0 %v3672
    %3674 = vmatprep.subr.mxu0 0.0
    %v3675 = vand.u32 %v182, 4294901760
    %v3676 = vsub.f32 %v182, %v3675
    %v3677 = vand.u32 %v3676, 4294901760
    %v3678 = vsub.f32 %v3676, %v3677
    %v3679 = vand.u32 %v3678, 4294901760
    %3680 = vmatpush1.msra.mxu0 %v3679
    %3681 = vmatprep.subr.mxu0 0.0
    %v3682 = vand.u32 %v183, 4294901760
    %v3683 = vsub.f32 %v183, %v3682
    %v3684 = vand.u32 %v3683, 4294901760
    %v3685 = vsub.f32 %v3683, %v3684
    %v3686 = vand.u32 %v3685, 4294901760
    %3687 = vmatpush1.msra.mxu0 %v3686
    %3688 = vmatprep.subr.mxu0 0.0
    %v3689 = vand.u32 %v184, 4294901760
    %v3690 = vsub.f32 %v184, %v3689
    %v3691 = vand.u32 %v3690, 4294901760
    %v3692 = vsub.f32 %v3690, %v3691
    %v3693 = vand.u32 %v3692, 4294901760
    %3694 = vmatpush1.msra.mxu0 %v3693
    %3695 = vmatprep.subr.mxu0 0.0
    %v3696 = vand.u32 %v185, 4294901760
    %v3697 = vsub.f32 %v185, %v3696
    %v3698 = vand.u32 %v3697, 4294901760
    %v3699 = vsub.f32 %v3697, %v3698
    %v3700 = vand.u32 %v3699, 4294901760
    %3701 = vmatpush1.msra.mxu0 %v3700
    %3702 = vmatprep.subr.mxu0 0.0
    %v3703 = vand.u32 %v186, 4294901760
    %v3704 = vsub.f32 %v186, %v3703
    %v3705 = vand.u32 %v3704, 4294901760
    %v3706 = vsub.f32 %v3704, %v3705
    %v3707 = vand.u32 %v3706, 4294901760
    %3708 = vmatpush1.msra.mxu0 %v3707
    %3709 = vmatprep.subr.mxu0 0.0
    %v3710 = vand.u32 %v187, 4294901760
    %v3711 = vsub.f32 %v187, %v3710
    %v3712 = vand.u32 %v3711, 4294901760
    %v3713 = vsub.f32 %v3711, %v3712
    %v3714 = vand.u32 %v3713, 4294901760
    %3715 = vmatpush1.msra.mxu0 %v3714
    %3716 = vmatprep.subr.mxu0 0.0
    %3717 = vmatpush1.msra.mxu0 0.0
    %3718 = vmatprep.subr.mxu0 0.0
    %3719 = vmatpush1.msra.mxu0 0.0
    %3720 = vmatprep.subr.mxu0 0.0
    %3721 = vmatpush1.msra.mxu0 0.0
    %3722 = vmatprep.subr.mxu0 0.0
    %3723 = vmatpush1.msra.mxu0 0.0
    %3724 = vmatprep.subr.mxu0 0.0
    %3725 = vmatpush1.msra.mxu0 0.0
    %3726 = vmatprep.subr.mxu0 0.0
    %3727 = vmatpush1.msra.mxu0 0.0
    %3728 = vmatprep.subr.mxu0 0.0
    %3729 = vmatpush1.msra.mxu0 0.0
    %3730 = vmatprep.subr.mxu0 0.0
    %3731 = vmatpush1.msra.mxu0 0.0
    %3732 = vmatprep.subr.mxu0 0.0
    %3733 = vmatpush1.msra.mxu0 0.0
    %3734 = vmatprep.subr.mxu0 0.0
    %3735 = vmatpush1.msra.mxu0 0.0
    %3736 = vmatprep.subr.mxu0 0.0
    %3737 = vmatpush1.msra.mxu0 0.0
    %3738 = vmatprep.subr.mxu0 0.0
    %3739 = vmatpush1.msra.mxu0 0.0
    %3740 = vmatprep.subr.mxu0 0.0
    %3741 = vmatpush1.msra.mxu0 0.0
    %3742 = vmatprep.subr.mxu0 0.0
    %3743 = vmatpush1.msra.mxu0 0.0
    %3744 = vmatprep.subr.mxu0 0.0
    %3745 = vmatpush1.msra.mxu0 0.0
    %3746 = vmatprep.subr.mxu0 0.0
    %3747 = vmatpush1.msra.mxu0 0.0
    %3748 = vmatprep.mubr.f32.mxu0 0.0
    %v3749 = vand.u32 %v3512, 4294901760
    %3750 = vmatmul.mubr.f32.gmra.mrb[0].mxu0 %v3749
    %v3751 = vpop.f32.mrb[0].mxu0
    %v3752 = vadd.f32 %v3601, %v3751
    %v3753 = vpop.f32.mrb[0].mxu0
    %3754 = vdwg.mxu0
    %3755 = vmatprep.subr.mxu0 0.0
    %v3756 = vand.u32 %v172, 4294901760
    %v3757 = vsub.f32 %v172, %v3756
    %3758 = vmatpush1.msra.mxu0 %v3757
    %3759 = vmatprep.subr.mxu0 0.0
    %v3760 = vand.u32 %v173, 4294901760
    %v3761 = vsub.f32 %v173, %v3760
    %3762 = vmatpush1.msra.mxu0 %v3761
    %3763 = vmatprep.subr.mxu0 0.0
    %v3764 = vand.u32 %v174, 4294901760
    %v3765 = vsub.f32 %v174, %v3764
    %3766 = vmatpush1.msra.mxu0 %v3765
    %3767 = vmatprep.subr.mxu0 0.0
    %v3768 = vand.u32 %v175, 4294901760
    %v3769 = vsub.f32 %v175, %v3768
    %3770 = vmatpush1.msra.mxu0 %v3769
    %3771 = vmatprep.subr.mxu0 0.0
    %v3772 = vand.u32 %v176, 4294901760
    %v3773 = vsub.f32 %v176, %v3772
    %3774 = vmatpush1.msra.mxu0 %v3773
    %3775 = vmatprep.subr.mxu0 0.0
    %v3776 = vand.u32 %v177, 4294901760
    %v3777 = vsub.f32 %v177, %v3776
    %3778 = vmatpush1.msra.mxu0 %v3777
    %3779 = vmatprep.subr.mxu0 0.0
    %v3780 = vand.u32 %v178, 4294901760
    %v3781 = vsub.f32 %v178, %v3780
    %3782 = vmatpush1.msra.mxu0 %v3781
    %3783 = vmatprep.subr.mxu0 0.0
    %v3784 = vand.u32 %v179, 4294901760
    %v3785 = vsub.f32 %v179, %v3784
    %3786 = vmatpush1.msra.mxu0 %v3785
    %3787 = vmatprep.subr.mxu0 0.0
    %v3788 = vand.u32 %v180, 4294901760
    %v3789 = vsub.f32 %v180, %v3788
    %3790 = vmatpush1.msra.mxu0 %v3789
    %3791 = vmatprep.subr.mxu0 0.0
    %v3792 = vand.u32 %v181, 4294901760
    %v3793 = vsub.f32 %v181, %v3792
    %3794 = vmatpush1.msra.mxu0 %v3793
    %3795 = vmatprep.subr.mxu0 0.0
    %v3796 = vand.u32 %v182, 4294901760
    %v3797 = vsub.f32 %v182, %v3796
    %3798 = vmatpush1.msra.mxu0 %v3797
    %3799 = vmatprep.subr.mxu0 0.0
    %v3800 = vand.u32 %v183, 4294901760
    %v3801 = vsub.f32 %v183, %v3800
    %3802 = vmatpush1.msra.mxu0 %v3801
    %3803 = vmatprep.subr.mxu0 0.0
    %v3804 = vand.u32 %v184, 4294901760
    %v3805 = vsub.f32 %v184, %v3804
    %3806 = vmatpush1.msra.mxu0 %v3805
    %3807 = vmatprep.subr.mxu0 0.0
    %v3808 = vand.u32 %v185, 4294901760
    %v3809 = vsub.f32 %v185, %v3808
    %3810 = vmatpush1.msra.mxu0 %v3809
    %3811 = vmatprep.subr.mxu0 0.0
    %v3812 = vand.u32 %v186, 4294901760
    %v3813 = vsub.f32 %v186, %v3812
    %3814 = vmatpush1.msra.mxu0 %v3813
    %3815 = vmatprep.subr.mxu0 0.0
    %v3816 = vand.u32 %v187, 4294901760
    %v3817 = vsub.f32 %v187, %v3816
    %3818 = vmatpush1.msra.mxu0 %v3817
    %3819 = vmatprep.subr.mxu0 0.0
    %3820 = vmatpush1.msra.mxu0 0.0
    %3821 = vmatprep.subr.mxu0 0.0
    %3822 = vmatpush1.msra.mxu0 0.0
    %3823 = vmatprep.subr.mxu0 0.0
    %3824 = vmatpush1.msra.mxu0 0.0
    %3825 = vmatprep.subr.mxu0 0.0
    %3826 = vmatpush1.msra.mxu0 0.0
    %3827 = vmatprep.subr.mxu0 0.0
    %3828 = vmatpush1.msra.mxu0 0.0
    %3829 = vmatprep.subr.mxu0 0.0
    %3830 = vmatpush1.msra.mxu0 0.0
    %3831 = vmatprep.subr.mxu0 0.0
    %3832 = vmatpush1.msra.mxu0 0.0
    %3833 = vmatprep.subr.mxu0 0.0
    %3834 = vmatpush1.msra.mxu0 0.0
    %3835 = vmatprep.subr.mxu0 0.0
    %3836 = vmatpush1.msra.mxu0 0.0
    %3837 = vmatprep.subr.mxu0 0.0
    %3838 = vmatpush1.msra.mxu0 0.0
    %3839 = vmatprep.subr.mxu0 0.0
    %3840 = vmatpush1.msra.mxu0 0.0
    %3841 = vmatprep.subr.mxu0 0.0
    %3842 = vmatpush1.msra.mxu0 0.0
    %3843 = vmatprep.subr.mxu0 0.0
    %3844 = vmatpush1.msra.mxu0 0.0
    %3845 = vmatprep.subr.mxu0 0.0
    %3846 = vmatpush1.msra.mxu0 0.0
    %3847 = vmatprep.subr.mxu0 0.0
    %3848 = vmatpush1.msra.mxu0 0.0
    %3849 = vmatprep.subr.mxu0 0.0
    %3850 = vmatpush1.msra.mxu0 0.0
    %3851 = vmatprep.mubr.f32.mxu0 0.0
    %v3852 = vand.u32 %v3512, 4294901760
    %v3853 = vsub.f32 %v3512, %v3852
    %3854 = vmatmul.mubr.f32.gmra.mrb[0].mxu0 %v3853
    %v3855 = vpop.f32.mrb[0].mxu0
    %v3856 = vadd.f32 %v3752, %v3855
    %v3857 = vpop.f32.mrb[0].mxu0
    %3858 = vdwg.mxu0
    %3859 = vmatprep.subr.mxu0 0.0
    %v3860 = vand.u32 %v172, 4294901760
    %3861 = vmatpush1.msra.mxu0 %v3860
    %3862 = vmatprep.subr.mxu0 0.0
    %v3863 = vand.u32 %v173, 4294901760
    %3864 = vmatpush1.msra.mxu0 %v3863
    %3865 = vmatprep.subr.mxu0 0.0
    %v3866 = vand.u32 %v174, 4294901760
    %3867 = vmatpush1.msra.mxu0 %v3866
    %3868 = vmatprep.subr.mxu0 0.0
    %v3869 = vand.u32 %v175, 4294901760
    %3870 = vmatpush1.msra.mxu0 %v3869
    %3871 = vmatprep.subr.mxu0 0.0
    %v3872 = vand.u32 %v176, 4294901760
    %3873 = vmatpush1.msra.mxu0 %v3872
    %3874 = vmatprep.subr.mxu0 0.0
    %v3875 = vand.u32 %v177, 4294901760
    %3876 = vmatpush1.msra.mxu0 %v3875
    %3877 = vmatprep.subr.mxu0 0.0
    %v3878 = vand.u32 %v178, 4294901760
    %3879 = vmatpush1.msra.mxu0 %v3878
    %3880 = vmatprep.subr.mxu0 0.0
    %v3881 = vand.u32 %v179, 4294901760
    %3882 = vmatpush1.msra.mxu0 %v3881
    %3883 = vmatprep.subr.mxu0 0.0
    %v3884 = vand.u32 %v180, 4294901760
    %3885 = vmatpush1.msra.mxu0 %v3884
    %3886 = vmatprep.subr.mxu0 0.0
    %v3887 = vand.u32 %v181, 4294901760
    %3888 = vmatpush1.msra.mxu0 %v3887
    %3889 = vmatprep.subr.mxu0 0.0
    %v3890 = vand.u32 %v182, 4294901760
    %3891 = vmatpush1.msra.mxu0 %v3890
    %3892 = vmatprep.subr.mxu0 0.0
    %v3893 = vand.u32 %v183, 4294901760
    %3894 = vmatpush1.msra.mxu0 %v3893
    %3895 = vmatprep.subr.mxu0 0.0
    %v3896 = vand.u32 %v184, 4294901760
    %3897 = vmatpush1.msra.mxu0 %v3896
    %3898 = vmatprep.subr.mxu0 0.0
    %v3899 = vand.u32 %v185, 4294901760
    %3900 = vmatpush1.msra.mxu0 %v3899
    %3901 = vmatprep.subr.mxu0 0.0
    %v3902 = vand.u32 %v186, 4294901760
    %3903 = vmatpush1.msra.mxu0 %v3902
    %3904 = vmatprep.subr.mxu0 0.0
    %v3905 = vand.u32 %v187, 4294901760
    %3906 = vmatpush1.msra.mxu0 %v3905
    %3907 = vmatprep.subr.mxu0 0.0
    %3908 = vmatpush1.msra.mxu0 0.0
    %3909 = vmatprep.subr.mxu0 0.0
    %3910 = vmatpush1.msra.mxu0 0.0
    %3911 = vmatprep.subr.mxu0 0.0
    %3912 = vmatpush1.msra.mxu0 0.0
    %3913 = vmatprep.subr.mxu0 0.0
    %3914 = vmatpush1.msra.mxu0 0.0
    %3915 = vmatprep.subr.mxu0 0.0
    %3916 = vmatpush1.msra.mxu0 0.0
    %3917 = vmatprep.subr.mxu0 0.0
    %3918 = vmatpush1.msra.mxu0 0.0
    %3919 = vmatprep.subr.mxu0 0.0
    %3920 = vmatpush1.msra.mxu0 0.0
    %3921 = vmatprep.subr.mxu0 0.0
    %3922 = vmatpush1.msra.mxu0 0.0
    %3923 = vmatprep.subr.mxu0 0.0
    %3924 = vmatpush1.msra.mxu0 0.0
    %3925 = vmatprep.subr.mxu0 0.0
    %3926 = vmatpush1.msra.mxu0 0.0
    %3927 = vmatprep.subr.mxu0 0.0
    %3928 = vmatpush1.msra.mxu0 0.0
    %3929 = vmatprep.subr.mxu0 0.0
    %3930 = vmatpush1.msra.mxu0 0.0
    %3931 = vmatprep.subr.mxu0 0.0
    %3932 = vmatpush1.msra.mxu0 0.0
    %3933 = vmatprep.subr.mxu0 0.0
    %3934 = vmatpush1.msra.mxu0 0.0
    %3935 = vmatprep.subr.mxu0 0.0
    %3936 = vmatpush1.msra.mxu0 0.0
    %3937 = vmatprep.subr.mxu0 0.0
    %3938 = vmatpush1.msra.mxu0 0.0
    %3939 = vmatprep.mubr.f32.mxu0 0.0
    %v3940 = vand.u32 %v3512, 4294901760
    %v3941 = vsub.f32 %v3512, %v3940
    %v3942 = vand.u32 %v3941, 4294901760
    %3943 = vmatmul.mubr.f32.gmra.mrb[0].mxu0 %v3942
    %v3944 = vpop.f32.mrb[0].mxu0
    %v3945 = vadd.f32 %v3856, %v3944
    %v3946 = vpop.f32.mrb[0].mxu0
    %3947 = vdwg.mxu0
    %3948 = vmatprep.subr.mxu0 0.0
    %v3949 = vand.u32 %v172, 4294901760
    %v3950 = vsub.f32 %v172, %v3949
    %v3951 = vand.u32 %v3950, 4294901760
    %3952 = vmatpush1.msra.mxu0 %v3951
    %3953 = vmatprep.subr.mxu0 0.0
    %v3954 = vand.u32 %v173, 4294901760
    %v3955 = vsub.f32 %v173, %v3954
    %v3956 = vand.u32 %v3955, 4294901760
    %3957 = vmatpush1.msra.mxu0 %v3956
    %3958 = vmatprep.subr.mxu0 0.0
    %v3959 = vand.u32 %v174, 4294901760
    %v3960 = vsub.f32 %v174, %v3959
    %v3961 = vand.u32 %v3960, 4294901760
    %3962 = vmatpush1.msra.mxu0 %v3961
    %3963 = vmatprep.subr.mxu0 0.0
    %v3964 = vand.u32 %v175, 4294901760
    %v3965 = vsub.f32 %v175, %v3964
    %v3966 = vand.u32 %v3965, 4294901760
    %3967 = vmatpush1.msra.mxu0 %v3966
    %3968 = vmatprep.subr.mxu0 0.0
    %v3969 = vand.u32 %v176, 4294901760
    %v3970 = vsub.f32 %v176, %v3969
    %v3971 = vand.u32 %v3970, 4294901760
    %3972 = vmatpush1.msra.mxu0 %v3971
    %3973 = vmatprep.subr.mxu0 0.0
    %v3974 = vand.u32 %v177, 4294901760
    %v3975 = vsub.f32 %v177, %v3974
    %v3976 = vand.u32 %v3975, 4294901760
    %3977 = vmatpush1.msra.mxu0 %v3976
    %3978 = vmatprep.subr.mxu0 0.0
    %v3979 = vand.u32 %v178, 4294901760
    %v3980 = vsub.f32 %v178, %v3979
    %v3981 = vand.u32 %v3980, 4294901760
    %3982 = vmatpush1.msra.mxu0 %v3981
    %3983 = vmatprep.subr.mxu0 0.0
    %v3984 = vand.u32 %v179, 4294901760
    %v3985 = vsub.f32 %v179, %v3984
    %v3986 = vand.u32 %v3985, 4294901760
    %3987 = vmatpush1.msra.mxu0 %v3986
    %3988 = vmatprep.subr.mxu0 0.0
    %v3989 = vand.u32 %v180, 4294901760
    %v3990 = vsub.f32 %v180, %v3989
    %v3991 = vand.u32 %v3990, 4294901760
    %3992 = vmatpush1.msra.mxu0 %v3991
    %3993 = vmatprep.subr.mxu0 0.0
    %v3994 = vand.u32 %v181, 4294901760
    %v3995 = vsub.f32 %v181, %v3994
    %v3996 = vand.u32 %v3995, 4294901760
    %3997 = vmatpush1.msra.mxu0 %v3996
    %3998 = vmatprep.subr.mxu0 0.0
    %v3999 = vand.u32 %v182, 4294901760
    %v4000 = vsub.f32 %v182, %v3999
    %v4001 = vand.u32 %v4000, 4294901760
    %4002 = vmatpush1.msra.mxu0 %v4001
    %4003 = vmatprep.subr.mxu0 0.0
    %v4004 = vand.u32 %v183, 4294901760
    %v4005 = vsub.f32 %v183, %v4004
    %v4006 = vand.u32 %v4005, 4294901760
    %4007 = vmatpush1.msra.mxu0 %v4006
    %4008 = vmatprep.subr.mxu0 0.0
    %v4009 = vand.u32 %v184, 4294901760
    %v4010 = vsub.f32 %v184, %v4009
    %v4011 = vand.u32 %v4010, 4294901760
    %4012 = vmatpush1.msra.mxu0 %v4011
    %4013 = vmatprep.subr.mxu0 0.0
    %v4014 = vand.u32 %v185, 4294901760
    %v4015 = vsub.f32 %v185, %v4014
    %v4016 = vand.u32 %v4015, 4294901760
    %4017 = vmatpush1.msra.mxu0 %v4016
    %4018 = vmatprep.subr.mxu0 0.0
    %v4019 = vand.u32 %v186, 4294901760
    %v4020 = vsub.f32 %v186, %v4019
    %v4021 = vand.u32 %v4020, 4294901760
    %4022 = vmatpush1.msra.mxu0 %v4021
    %4023 = vmatprep.subr.mxu0 0.0
    %v4024 = vand.u32 %v187, 4294901760
    %v4025 = vsub.f32 %v187, %v4024
    %v4026 = vand.u32 %v4025, 4294901760
    %4027 = vmatpush1.msra.mxu0 %v4026
    %4028 = vmatprep.subr.mxu0 0.0
    %4029 = vmatpush1.msra.mxu0 0.0
    %4030 = vmatprep.subr.mxu0 0.0
    %4031 = vmatpush1.msra.mxu0 0.0
    %4032 = vmatprep.subr.mxu0 0.0
    %4033 = vmatpush1.msra.mxu0 0.0
    %4034 = vmatprep.subr.mxu0 0.0
    %4035 = vmatpush1.msra.mxu0 0.0
    %4036 = vmatprep.subr.mxu0 0.0
    %4037 = vmatpush1.msra.mxu0 0.0
    %4038 = vmatprep.subr.mxu0 0.0
    %4039 = vmatpush1.msra.mxu0 0.0
    %4040 = vmatprep.subr.mxu0 0.0
    %4041 = vmatpush1.msra.mxu0 0.0
    %4042 = vmatprep.subr.mxu0 0.0
    %4043 = vmatpush1.msra.mxu0 0.0
    %4044 = vmatprep.subr.mxu0 0.0
    %4045 = vmatpush1.msra.mxu0 0.0
    %4046 = vmatprep.subr.mxu0 0.0
    %4047 = vmatpush1.msra.mxu0 0.0
    %4048 = vmatprep.subr.mxu0 0.0
    %4049 = vmatpush1.msra.mxu0 0.0
    %4050 = vmatprep.subr.mxu0 0.0
    %4051 = vmatpush1.msra.mxu0 0.0
    %4052 = vmatprep.subr.mxu0 0.0
    %4053 = vmatpush1.msra.mxu0 0.0
    %4054 = vmatprep.subr.mxu0 0.0
    %4055 = vmatpush1.msra.mxu0 0.0
    %4056 = vmatprep.subr.mxu0 0.0
    %4057 = vmatpush1.msra.mxu0 0.0
    %4058 = vmatprep.subr.mxu0 0.0
    %4059 = vmatpush1.msra.mxu0 0.0
    %4060 = vmatprep.mubr.f32.mxu0 0.0
    %v4061 = vand.u32 %v3512, 4294901760
    %4062 = vmatmul.mubr.f32.gmra.mrb[0].mxu0 %v4061
    %v4063 = vpop.f32.mrb[0].mxu0
    %v4064 = vadd.f32 %v3945, %v4063
    %v4065 = vpop.f32.mrb[0].mxu0
    %4066 = vdwg.mxu0
    %4067 = vmatprep.subr.mxu0 0.0
    %v4068 = vand.u32 %v172, 4294901760
    %4069 = vmatpush1.msra.mxu0 %v4068
    %4070 = vmatprep.subr.mxu0 0.0
    %v4071 = vand.u32 %v173, 4294901760
    %4072 = vmatpush1.msra.mxu0 %v4071
    %4073 = vmatprep.subr.mxu0 0.0
    %v4074 = vand.u32 %v174, 4294901760
    %4075 = vmatpush1.msra.mxu0 %v4074
    %4076 = vmatprep.subr.mxu0 0.0
    %v4077 = vand.u32 %v175, 4294901760
    %4078 = vmatpush1.msra.mxu0 %v4077
    %4079 = vmatprep.subr.mxu0 0.0
    %v4080 = vand.u32 %v176, 4294901760
    %4081 = vmatpush1.msra.mxu0 %v4080
    %4082 = vmatprep.subr.mxu0 0.0
    %v4083 = vand.u32 %v177, 4294901760
    %4084 = vmatpush1.msra.mxu0 %v4083
    %4085 = vmatprep.subr.mxu0 0.0
    %v4086 = vand.u32 %v178, 4294901760
    %4087 = vmatpush1.msra.mxu0 %v4086
    %4088 = vmatprep.subr.mxu0 0.0
    %v4089 = vand.u32 %v179, 4294901760
    %4090 = vmatpush1.msra.mxu0 %v4089
    %4091 = vmatprep.subr.mxu0 0.0
    %v4092 = vand.u32 %v180, 4294901760
    %4093 = vmatpush1.msra.mxu0 %v4092
    %4094 = vmatprep.subr.mxu0 0.0
    %v4095 = vand.u32 %v181, 4294901760
    %4096 = vmatpush1.msra.mxu0 %v4095
    %4097 = vmatprep.subr.mxu0 0.0
    %v4098 = vand.u32 %v182, 4294901760
    %4099 = vmatpush1.msra.mxu0 %v4098
    %4100 = vmatprep.subr.mxu0 0.0
    %v4101 = vand.u32 %v183, 4294901760
    %4102 = vmatpush1.msra.mxu0 %v4101
    %4103 = vmatprep.subr.mxu0 0.0
    %v4104 = vand.u32 %v184, 4294901760
    %4105 = vmatpush1.msra.mxu0 %v4104
    %4106 = vmatprep.subr.mxu0 0.0
    %v4107 = vand.u32 %v185, 4294901760
    %4108 = vmatpush1.msra.mxu0 %v4107
    %4109 = vmatprep.subr.mxu0 0.0
    %v4110 = vand.u32 %v186, 4294901760
    %4111 = vmatpush1.msra.mxu0 %v4110
    %4112 = vmatprep.subr.mxu0 0.0
    %v4113 = vand.u32 %v187, 4294901760
    %4114 = vmatpush1.msra.mxu0 %v4113
    %4115 = vmatprep.subr.mxu0 0.0
    %4116 = vmatpush1.msra.mxu0 0.0
    %4117 = vmatprep.subr.mxu0 0.0
    %4118 = vmatpush1.msra.mxu0 0.0
    %4119 = vmatprep.subr.mxu0 0.0
    %4120 = vmatpush1.msra.mxu0 0.0
    %4121 = vmatprep.subr.mxu0 0.0
    %4122 = vmatpush1.msra.mxu0 0.0
    %4123 = vmatprep.subr.mxu0 0.0
    %4124 = vmatpush1.msra.mxu0 0.0
    %4125 = vmatprep.subr.mxu0 0.0
    %4126 = vmatpush1.msra.mxu0 0.0
    %4127 = vmatprep.subr.mxu0 0.0
    %4128 = vmatpush1.msra.mxu0 0.0
    %4129 = vmatprep.subr.mxu0 0.0
    %4130 = vmatpush1.msra.mxu0 0.0
    %4131 = vmatprep.subr.mxu0 0.0
    %4132 = vmatpush1.msra.mxu0 0.0
    %4133 = vmatprep.subr.mxu0 0.0
    %4134 = vmatpush1.msra.mxu0 0.0
    %4135 = vmatprep.subr.mxu0 0.0
    %4136 = vmatpush1.msra.mxu0 0.0
    %4137 = vmatprep.subr.mxu0 0.0
    %4138 = vmatpush1.msra.mxu0 0.0
    %4139 = vmatprep.subr.mxu0 0.0
    %4140 = vmatpush1.msra.mxu0 0.0
    %4141 = vmatprep.subr.mxu0 0.0
    %4142 = vmatpush1.msra.mxu0 0.0
    %4143 = vmatprep.subr.mxu0 0.0
    %4144 = vmatpush1.msra.mxu0 0.0
    %4145 = vmatprep.subr.mxu0 0.0
    %4146 = vmatpush1.msra.mxu0 0.0
    %4147 = vmatprep.mubr.f32.mxu0 0.0
    %v4148 = vand.u32 %v3512, 4294901760
    %4149 = vmatmul.mubr.f32.gmra.mrb[0].mxu0 %v4148
    %v4150 = vpop.f32.mrb[0].mxu0
    %v4151 = vadd.f32 %v4064, %v4150
    %v4152 = vpop.f32.mrb[0].mxu0
    %4153 = vdwg.mxu0
    %v4154 = vlog2.pop %v4151
    %v4155 = vmul.f32 %v4154, 0.6931472
    %v4156 = vadd.f32 %v4155, %v3509
    %v4157 = vadd.f32 %v4156, %v845
    %v4158 = vadd.f32 %v4157, %v3505
    %vm4159 = vcmp.gt.f32.partialorder %v3507, 0.5
    %v4160 = vsel %vm4159, 1, 0
    %4161 = vset.pattern.permute.xlu0 0
    %4162 = vperm.xlu0 %4161, %v4160
    %v4163 = vpop.permute.xlu0 %4162
    %vm4164 = vcmp.eq.s32.totalorder %v4163, 1
    %v4165 = vsel %vm4164, %v4158, %v3503
    %s4166 = scalar_lea.vmem %s0, 48
    %v4167 = vld [vmem:[%s4166] sm:$0xff]
    %s4168 = scalar_lea.vmem %s1, 48
    %v4169 = vld [vmem:[%s4168] sm:$0xff]
    %4170 = vmax.xlane.f32.xlu0 %v4165
    %v4171 = vpop.xlane.xlu0 %4170
    %v4172 = vsub.f32 %v4165, %v4171
    %v4173 = vmul.f32 %v4172, 1.442695
    %v4174 = vpow.pop %v4173
    %4175 = vmatprep.subr.mxu0 0.0
    %v4176 = vand.u32 %v172, 4294901760
    %4177 = vmatpush1.msra.mxu0 %v4176
    %4178 = vmatprep.subr.mxu0 0.0
    %v4179 = vand.u32 %v173, 4294901760
    %4180 = vmatpush1.msra.mxu0 %v4179
    %4181 = vmatprep.subr.mxu0 0.0
    %v4182 = vand.u32 %v174, 4294901760
    %4183 = vmatpush1.msra.mxu0 %v4182
    %4184 = vmatprep.subr.mxu0 0.0
    %v4185 = vand.u32 %v175, 4294901760
    %4186 = vmatpush1.msra.mxu0 %v4185
    %4187 = vmatprep.subr.mxu0 0.0
    %v4188 = vand.u32 %v176, 4294901760
    %4189 = vmatpush1.msra.mxu0 %v4188
    %4190 = vmatprep.subr.mxu0 0.0
    %v4191 = vand.u32 %v177, 4294901760
    %4192 = vmatpush1.msra.mxu0 %v4191
    %4193 = vmatprep.subr.mxu0 0.0
    %v4194 = vand.u32 %v178, 4294901760
    %4195 = vmatpush1.msra.mxu0 %v4194
    %4196 = vmatprep.subr.mxu0 0.0
    %v4197 = vand.u32 %v179, 4294901760
    %4198 = vmatpush1.msra.mxu0 %v4197
    %4199 = vmatprep.subr.mxu0 0.0
    %v4200 = vand.u32 %v180, 4294901760
    %4201 = vmatpush1.msra.mxu0 %v4200
    %4202 = vmatprep.subr.mxu0 0.0
    %v4203 = vand.u32 %v181, 4294901760
    %4204 = vmatpush1.msra.mxu0 %v4203
    %4205 = vmatprep.subr.mxu0 0.0
    %v4206 = vand.u32 %v182, 4294901760
    %4207 = vmatpush1.msra.mxu0 %v4206
    %4208 = vmatprep.subr.mxu0 0.0
    %v4209 = vand.u32 %v183, 4294901760
    %4210 = vmatpush1.msra.mxu0 %v4209
    %4211 = vmatprep.subr.mxu0 0.0
    %v4212 = vand.u32 %v184, 4294901760
    %4213 = vmatpush1.msra.mxu0 %v4212
    %4214 = vmatprep.subr.mxu0 0.0
    %v4215 = vand.u32 %v185, 4294901760
    %4216 = vmatpush1.msra.mxu0 %v4215
    %4217 = vmatprep.subr.mxu0 0.0
    %v4218 = vand.u32 %v186, 4294901760
    %4219 = vmatpush1.msra.mxu0 %v4218
    %4220 = vmatprep.subr.mxu0 0.0
    %v4221 = vand.u32 %v187, 4294901760
    %4222 = vmatpush1.msra.mxu0 %v4221
    %4223 = vmatprep.subr.mxu0 0.0
    %4224 = vmatpush1.msra.mxu0 0.0
    %4225 = vmatprep.subr.mxu0 0.0
    %4226 = vmatpush1.msra.mxu0 0.0
    %4227 = vmatprep.subr.mxu0 0.0
    %4228 = vmatpush1.msra.mxu0 0.0
    %4229 = vmatprep.subr.mxu0 0.0
    %4230 = vmatpush1.msra.mxu0 0.0
    %4231 = vmatprep.subr.mxu0 0.0
    %4232 = vmatpush1.msra.mxu0 0.0
    %4233 = vmatprep.subr.mxu0 0.0
    %4234 = vmatpush1.msra.mxu0 0.0
    %4235 = vmatprep.subr.mxu0 0.0
    %4236 = vmatpush1.msra.mxu0 0.0
    %4237 = vmatprep.subr.mxu0 0.0
    %4238 = vmatpush1.msra.mxu0 0.0
    %4239 = vmatprep.subr.mxu0 0.0
    %4240 = vmatpush1.msra.mxu0 0.0
    %4241 = vmatprep.subr.mxu0 0.0
    %4242 = vmatpush1.msra.mxu0 0.0
    %4243 = vmatprep.subr.mxu0 0.0
    %4244 = vmatpush1.msra.mxu0 0.0
    %4245 = vmatprep.subr.mxu0 0.0
    %4246 = vmatpush1.msra.mxu0 0.0
    %4247 = vmatprep.subr.mxu0 0.0
    %4248 = vmatpush1.msra.mxu0 0.0
    %4249 = vmatprep.subr.mxu0 0.0
    %4250 = vmatpush1.msra.mxu0 0.0
    %4251 = vmatprep.subr.mxu0 0.0
    %4252 = vmatpush1.msra.mxu0 0.0
    %4253 = vmatprep.subr.mxu0 0.0
    %4254 = vmatpush1.msra.mxu0 0.0
    %4255 = vmatprep.mubr.f32.mxu0 0.0
    %v4256 = vand.u32 %v4174, 4294901760
    %v4257 = vsub.f32 %v4174, %v4256
    %v4258 = vand.u32 %v4257, 4294901760
    %v4259 = vsub.f32 %v4257, %v4258
    %v4260 = vand.u32 %v4259, 4294901760
    %4261 = vmatmul.mubr.f32.gmra.mrb[0].mxu0 %v4260
    %v4262 = vpop.f32.mrb[0].mxu0
    %v4263 = vadd.f32 0.0, %v4262
    %v4264 = vpop.f32.mrb[0].mxu0
    %4265 = vdwg.mxu0
    %4266 = vmatprep.subr.mxu0 0.0
    %v4267 = vand.u32 %v172, 4294901760
    %v4268 = vsub.f32 %v172, %v4267
    %v4269 = vand.u32 %v4268, 4294901760
    %v4270 = vsub.f32 %v4268, %v4269
    %v4271 = vand.u32 %v4270, 4294901760
    %4272 = vmatpush1.msra.mxu0 %v4271
    %4273 = vmatprep.subr.mxu0 0.0
    %v4274 = vand.u32 %v173, 4294901760
    %v4275 = vsub.f32 %v173, %v4274
    %v4276 = vand.u32 %v4275, 4294901760
    %v4277 = vsub.f32 %v4275, %v4276
    %v4278 = vand.u32 %v4277, 4294901760
    %4279 = vmatpush1.msra.mxu0 %v4278
    %4280 = vmatprep.subr.mxu0 0.0
    %v4281 = vand.u32 %v174, 4294901760
    %v4282 = vsub.f32 %v174, %v4281
    %v4283 = vand.u32 %v4282, 4294901760
    %v4284 = vsub.f32 %v4282, %v4283
    %v4285 = vand.u32 %v4284, 4294901760
    %4286 = vmatpush1.msra.mxu0 %v4285
    %4287 = vmatprep.subr.mxu0 0.0
    %v4288 = vand.u32 %v175, 4294901760
    %v4289 = vsub.f32 %v175, %v4288
    %v4290 = vand.u32 %v4289, 4294901760
    %v4291 = vsub.f32 %v4289, %v4290
    %v4292 = vand.u32 %v4291, 4294901760
    %4293 = vmatpush1.msra.mxu0 %v4292
    %4294 = vmatprep.subr.mxu0 0.0
    %v4295 = vand.u32 %v176, 4294901760
    %v4296 = vsub.f32 %v176, %v4295
    %v4297 = vand.u32 %v4296, 4294901760
    %v4298 = vsub.f32 %v4296, %v4297
    %v4299 = vand.u32 %v4298, 4294901760
    %4300 = vmatpush1.msra.mxu0 %v4299
    %4301 = vmatprep.subr.mxu0 0.0
    %v4302 = vand.u32 %v177, 4294901760
    %v4303 = vsub.f32 %v177, %v4302
    %v4304 = vand.u32 %v4303, 4294901760
    %v4305 = vsub.f32 %v4303, %v4304
    %v4306 = vand.u32 %v4305, 4294901760
    %4307 = vmatpush1.msra.mxu0 %v4306
    %4308 = vmatprep.subr.mxu0 0.0
    %v4309 = vand.u32 %v178, 4294901760
    %v4310 = vsub.f32 %v178, %v4309
    %v4311 = vand.u32 %v4310, 4294901760
    %v4312 = vsub.f32 %v4310, %v4311
    %v4313 = vand.u32 %v4312, 4294901760
    %4314 = vmatpush1.msra.mxu0 %v4313
    %4315 = vmatprep.subr.mxu0 0.0
    %v4316 = vand.u32 %v179, 4294901760
    %v4317 = vsub.f32 %v179, %v4316
    %v4318 = vand.u32 %v4317, 4294901760
    %v4319 = vsub.f32 %v4317, %v4318
    %v4320 = vand.u32 %v4319, 4294901760
    %4321 = vmatpush1.msra.mxu0 %v4320
    %4322 = vmatprep.subr.mxu0 0.0
    %v4323 = vand.u32 %v180, 4294901760
    %v4324 = vsub.f32 %v180, %v4323
    %v4325 = vand.u32 %v4324, 4294901760
    %v4326 = vsub.f32 %v4324, %v4325
    %v4327 = vand.u32 %v4326, 4294901760
    %4328 = vmatpush1.msra.mxu0 %v4327
    %4329 = vmatprep.subr.mxu0 0.0
    %v4330 = vand.u32 %v181, 4294901760
    %v4331 = vsub.f32 %v181, %v4330
    %v4332 = vand.u32 %v4331, 4294901760
    %v4333 = vsub.f32 %v4331, %v4332
    %v4334 = vand.u32 %v4333, 4294901760
    %4335 = vmatpush1.msra.mxu0 %v4334
    %4336 = vmatprep.subr.mxu0 0.0
    %v4337 = vand.u32 %v182, 4294901760
    %v4338 = vsub.f32 %v182, %v4337
    %v4339 = vand.u32 %v4338, 4294901760
    %v4340 = vsub.f32 %v4338, %v4339
    %v4341 = vand.u32 %v4340, 4294901760
    %4342 = vmatpush1.msra.mxu0 %v4341
    %4343 = vmatprep.subr.mxu0 0.0
    %v4344 = vand.u32 %v183, 4294901760
    %v4345 = vsub.f32 %v183, %v4344
    %v4346 = vand.u32 %v4345, 4294901760
    %v4347 = vsub.f32 %v4345, %v4346
    %v4348 = vand.u32 %v4347, 4294901760
    %4349 = vmatpush1.msra.mxu0 %v4348
    %4350 = vmatprep.subr.mxu0 0.0
    %v4351 = vand.u32 %v184, 4294901760
    %v4352 = vsub.f32 %v184, %v4351
    %v4353 = vand.u32 %v4352, 4294901760
    %v4354 = vsub.f32 %v4352, %v4353
    %v4355 = vand.u32 %v4354, 4294901760
    %4356 = vmatpush1.msra.mxu0 %v4355
    %4357 = vmatprep.subr.mxu0 0.0
    %v4358 = vand.u32 %v185, 4294901760
    %v4359 = vsub.f32 %v185, %v4358
    %v4360 = vand.u32 %v4359, 4294901760
    %v4361 = vsub.f32 %v4359, %v4360
    %v4362 = vand.u32 %v4361, 4294901760
    %4363 = vmatpush1.msra.mxu0 %v4362
    %4364 = vmatprep.subr.mxu0 0.0
    %v4365 = vand.u32 %v186, 4294901760
    %v4366 = vsub.f32 %v186, %v4365
    %v4367 = vand.u32 %v4366, 4294901760
    %v4368 = vsub.f32 %v4366, %v4367
    %v4369 = vand.u32 %v4368, 4294901760
    %4370 = vmatpush1.msra.mxu0 %v4369
    %4371 = vmatprep.subr.mxu0 0.0
    %v4372 = vand.u32 %v187, 4294901760
    %v4373 = vsub.f32 %v187, %v4372
    %v4374 = vand.u32 %v4373, 4294901760
    %v4375 = vsub.f32 %v4373, %v4374
    %v4376 = vand.u32 %v4375, 4294901760
    %4377 = vmatpush1.msra.mxu0 %v4376
    %4378 = vmatprep.subr.mxu0 0.0
    %4379 = vmatpush1.msra.mxu0 0.0
    %4380 = vmatprep.subr.mxu0 0.0
    %4381 = vmatpush1.msra.mxu0 0.0
    %4382 = vmatprep.subr.mxu0 0.0
    %4383 = vmatpush1.msra.mxu0 0.0
    %4384 = vmatprep.subr.mxu0 0.0
    %4385 = vmatpush1.msra.mxu0 0.0
    %4386 = vmatprep.subr.mxu0 0.0
    %4387 = vmatpush1.msra.mxu0 0.0
    %4388 = vmatprep.subr.mxu0 0.0
    %4389 = vmatpush1.msra.mxu0 0.0
    %4390 = vmatprep.subr.mxu0 0.0
    %4391 = vmatpush1.msra.mxu0 0.0
    %4392 = vmatprep.subr.mxu0 0.0
    %4393 = vmatpush1.msra.mxu0 0.0
    %4394 = vmatprep.subr.mxu0 0.0
    %4395 = vmatpush1.msra.mxu0 0.0
    %4396 = vmatprep.subr.mxu0 0.0
    %4397 = vmatpush1.msra.mxu0 0.0
    %4398 = vmatprep.subr.mxu0 0.0
    %4399 = vmatpush1.msra.mxu0 0.0
    %4400 = vmatprep.subr.mxu0 0.0
    %4401 = vmatpush1.msra.mxu0 0.0
    %4402 = vmatprep.subr.mxu0 0.0
    %4403 = vmatpush1.msra.mxu0 0.0
    %4404 = vmatprep.subr.mxu0 0.0
    %4405 = vmatpush1.msra.mxu0 0.0
    %4406 = vmatprep.subr.mxu0 0.0
    %4407 = vmatpush1.msra.mxu0 0.0
    %4408 = vmatprep.subr.mxu0 0.0
    %4409 = vmatpush1.msra.mxu0 0.0
    %4410 = vmatprep.mubr.f32.mxu0 0.0
    %v4411 = vand.u32 %v4174, 4294901760
    %4412 = vmatmul.mubr.f32.gmra.mrb[0].mxu0 %v4411
    %v4413 = vpop.f32.mrb[0].mxu0
    %v4414 = vadd.f32 %v4263, %v4413
    %v4415 = vpop.f32.mrb[0].mxu0
    %4416 = vdwg.mxu0
    %4417 = vmatprep.subr.mxu0 0.0
    %v4418 = vand.u32 %v172, 4294901760
    %v4419 = vsub.f32 %v172, %v4418
    %4420 = vmatpush1.msra.mxu0 %v4419
    %4421 = vmatprep.subr.mxu0 0.0
    %v4422 = vand.u32 %v173, 4294901760
    %v4423 = vsub.f32 %v173, %v4422
    %4424 = vmatpush1.msra.mxu0 %v4423
    %4425 = vmatprep.subr.mxu0 0.0
    %v4426 = vand.u32 %v174, 4294901760
    %v4427 = vsub.f32 %v174, %v4426
    %4428 = vmatpush1.msra.mxu0 %v4427
    %4429 = vmatprep.subr.mxu0 0.0
    %v4430 = vand.u32 %v175, 4294901760
    %v4431 = vsub.f32 %v175, %v4430
    %4432 = vmatpush1.msra.mxu0 %v4431
    %4433 = vmatprep.subr.mxu0 0.0
    %v4434 = vand.u32 %v176, 4294901760
    %v4435 = vsub.f32 %v176, %v4434
    %4436 = vmatpush1.msra.mxu0 %v4435
    %4437 = vmatprep.subr.mxu0 0.0
    %v4438 = vand.u32 %v177, 4294901760
    %v4439 = vsub.f32 %v177, %v4438
    %4440 = vmatpush1.msra.mxu0 %v4439
    %4441 = vmatprep.subr.mxu0 0.0
    %v4442 = vand.u32 %v178, 4294901760
    %v4443 = vsub.f32 %v178, %v4442
    %4444 = vmatpush1.msra.mxu0 %v4443
    %4445 = vmatprep.subr.mxu0 0.0
    %v4446 = vand.u32 %v179, 4294901760
    %v4447 = vsub.f32 %v179, %v4446
    %4448 = vmatpush1.msra.mxu0 %v4447
    %4449 = vmatprep.subr.mxu0 0.0
    %v4450 = vand.u32 %v180, 4294901760
    %v4451 = vsub.f32 %v180, %v4450
    %4452 = vmatpush1.msra.mxu0 %v4451
    %4453 = vmatprep.subr.mxu0 0.0
    %v4454 = vand.u32 %v181, 4294901760
    %v4455 = vsub.f32 %v181, %v4454
    %4456 = vmatpush1.msra.mxu0 %v4455
    %4457 = vmatprep.subr.mxu0 0.0
    %v4458 = vand.u32 %v182, 4294901760
    %v4459 = vsub.f32 %v182, %v4458
    %4460 = vmatpush1.msra.mxu0 %v4459
    %4461 = vmatprep.subr.mxu0 0.0
    %v4462 = vand.u32 %v183, 4294901760
    %v4463 = vsub.f32 %v183, %v4462
    %4464 = vmatpush1.msra.mxu0 %v4463
    %4465 = vmatprep.subr.mxu0 0.0
    %v4466 = vand.u32 %v184, 4294901760
    %v4467 = vsub.f32 %v184, %v4466
    %4468 = vmatpush1.msra.mxu0 %v4467
    %4469 = vmatprep.subr.mxu0 0.0
    %v4470 = vand.u32 %v185, 4294901760
    %v4471 = vsub.f32 %v185, %v4470
    %4472 = vmatpush1.msra.mxu0 %v4471
    %4473 = vmatprep.subr.mxu0 0.0
    %v4474 = vand.u32 %v186, 4294901760
    %v4475 = vsub.f32 %v186, %v4474
    %4476 = vmatpush1.msra.mxu0 %v4475
    %4477 = vmatprep.subr.mxu0 0.0
    %v4478 = vand.u32 %v187, 4294901760
    %v4479 = vsub.f32 %v187, %v4478
    %4480 = vmatpush1.msra.mxu0 %v4479
    %4481 = vmatprep.subr.mxu0 0.0
    %4482 = vmatpush1.msra.mxu0 0.0
    %4483 = vmatprep.subr.mxu0 0.0
    %4484 = vmatpush1.msra.mxu0 0.0
    %4485 = vmatprep.subr.mxu0 0.0
    %4486 = vmatpush1.msra.mxu0 0.0
    %4487 = vmatprep.subr.mxu0 0.0
    %4488 = vmatpush1.msra.mxu0 0.0
    %4489 = vmatprep.subr.mxu0 0.0
    %4490 = vmatpush1.msra.mxu0 0.0
    %4491 = vmatprep.subr.mxu0 0.0
    %4492 = vmatpush1.msra.mxu0 0.0
    %4493 = vmatprep.subr.mxu0 0.0
    %4494 = vmatpush1.msra.mxu0 0.0
    %4495 = vmatprep.subr.mxu0 0.0
    %4496 = vmatpush1.msra.mxu0 0.0
    %4497 = vmatprep.subr.mxu0 0.0
    %4498 = vmatpush1.msra.mxu0 0.0
    %4499 = vmatprep.subr.mxu0 0.0
    %4500 = vmatpush1.msra.mxu0 0.0
    %4501 = vmatprep.subr.mxu0 0.0
    %4502 = vmatpush1.msra.mxu0 0.0
    %4503 = vmatprep.subr.mxu0 0.0
    %4504 = vmatpush1.msra.mxu0 0.0
    %4505 = vmatprep.subr.mxu0 0.0
    %4506 = vmatpush1.msra.mxu0 0.0
    %4507 = vmatprep.subr.mxu0 0.0
    %4508 = vmatpush1.msra.mxu0 0.0
    %4509 = vmatprep.subr.mxu0 0.0
    %4510 = vmatpush1.msra.mxu0 0.0
    %4511 = vmatprep.subr.mxu0 0.0
    %4512 = vmatpush1.msra.mxu0 0.0
    %4513 = vmatprep.mubr.f32.mxu0 0.0
    %v4514 = vand.u32 %v4174, 4294901760
    %v4515 = vsub.f32 %v4174, %v4514
    %4516 = vmatmul.mubr.f32.gmra.mrb[0].mxu0 %v4515
    %v4517 = vpop.f32.mrb[0].mxu0
    %v4518 = vadd.f32 %v4414, %v4517
    %v4519 = vpop.f32.mrb[0].mxu0
    %4520 = vdwg.mxu0
    %4521 = vmatprep.subr.mxu0 0.0
    %v4522 = vand.u32 %v172, 4294901760
    %4523 = vmatpush1.msra.mxu0 %v4522
    %4524 = vmatprep.subr.mxu0 0.0
    %v4525 = vand.u32 %v173, 4294901760
    %4526 = vmatpush1.msra.mxu0 %v4525
    %4527 = vmatprep.subr.mxu0 0.0
    %v4528 = vand.u32 %v174, 4294901760
    %4529 = vmatpush1.msra.mxu0 %v4528
    %4530 = vmatprep.subr.mxu0 0.0
    %v4531 = vand.u32 %v175, 4294901760
    %4532 = vmatpush1.msra.mxu0 %v4531
    %4533 = vmatprep.subr.mxu0 0.0
    %v4534 = vand.u32 %v176, 4294901760
    %4535 = vmatpush1.msra.mxu0 %v4534
    %4536 = vmatprep.subr.mxu0 0.0
    %v4537 = vand.u32 %v177, 4294901760
    %4538 = vmatpush1.msra.mxu0 %v4537
    %4539 = vmatprep.subr.mxu0 0.0
    %v4540 = vand.u32 %v178, 4294901760
    %4541 = vmatpush1.msra.mxu0 %v4540
    %4542 = vmatprep.subr.mxu0 0.0
    %v4543 = vand.u32 %v179, 4294901760
    %4544 = vmatpush1.msra.mxu0 %v4543
    %4545 = vmatprep.subr.mxu0 0.0
    %v4546 = vand.u32 %v180, 4294901760
    %4547 = vmatpush1.msra.mxu0 %v4546
    %4548 = vmatprep.subr.mxu0 0.0
    %v4549 = vand.u32 %v181, 4294901760
    %4550 = vmatpush1.msra.mxu0 %v4549
    %4551 = vmatprep.subr.mxu0 0.0
    %v4552 = vand.u32 %v182, 4294901760
    %4553 = vmatpush1.msra.mxu0 %v4552
    %4554 = vmatprep.subr.mxu0 0.0
    %v4555 = vand.u32 %v183, 4294901760
    %4556 = vmatpush1.msra.mxu0 %v4555
    %4557 = vmatprep.subr.mxu0 0.0
    %v4558 = vand.u32 %v184, 4294901760
    %4559 = vmatpush1.msra.mxu0 %v4558
    %4560 = vmatprep.subr.mxu0 0.0
    %v4561 = vand.u32 %v185, 4294901760
    %4562 = vmatpush1.msra.mxu0 %v4561
    %4563 = vmatprep.subr.mxu0 0.0
    %v4564 = vand.u32 %v186, 4294901760
    %4565 = vmatpush1.msra.mxu0 %v4564
    %4566 = vmatprep.subr.mxu0 0.0
    %v4567 = vand.u32 %v187, 4294901760
    %4568 = vmatpush1.msra.mxu0 %v4567
    %4569 = vmatprep.subr.mxu0 0.0
    %4570 = vmatpush1.msra.mxu0 0.0
    %4571 = vmatprep.subr.mxu0 0.0
    %4572 = vmatpush1.msra.mxu0 0.0
    %4573 = vmatprep.subr.mxu0 0.0
    %4574 = vmatpush1.msra.mxu0 0.0
    %4575 = vmatprep.subr.mxu0 0.0
    %4576 = vmatpush1.msra.mxu0 0.0
    %4577 = vmatprep.subr.mxu0 0.0
    %4578 = vmatpush1.msra.mxu0 0.0
    %4579 = vmatprep.subr.mxu0 0.0
    %4580 = vmatpush1.msra.mxu0 0.0
    %4581 = vmatprep.subr.mxu0 0.0
    %4582 = vmatpush1.msra.mxu0 0.0
    %4583 = vmatprep.subr.mxu0 0.0
    %4584 = vmatpush1.msra.mxu0 0.0
    %4585 = vmatprep.subr.mxu0 0.0
    %4586 = vmatpush1.msra.mxu0 0.0
    %4587 = vmatprep.subr.mxu0 0.0
    %4588 = vmatpush1.msra.mxu0 0.0
    %4589 = vmatprep.subr.mxu0 0.0
    %4590 = vmatpush1.msra.mxu0 0.0
    %4591 = vmatprep.subr.mxu0 0.0
    %4592 = vmatpush1.msra.mxu0 0.0
    %4593 = vmatprep.subr.mxu0 0.0
    %4594 = vmatpush1.msra.mxu0 0.0
    %4595 = vmatprep.subr.mxu0 0.0
    %4596 = vmatpush1.msra.mxu0 0.0
    %4597 = vmatprep.subr.mxu0 0.0
    %4598 = vmatpush1.msra.mxu0 0.0
    %4599 = vmatprep.subr.mxu0 0.0
    %4600 = vmatpush1.msra.mxu0 0.0
    %4601 = vmatprep.mubr.f32.mxu0 0.0
    %v4602 = vand.u32 %v4174, 4294901760
    %v4603 = vsub.f32 %v4174, %v4602
    %v4604 = vand.u32 %v4603, 4294901760
    %4605 = vmatmul.mubr.f32.gmra.mrb[0].mxu0 %v4604
    %v4606 = vpop.f32.mrb[0].mxu0
    %v4607 = vadd.f32 %v4518, %v4606
    %v4608 = vpop.f32.mrb[0].mxu0
    %4609 = vdwg.mxu0
    %4610 = vmatprep.subr.mxu0 0.0
    %v4611 = vand.u32 %v172, 4294901760
    %v4612 = vsub.f32 %v172, %v4611
    %v4613 = vand.u32 %v4612, 4294901760
    %4614 = vmatpush1.msra.mxu0 %v4613
    %4615 = vmatprep.subr.mxu0 0.0
    %v4616 = vand.u32 %v173, 4294901760
    %v4617 = vsub.f32 %v173, %v4616
    %v4618 = vand.u32 %v4617, 4294901760
    %4619 = vmatpush1.msra.mxu0 %v4618
    %4620 = vmatprep.subr.mxu0 0.0
    %v4621 = vand.u32 %v174, 4294901760
    %v4622 = vsub.f32 %v174, %v4621
    %v4623 = vand.u32 %v4622, 4294901760
    %4624 = vmatpush1.msra.mxu0 %v4623
    %4625 = vmatprep.subr.mxu0 0.0
    %v4626 = vand.u32 %v175, 4294901760
    %v4627 = vsub.f32 %v175, %v4626
    %v4628 = vand.u32 %v4627, 4294901760
    %4629 = vmatpush1.msra.mxu0 %v4628
    %4630 = vmatprep.subr.mxu0 0.0
    %v4631 = vand.u32 %v176, 4294901760
    %v4632 = vsub.f32 %v176, %v4631
    %v4633 = vand.u32 %v4632, 4294901760
    %4634 = vmatpush1.msra.mxu0 %v4633
    %4635 = vmatprep.subr.mxu0 0.0
    %v4636 = vand.u32 %v177, 4294901760
    %v4637 = vsub.f32 %v177, %v4636
    %v4638 = vand.u32 %v4637, 4294901760
    %4639 = vmatpush1.msra.mxu0 %v4638
    %4640 = vmatprep.subr.mxu0 0.0
    %v4641 = vand.u32 %v178, 4294901760
    %v4642 = vsub.f32 %v178, %v4641
    %v4643 = vand.u32 %v4642, 4294901760
    %4644 = vmatpush1.msra.mxu0 %v4643
    %4645 = vmatprep.subr.mxu0 0.0
    %v4646 = vand.u32 %v179, 4294901760
    %v4647 = vsub.f32 %v179, %v4646
    %v4648 = vand.u32 %v4647, 4294901760
    %4649 = vmatpush1.msra.mxu0 %v4648
    %4650 = vmatprep.subr.mxu0 0.0
    %v4651 = vand.u32 %v180, 4294901760
    %v4652 = vsub.f32 %v180, %v4651
    %v4653 = vand.u32 %v4652, 4294901760
    %4654 = vmatpush1.msra.mxu0 %v4653
    %4655 = vmatprep.subr.mxu0 0.0
    %v4656 = vand.u32 %v181, 4294901760
    %v4657 = vsub.f32 %v181, %v4656
    %v4658 = vand.u32 %v4657, 4294901760
    %4659 = vmatpush1.msra.mxu0 %v4658
    %4660 = vmatprep.subr.mxu0 0.0
    %v4661 = vand.u32 %v182, 4294901760
    %v4662 = vsub.f32 %v182, %v4661
    %v4663 = vand.u32 %v4662, 4294901760
    %4664 = vmatpush1.msra.mxu0 %v4663
    %4665 = vmatprep.subr.mxu0 0.0
    %v4666 = vand.u32 %v183, 4294901760
    %v4667 = vsub.f32 %v183, %v4666
    %v4668 = vand.u32 %v4667, 4294901760
    %4669 = vmatpush1.msra.mxu0 %v4668
    %4670 = vmatprep.subr.mxu0 0.0
    %v4671 = vand.u32 %v184, 4294901760
    %v4672 = vsub.f32 %v184, %v4671
    %v4673 = vand.u32 %v4672, 4294901760
    %4674 = vmatpush1.msra.mxu0 %v4673
    %4675 = vmatprep.subr.mxu0 0.0
    %v4676 = vand.u32 %v185, 4294901760
    %v4677 = vsub.f32 %v185, %v4676
    %v4678 = vand.u32 %v4677, 4294901760
    %4679 = vmatpush1.msra.mxu0 %v4678
    %4680 = vmatprep.subr.mxu0 0.0
    %v4681 = vand.u32 %v186, 4294901760
    %v4682 = vsub.f32 %v186, %v4681
    %v4683 = vand.u32 %v4682, 4294901760
    %4684 = vmatpush1.msra.mxu0 %v4683
    %4685 = vmatprep.subr.mxu0 0.0
    %v4686 = vand.u32 %v187, 4294901760
    %v4687 = vsub.f32 %v187, %v4686
    %v4688 = vand.u32 %v4687, 4294901760
    %4689 = vmatpush1.msra.mxu0 %v4688
    %4690 = vmatprep.subr.mxu0 0.0
    %4691 = vmatpush1.msra.mxu0 0.0
    %4692 = vmatprep.subr.mxu0 0.0
    %4693 = vmatpush1.msra.mxu0 0.0
    %4694 = vmatprep.subr.mxu0 0.0
    %4695 = vmatpush1.msra.mxu0 0.0
    %4696 = vmatprep.subr.mxu0 0.0
    %4697 = vmatpush1.msra.mxu0 0.0
    %4698 = vmatprep.subr.mxu0 0.0
    %4699 = vmatpush1.msra.mxu0 0.0
    %4700 = vmatprep.subr.mxu0 0.0
    %4701 = vmatpush1.msra.mxu0 0.0
    %4702 = vmatprep.subr.mxu0 0.0
    %4703 = vmatpush1.msra.mxu0 0.0
    %4704 = vmatprep.subr.mxu0 0.0
    %4705 = vmatpush1.msra.mxu0 0.0
    %4706 = vmatprep.subr.mxu0 0.0
    %4707 = vmatpush1.msra.mxu0 0.0
    %4708 = vmatprep.subr.mxu0 0.0
    %4709 = vmatpush1.msra.mxu0 0.0
    %4710 = vmatprep.subr.mxu0 0.0
    %4711 = vmatpush1.msra.mxu0 0.0
    %4712 = vmatprep.subr.mxu0 0.0
    %4713 = vmatpush1.msra.mxu0 0.0
    %4714 = vmatprep.subr.mxu0 0.0
    %4715 = vmatpush1.msra.mxu0 0.0
    %4716 = vmatprep.subr.mxu0 0.0
    %4717 = vmatpush1.msra.mxu0 0.0
    %4718 = vmatprep.subr.mxu0 0.0
    %4719 = vmatpush1.msra.mxu0 0.0
    %4720 = vmatprep.subr.mxu0 0.0
    %4721 = vmatpush1.msra.mxu0 0.0
    %4722 = vmatprep.mubr.f32.mxu0 0.0
    %v4723 = vand.u32 %v4174, 4294901760
    %4724 = vmatmul.mubr.f32.gmra.mrb[0].mxu0 %v4723
    %v4725 = vpop.f32.mrb[0].mxu0
    %v4726 = vadd.f32 %v4607, %v4725
    %v4727 = vpop.f32.mrb[0].mxu0
    %4728 = vdwg.mxu0
    %4729 = vmatprep.subr.mxu0 0.0
    %v4730 = vand.u32 %v172, 4294901760
    %4731 = vmatpush1.msra.mxu0 %v4730
    %4732 = vmatprep.subr.mxu0 0.0
    %v4733 = vand.u32 %v173, 4294901760
    %4734 = vmatpush1.msra.mxu0 %v4733
    %4735 = vmatprep.subr.mxu0 0.0
    %v4736 = vand.u32 %v174, 4294901760
    %4737 = vmatpush1.msra.mxu0 %v4736
    %4738 = vmatprep.subr.mxu0 0.0
    %v4739 = vand.u32 %v175, 4294901760
    %4740 = vmatpush1.msra.mxu0 %v4739
    %4741 = vmatprep.subr.mxu0 0.0
    %v4742 = vand.u32 %v176, 4294901760
    %4743 = vmatpush1.msra.mxu0 %v4742
    %4744 = vmatprep.subr.mxu0 0.0
    %v4745 = vand.u32 %v177, 4294901760
    %4746 = vmatpush1.msra.mxu0 %v4745
    %4747 = vmatprep.subr.mxu0 0.0
    %v4748 = vand.u32 %v178, 4294901760
    %4749 = vmatpush1.msra.mxu0 %v4748
    %4750 = vmatprep.subr.mxu0 0.0
    %v4751 = vand.u32 %v179, 4294901760
    %4752 = vmatpush1.msra.mxu0 %v4751
    %4753 = vmatprep.subr.mxu0 0.0
    %v4754 = vand.u32 %v180, 4294901760
    %4755 = vmatpush1.msra.mxu0 %v4754
    %4756 = vmatprep.subr.mxu0 0.0
    %v4757 = vand.u32 %v181, 4294901760
    %4758 = vmatpush1.msra.mxu0 %v4757
    %4759 = vmatprep.subr.mxu0 0.0
    %v4760 = vand.u32 %v182, 4294901760
    %4761 = vmatpush1.msra.mxu0 %v4760
    %4762 = vmatprep.subr.mxu0 0.0
    %v4763 = vand.u32 %v183, 4294901760
    %4764 = vmatpush1.msra.mxu0 %v4763
    %4765 = vmatprep.subr.mxu0 0.0
    %v4766 = vand.u32 %v184, 4294901760
    %4767 = vmatpush1.msra.mxu0 %v4766
    %4768 = vmatprep.subr.mxu0 0.0
    %v4769 = vand.u32 %v185, 4294901760
    %4770 = vmatpush1.msra.mxu0 %v4769
    %4771 = vmatprep.subr.mxu0 0.0
    %v4772 = vand.u32 %v186, 4294901760
    %4773 = vmatpush1.msra.mxu0 %v4772
    %4774 = vmatprep.subr.mxu0 0.0
    %v4775 = vand.u32 %v187, 4294901760
    %4776 = vmatpush1.msra.mxu0 %v4775
    %4777 = vmatprep.subr.mxu0 0.0
    %4778 = vmatpush1.msra.mxu0 0.0
    %4779 = vmatprep.subr.mxu0 0.0
    %4780 = vmatpush1.msra.mxu0 0.0
    %4781 = vmatprep.subr.mxu0 0.0
    %4782 = vmatpush1.msra.mxu0 0.0
    %4783 = vmatprep.subr.mxu0 0.0
    %4784 = vmatpush1.msra.mxu0 0.0
    %4785 = vmatprep.subr.mxu0 0.0
    %4786 = vmatpush1.msra.mxu0 0.0
    %4787 = vmatprep.subr.mxu0 0.0
    %4788 = vmatpush1.msra.mxu0 0.0
    %4789 = vmatprep.subr.mxu0 0.0
    %4790 = vmatpush1.msra.mxu0 0.0
    %4791 = vmatprep.subr.mxu0 0.0
    %4792 = vmatpush1.msra.mxu0 0.0
    %4793 = vmatprep.subr.mxu0 0.0
    %4794 = vmatpush1.msra.mxu0 0.0
    %4795 = vmatprep.subr.mxu0 0.0
    %4796 = vmatpush1.msra.mxu0 0.0
    %4797 = vmatprep.subr.mxu0 0.0
    %4798 = vmatpush1.msra.mxu0 0.0
    %4799 = vmatprep.subr.mxu0 0.0
    %4800 = vmatpush1.msra.mxu0 0.0
    %4801 = vmatprep.subr.mxu0 0.0
    %4802 = vmatpush1.msra.mxu0 0.0
    %4803 = vmatprep.subr.mxu0 0.0
    %4804 = vmatpush1.msra.mxu0 0.0
    %4805 = vmatprep.subr.mxu0 0.0
    %4806 = vmatpush1.msra.mxu0 0.0
    %4807 = vmatprep.subr.mxu0 0.0
    %4808 = vmatpush1.msra.mxu0 0.0
    %4809 = vmatprep.mubr.f32.mxu0 0.0
    %v4810 = vand.u32 %v4174, 4294901760
    %4811 = vmatmul.mubr.f32.gmra.mrb[0].mxu0 %v4810
    %v4812 = vpop.f32.mrb[0].mxu0
    %v4813 = vadd.f32 %v4726, %v4812
    %v4814 = vpop.f32.mrb[0].mxu0
    %4815 = vdwg.mxu0
    %v4816 = vlog2.pop %v4813
    %v4817 = vmul.f32 %v4816, 0.6931472
    %v4818 = vadd.f32 %v4817, %v4171
    %v4819 = vadd.f32 %v4818, %v845
    %v4820 = vadd.f32 %v4819, %v4167
    %vm4821 = vcmp.gt.f32.partialorder %v4169, 0.5
    %v4822 = vsel %vm4821, 1, 0
    %4823 = vset.pattern.permute.xlu0 0
    %4824 = vperm.xlu0 %4823, %v4822
    %v4825 = vpop.permute.xlu0 %4824
    %vm4826 = vcmp.eq.s32.totalorder %v4825, 1
    %v4827 = vsel %vm4826, %v4820, %v4165
    %s4828 = scalar_lea.vmem %s0, 56
    %v4829 = vld [vmem:[%s4828] sm:$0xff]
    %s4830 = scalar_lea.vmem %s1, 56
    %v4831 = vld [vmem:[%s4830] sm:$0xff]
    %4832 = vmax.xlane.f32.xlu0 %v4827
    %v4833 = vpop.xlane.xlu0 %4832
    %v4834 = vsub.f32 %v4827, %v4833
    %v4835 = vmul.f32 %v4834, 1.442695
    %v4836 = vpow.pop %v4835
    %4837 = vmatprep.subr.mxu0 0.0
    %v4838 = vand.u32 %v172, 4294901760
    %4839 = vmatpush1.msra.mxu0 %v4838
    %4840 = vmatprep.subr.mxu0 0.0
    %v4841 = vand.u32 %v173, 4294901760
    %4842 = vmatpush1.msra.mxu0 %v4841
    %4843 = vmatprep.subr.mxu0 0.0
    %v4844 = vand.u32 %v174, 4294901760
    %4845 = vmatpush1.msra.mxu0 %v4844
    %4846 = vmatprep.subr.mxu0 0.0
    %v4847 = vand.u32 %v175, 4294901760
    %4848 = vmatpush1.msra.mxu0 %v4847
    %4849 = vmatprep.subr.mxu0 0.0
    %v4850 = vand.u32 %v176, 4294901760
    %4851 = vmatpush1.msra.mxu0 %v4850
    %4852 = vmatprep.subr.mxu0 0.0
    %v4853 = vand.u32 %v177, 4294901760
    %4854 = vmatpush1.msra.mxu0 %v4853
    %4855 = vmatprep.subr.mxu0 0.0
    %v4856 = vand.u32 %v178, 4294901760
    %4857 = vmatpush1.msra.mxu0 %v4856
    %4858 = vmatprep.subr.mxu0 0.0
    %v4859 = vand.u32 %v179, 4294901760
    %4860 = vmatpush1.msra.mxu0 %v4859
    %4861 = vmatprep.subr.mxu0 0.0
    %v4862 = vand.u32 %v180, 4294901760
    %4863 = vmatpush1.msra.mxu0 %v4862
    %4864 = vmatprep.subr.mxu0 0.0
    %v4865 = vand.u32 %v181, 4294901760
    %4866 = vmatpush1.msra.mxu0 %v4865
    %4867 = vmatprep.subr.mxu0 0.0
    %v4868 = vand.u32 %v182, 4294901760
    %4869 = vmatpush1.msra.mxu0 %v4868
    %4870 = vmatprep.subr.mxu0 0.0
    %v4871 = vand.u32 %v183, 4294901760
    %4872 = vmatpush1.msra.mxu0 %v4871
    %4873 = vmatprep.subr.mxu0 0.0
    %v4874 = vand.u32 %v184, 4294901760
    %4875 = vmatpush1.msra.mxu0 %v4874
    %4876 = vmatprep.subr.mxu0 0.0
    %v4877 = vand.u32 %v185, 4294901760
    %4878 = vmatpush1.msra.mxu0 %v4877
    %4879 = vmatprep.subr.mxu0 0.0
    %v4880 = vand.u32 %v186, 4294901760
    %4881 = vmatpush1.msra.mxu0 %v4880
    %4882 = vmatprep.subr.mxu0 0.0
    %v4883 = vand.u32 %v187, 4294901760
    %4884 = vmatpush1.msra.mxu0 %v4883
    %4885 = vmatprep.subr.mxu0 0.0
    %4886 = vmatpush1.msra.mxu0 0.0
    %4887 = vmatprep.subr.mxu0 0.0
    %4888 = vmatpush1.msra.mxu0 0.0
    %4889 = vmatprep.subr.mxu0 0.0
    %4890 = vmatpush1.msra.mxu0 0.0
    %4891 = vmatprep.subr.mxu0 0.0
    %4892 = vmatpush1.msra.mxu0 0.0
    %4893 = vmatprep.subr.mxu0 0.0
    %4894 = vmatpush1.msra.mxu0 0.0
    %4895 = vmatprep.subr.mxu0 0.0
    %4896 = vmatpush1.msra.mxu0 0.0
    %4897 = vmatprep.subr.mxu0 0.0
    %4898 = vmatpush1.msra.mxu0 0.0
    %4899 = vmatprep.subr.mxu0 0.0
    %4900 = vmatpush1.msra.mxu0 0.0
    %4901 = vmatprep.subr.mxu0 0.0
    %4902 = vmatpush1.msra.mxu0 0.0
    %4903 = vmatprep.subr.mxu0 0.0
    %4904 = vmatpush1.msra.mxu0 0.0
    %4905 = vmatprep.subr.mxu0 0.0
    %4906 = vmatpush1.msra.mxu0 0.0
    %4907 = vmatprep.subr.mxu0 0.0
    %4908 = vmatpush1.msra.mxu0 0.0
    %4909 = vmatprep.subr.mxu0 0.0
    %4910 = vmatpush1.msra.mxu0 0.0
    %4911 = vmatprep.subr.mxu0 0.0
    %4912 = vmatpush1.msra.mxu0 0.0
    %4913 = vmatprep.subr.mxu0 0.0
    %4914 = vmatpush1.msra.mxu0 0.0
    %4915 = vmatprep.subr.mxu0 0.0
    %4916 = vmatpush1.msra.mxu0 0.0
    %4917 = vmatprep.mubr.f32.mxu0 0.0
    %v4918 = vand.u32 %v4836, 4294901760
    %v4919 = vsub.f32 %v4836, %v4918
    %v4920 = vand.u32 %v4919, 4294901760
    %v4921 = vsub.f32 %v4919, %v4920
    %v4922 = vand.u32 %v4921, 4294901760
    %4923 = vmatmul.mubr.f32.gmra.mrb[0].mxu0 %v4922
    %v4924 = vpop.f32.mrb[0].mxu0
    %v4925 = vadd.f32 0.0, %v4924
    %v4926 = vpop.f32.mrb[0].mxu0
    %4927 = vdwg.mxu0
    %4928 = vmatprep.subr.mxu0 0.0
    %v4929 = vand.u32 %v172, 4294901760
    %v4930 = vsub.f32 %v172, %v4929
    %v4931 = vand.u32 %v4930, 4294901760
    %v4932 = vsub.f32 %v4930, %v4931
    %v4933 = vand.u32 %v4932, 4294901760
    %4934 = vmatpush1.msra.mxu0 %v4933
    %4935 = vmatprep.subr.mxu0 0.0
    %v4936 = vand.u32 %v173, 4294901760
    %v4937 = vsub.f32 %v173, %v4936
    %v4938 = vand.u32 %v4937, 4294901760
    %v4939 = vsub.f32 %v4937, %v4938
    %v4940 = vand.u32 %v4939, 4294901760
    %4941 = vmatpush1.msra.mxu0 %v4940
    %4942 = vmatprep.subr.mxu0 0.0
    %v4943 = vand.u32 %v174, 4294901760
    %v4944 = vsub.f32 %v174, %v4943
    %v4945 = vand.u32 %v4944, 4294901760
    %v4946 = vsub.f32 %v4944, %v4945
    %v4947 = vand.u32 %v4946, 4294901760
    %4948 = vmatpush1.msra.mxu0 %v4947
    %4949 = vmatprep.subr.mxu0 0.0
    %v4950 = vand.u32 %v175, 4294901760
    %v4951 = vsub.f32 %v175, %v4950
    %v4952 = vand.u32 %v4951, 4294901760
    %v4953 = vsub.f32 %v4951, %v4952
    %v4954 = vand.u32 %v4953, 4294901760
    %4955 = vmatpush1.msra.mxu0 %v4954
    %4956 = vmatprep.subr.mxu0 0.0
    %v4957 = vand.u32 %v176, 4294901760
    %v4958 = vsub.f32 %v176, %v4957
    %v4959 = vand.u32 %v4958, 4294901760
    %v4960 = vsub.f32 %v4958, %v4959
    %v4961 = vand.u32 %v4960, 4294901760
    %4962 = vmatpush1.msra.mxu0 %v4961
    %4963 = vmatprep.subr.mxu0 0.0
    %v4964 = vand.u32 %v177, 4294901760
    %v4965 = vsub.f32 %v177, %v4964
    %v4966 = vand.u32 %v4965, 4294901760
    %v4967 = vsub.f32 %v4965, %v4966
    %v4968 = vand.u32 %v4967, 4294901760
    %4969 = vmatpush1.msra.mxu0 %v4968
    %4970 = vmatprep.subr.mxu0 0.0
    %v4971 = vand.u32 %v178, 4294901760
    %v4972 = vsub.f32 %v178, %v4971
    %v4973 = vand.u32 %v4972, 4294901760
    %v4974 = vsub.f32 %v4972, %v4973
    %v4975 = vand.u32 %v4974, 4294901760
    %4976 = vmatpush1.msra.mxu0 %v4975
    %4977 = vmatprep.subr.mxu0 0.0
    %v4978 = vand.u32 %v179, 4294901760
    %v4979 = vsub.f32 %v179, %v4978
    %v4980 = vand.u32 %v4979, 4294901760
    %v4981 = vsub.f32 %v4979, %v4980
    %v4982 = vand.u32 %v4981, 4294901760
    %4983 = vmatpush1.msra.mxu0 %v4982
    %4984 = vmatprep.subr.mxu0 0.0
    %v4985 = vand.u32 %v180, 4294901760
    %v4986 = vsub.f32 %v180, %v4985
    %v4987 = vand.u32 %v4986, 4294901760
    %v4988 = vsub.f32 %v4986, %v4987
    %v4989 = vand.u32 %v4988, 4294901760
    %4990 = vmatpush1.msra.mxu0 %v4989
    %4991 = vmatprep.subr.mxu0 0.0
    %v4992 = vand.u32 %v181, 4294901760
    %v4993 = vsub.f32 %v181, %v4992
    %v4994 = vand.u32 %v4993, 4294901760
    %v4995 = vsub.f32 %v4993, %v4994
    %v4996 = vand.u32 %v4995, 4294901760
    %4997 = vmatpush1.msra.mxu0 %v4996
    %4998 = vmatprep.subr.mxu0 0.0
    %v4999 = vand.u32 %v182, 4294901760
    %v5000 = vsub.f32 %v182, %v4999
    %v5001 = vand.u32 %v5000, 4294901760
    %v5002 = vsub.f32 %v5000, %v5001
    %v5003 = vand.u32 %v5002, 4294901760
    %5004 = vmatpush1.msra.mxu0 %v5003
    %5005 = vmatprep.subr.mxu0 0.0
    %v5006 = vand.u32 %v183, 4294901760
    %v5007 = vsub.f32 %v183, %v5006
    %v5008 = vand.u32 %v5007, 4294901760
    %v5009 = vsub.f32 %v5007, %v5008
    %v5010 = vand.u32 %v5009, 4294901760
    %5011 = vmatpush1.msra.mxu0 %v5010
    %5012 = vmatprep.subr.mxu0 0.0
    %v5013 = vand.u32 %v184, 4294901760
    %v5014 = vsub.f32 %v184, %v5013
    %v5015 = vand.u32 %v5014, 4294901760
    %v5016 = vsub.f32 %v5014, %v5015
    %v5017 = vand.u32 %v5016, 4294901760
    %5018 = vmatpush1.msra.mxu0 %v5017
    %5019 = vmatprep.subr.mxu0 0.0
    %v5020 = vand.u32 %v185, 4294901760
    %v5021 = vsub.f32 %v185, %v5020
    %v5022 = vand.u32 %v5021, 4294901760
    %v5023 = vsub.f32 %v5021, %v5022
    %v5024 = vand.u32 %v5023, 4294901760
    %5025 = vmatpush1.msra.mxu0 %v5024
    %5026 = vmatprep.subr.mxu0 0.0
    %v5027 = vand.u32 %v186, 4294901760
    %v5028 = vsub.f32 %v186, %v5027
    %v5029 = vand.u32 %v5028, 4294901760
    %v5030 = vsub.f32 %v5028, %v5029
    %v5031 = vand.u32 %v5030, 4294901760
    %5032 = vmatpush1.msra.mxu0 %v5031
    %5033 = vmatprep.subr.mxu0 0.0
    %v5034 = vand.u32 %v187, 4294901760
    %v5035 = vsub.f32 %v187, %v5034
    %v5036 = vand.u32 %v5035, 4294901760
    %v5037 = vsub.f32 %v5035, %v5036
    %v5038 = vand.u32 %v5037, 4294901760
    %5039 = vmatpush1.msra.mxu0 %v5038
    %5040 = vmatprep.subr.mxu0 0.0
    %5041 = vmatpush1.msra.mxu0 0.0
    %5042 = vmatprep.subr.mxu0 0.0
    %5043 = vmatpush1.msra.mxu0 0.0
    %5044 = vmatprep.subr.mxu0 0.0
    %5045 = vmatpush1.msra.mxu0 0.0
    %5046 = vmatprep.subr.mxu0 0.0
    %5047 = vmatpush1.msra.mxu0 0.0
    %5048 = vmatprep.subr.mxu0 0.0
    %5049 = vmatpush1.msra.mxu0 0.0
    %5050 = vmatprep.subr.mxu0 0.0
    %5051 = vmatpush1.msra.mxu0 0.0
    %5052 = vmatprep.subr.mxu0 0.0
    %5053 = vmatpush1.msra.mxu0 0.0
    %5054 = vmatprep.subr.mxu0 0.0
    %5055 = vmatpush1.msra.mxu0 0.0
    %5056 = vmatprep.subr.mxu0 0.0
    %5057 = vmatpush1.msra.mxu0 0.0
    %5058 = vmatprep.subr.mxu0 0.0
    %5059 = vmatpush1.msra.mxu0 0.0
    %5060 = vmatprep.subr.mxu0 0.0
    %5061 = vmatpush1.msra.mxu0 0.0
    %5062 = vmatprep.subr.mxu0 0.0
    %5063 = vmatpush1.msra.mxu0 0.0
    %5064 = vmatprep.subr.mxu0 0.0
    %5065 = vmatpush1.msra.mxu0 0.0
    %5066 = vmatprep.subr.mxu0 0.0
    %5067 = vmatpush1.msra.mxu0 0.0
    %5068 = vmatprep.subr.mxu0 0.0
    %5069 = vmatpush1.msra.mxu0 0.0
    %5070 = vmatprep.subr.mxu0 0.0
    %5071 = vmatpush1.msra.mxu0 0.0
    %5072 = vmatprep.mubr.f32.mxu0 0.0
    %v5073 = vand.u32 %v4836, 4294901760
    %5074 = vmatmul.mubr.f32.gmra.mrb[0].mxu0 %v5073
    %v5075 = vpop.f32.mrb[0].mxu0
    %v5076 = vadd.f32 %v4925, %v5075
    %v5077 = vpop.f32.mrb[0].mxu0
    %5078 = vdwg.mxu0
    %5079 = vmatprep.subr.mxu0 0.0
    %v5080 = vand.u32 %v172, 4294901760
    %v5081 = vsub.f32 %v172, %v5080
    %5082 = vmatpush1.msra.mxu0 %v5081
    %5083 = vmatprep.subr.mxu0 0.0
    %v5084 = vand.u32 %v173, 4294901760
    %v5085 = vsub.f32 %v173, %v5084
    %5086 = vmatpush1.msra.mxu0 %v5085
    %5087 = vmatprep.subr.mxu0 0.0
    %v5088 = vand.u32 %v174, 4294901760
    %v5089 = vsub.f32 %v174, %v5088
    %5090 = vmatpush1.msra.mxu0 %v5089
    %5091 = vmatprep.subr.mxu0 0.0
    %v5092 = vand.u32 %v175, 4294901760
    %v5093 = vsub.f32 %v175, %v5092
    %5094 = vmatpush1.msra.mxu0 %v5093
    %5095 = vmatprep.subr.mxu0 0.0
    %v5096 = vand.u32 %v176, 4294901760
    %v5097 = vsub.f32 %v176, %v5096
    %5098 = vmatpush1.msra.mxu0 %v5097
    %5099 = vmatprep.subr.mxu0 0.0
    %v5100 = vand.u32 %v177, 4294901760
    %v5101 = vsub.f32 %v177, %v5100
    %5102 = vmatpush1.msra.mxu0 %v5101
    %5103 = vmatprep.subr.mxu0 0.0
    %v5104 = vand.u32 %v178, 4294901760
    %v5105 = vsub.f32 %v178, %v5104
    %5106 = vmatpush1.msra.mxu0 %v5105
    %5107 = vmatprep.subr.mxu0 0.0
    %v5108 = vand.u32 %v179, 4294901760
    %v5109 = vsub.f32 %v179, %v5108
    %5110 = vmatpush1.msra.mxu0 %v5109
    %5111 = vmatprep.subr.mxu0 0.0
    %v5112 = vand.u32 %v180, 4294901760
    %v5113 = vsub.f32 %v180, %v5112
    %5114 = vmatpush1.msra.mxu0 %v5113
    %5115 = vmatprep.subr.mxu0 0.0
    %v5116 = vand.u32 %v181, 4294901760
    %v5117 = vsub.f32 %v181, %v5116
    %5118 = vmatpush1.msra.mxu0 %v5117
    %5119 = vmatprep.subr.mxu0 0.0
    %v5120 = vand.u32 %v182, 4294901760
    %v5121 = vsub.f32 %v182, %v5120
    %5122 = vmatpush1.msra.mxu0 %v5121
    %5123 = vmatprep.subr.mxu0 0.0
    %v5124 = vand.u32 %v183, 4294901760
    %v5125 = vsub.f32 %v183, %v5124
    %5126 = vmatpush1.msra.mxu0 %v5125
    %5127 = vmatprep.subr.mxu0 0.0
    %v5128 = vand.u32 %v184, 4294901760
    %v5129 = vsub.f32 %v184, %v5128
    %5130 = vmatpush1.msra.mxu0 %v5129
    %5131 = vmatprep.subr.mxu0 0.0
    %v5132 = vand.u32 %v185, 4294901760
    %v5133 = vsub.f32 %v185, %v5132
    %5134 = vmatpush1.msra.mxu0 %v5133
    %5135 = vmatprep.subr.mxu0 0.0
    %v5136 = vand.u32 %v186, 4294901760
    %v5137 = vsub.f32 %v186, %v5136
    %5138 = vmatpush1.msra.mxu0 %v5137
    %5139 = vmatprep.subr.mxu0 0.0
    %v5140 = vand.u32 %v187, 4294901760
    %v5141 = vsub.f32 %v187, %v5140
    %5142 = vmatpush1.msra.mxu0 %v5141
    %5143 = vmatprep.subr.mxu0 0.0
    %5144 = vmatpush1.msra.mxu0 0.0
    %5145 = vmatprep.subr.mxu0 0.0
    %5146 = vmatpush1.msra.mxu0 0.0
    %5147 = vmatprep.subr.mxu0 0.0
    %5148 = vmatpush1.msra.mxu0 0.0
    %5149 = vmatprep.subr.mxu0 0.0
    %5150 = vmatpush1.msra.mxu0 0.0
    %5151 = vmatprep.subr.mxu0 0.0
    %5152 = vmatpush1.msra.mxu0 0.0
    %5153 = vmatprep.subr.mxu0 0.0
    %5154 = vmatpush1.msra.mxu0 0.0
    %5155 = vmatprep.subr.mxu0 0.0
    %5156 = vmatpush1.msra.mxu0 0.0
    %5157 = vmatprep.subr.mxu0 0.0
    %5158 = vmatpush1.msra.mxu0 0.0
    %5159 = vmatprep.subr.mxu0 0.0
    %5160 = vmatpush1.msra.mxu0 0.0
    %5161 = vmatprep.subr.mxu0 0.0
    %5162 = vmatpush1.msra.mxu0 0.0
    %5163 = vmatprep.subr.mxu0 0.0
    %5164 = vmatpush1.msra.mxu0 0.0
    %5165 = vmatprep.subr.mxu0 0.0
    %5166 = vmatpush1.msra.mxu0 0.0
    %5167 = vmatprep.subr.mxu0 0.0
    %5168 = vmatpush1.msra.mxu0 0.0
    %5169 = vmatprep.subr.mxu0 0.0
    %5170 = vmatpush1.msra.mxu0 0.0
    %5171 = vmatprep.subr.mxu0 0.0
    %5172 = vmatpush1.msra.mxu0 0.0
    %5173 = vmatprep.subr.mxu0 0.0
    %5174 = vmatpush1.msra.mxu0 0.0
    %5175 = vmatprep.mubr.f32.mxu0 0.0
    %v5176 = vand.u32 %v4836, 4294901760
    %v5177 = vsub.f32 %v4836, %v5176
    %5178 = vmatmul.mubr.f32.gmra.mrb[0].mxu0 %v5177
    %v5179 = vpop.f32.mrb[0].mxu0
    %v5180 = vadd.f32 %v5076, %v5179
    %v5181 = vpop.f32.mrb[0].mxu0
    %5182 = vdwg.mxu0
    %5183 = vmatprep.subr.mxu0 0.0
    %v5184 = vand.u32 %v172, 4294901760
    %5185 = vmatpush1.msra.mxu0 %v5184
    %5186 = vmatprep.subr.mxu0 0.0
    %v5187 = vand.u32 %v173, 4294901760
    %5188 = vmatpush1.msra.mxu0 %v5187
    %5189 = vmatprep.subr.mxu0 0.0
    %v5190 = vand.u32 %v174, 4294901760
    %5191 = vmatpush1.msra.mxu0 %v5190
    %5192 = vmatprep.subr.mxu0 0.0
    %v5193 = vand.u32 %v175, 4294901760
    %5194 = vmatpush1.msra.mxu0 %v5193
    %5195 = vmatprep.subr.mxu0 0.0
    %v5196 = vand.u32 %v176, 4294901760
    %5197 = vmatpush1.msra.mxu0 %v5196
    %5198 = vmatprep.subr.mxu0 0.0
    %v5199 = vand.u32 %v177, 4294901760
    %5200 = vmatpush1.msra.mxu0 %v5199
    %5201 = vmatprep.subr.mxu0 0.0
    %v5202 = vand.u32 %v178, 4294901760
    %5203 = vmatpush1.msra.mxu0 %v5202
    %5204 = vmatprep.subr.mxu0 0.0
    %v5205 = vand.u32 %v179, 4294901760
    %5206 = vmatpush1.msra.mxu0 %v5205
    %5207 = vmatprep.subr.mxu0 0.0
    %v5208 = vand.u32 %v180, 4294901760
    %5209 = vmatpush1.msra.mxu0 %v5208
    %5210 = vmatprep.subr.mxu0 0.0
    %v5211 = vand.u32 %v181, 4294901760
    %5212 = vmatpush1.msra.mxu0 %v5211
    %5213 = vmatprep.subr.mxu0 0.0
    %v5214 = vand.u32 %v182, 4294901760
    %5215 = vmatpush1.msra.mxu0 %v5214
    %5216 = vmatprep.subr.mxu0 0.0
    %v5217 = vand.u32 %v183, 4294901760
    %5218 = vmatpush1.msra.mxu0 %v5217
    %5219 = vmatprep.subr.mxu0 0.0
    %v5220 = vand.u32 %v184, 4294901760
    %5221 = vmatpush1.msra.mxu0 %v5220
    %5222 = vmatprep.subr.mxu0 0.0
    %v5223 = vand.u32 %v185, 4294901760
    %5224 = vmatpush1.msra.mxu0 %v5223
    %5225 = vmatprep.subr.mxu0 0.0
    %v5226 = vand.u32 %v186, 4294901760
    %5227 = vmatpush1.msra.mxu0 %v5226
    %5228 = vmatprep.subr.mxu0 0.0
    %v5229 = vand.u32 %v187, 4294901760
    %5230 = vmatpush1.msra.mxu0 %v5229
    %5231 = vmatprep.subr.mxu0 0.0
    %5232 = vmatpush1.msra.mxu0 0.0
    %5233 = vmatprep.subr.mxu0 0.0
    %5234 = vmatpush1.msra.mxu0 0.0
    %5235 = vmatprep.subr.mxu0 0.0
    %5236 = vmatpush1.msra.mxu0 0.0
    %5237 = vmatprep.subr.mxu0 0.0
    %5238 = vmatpush1.msra.mxu0 0.0
    %5239 = vmatprep.subr.mxu0 0.0
    %5240 = vmatpush1.msra.mxu0 0.0
    %5241 = vmatprep.subr.mxu0 0.0
    %5242 = vmatpush1.msra.mxu0 0.0
    %5243 = vmatprep.subr.mxu0 0.0
    %5244 = vmatpush1.msra.mxu0 0.0
    %5245 = vmatprep.subr.mxu0 0.0
    %5246 = vmatpush1.msra.mxu0 0.0
    %5247 = vmatprep.subr.mxu0 0.0
    %5248 = vmatpush1.msra.mxu0 0.0
    %5249 = vmatprep.subr.mxu0 0.0
    %5250 = vmatpush1.msra.mxu0 0.0
    %5251 = vmatprep.subr.mxu0 0.0
    %5252 = vmatpush1.msra.mxu0 0.0
    %5253 = vmatprep.subr.mxu0 0.0
    %5254 = vmatpush1.msra.mxu0 0.0
    %5255 = vmatprep.subr.mxu0 0.0
    %5256 = vmatpush1.msra.mxu0 0.0
    %5257 = vmatprep.subr.mxu0 0.0
    %5258 = vmatpush1.msra.mxu0 0.0
    %5259 = vmatprep.subr.mxu0 0.0
    %5260 = vmatpush1.msra.mxu0 0.0
    %5261 = vmatprep.subr.mxu0 0.0
    %5262 = vmatpush1.msra.mxu0 0.0
    %5263 = vmatprep.mubr.f32.mxu0 0.0
    %v5264 = vand.u32 %v4836, 4294901760
    %v5265 = vsub.f32 %v4836, %v5264
    %v5266 = vand.u32 %v5265, 4294901760
    %5267 = vmatmul.mubr.f32.gmra.mrb[0].mxu0 %v5266
    %v5268 = vpop.f32.mrb[0].mxu0
    %v5269 = vadd.f32 %v5180, %v5268
    %v5270 = vpop.f32.mrb[0].mxu0
    %5271 = vdwg.mxu0
    %5272 = vmatprep.subr.mxu0 0.0
    %v5273 = vand.u32 %v172, 4294901760
    %v5274 = vsub.f32 %v172, %v5273
    %v5275 = vand.u32 %v5274, 4294901760
    %5276 = vmatpush1.msra.mxu0 %v5275
    %5277 = vmatprep.subr.mxu0 0.0
    %v5278 = vand.u32 %v173, 4294901760
    %v5279 = vsub.f32 %v173, %v5278
    %v5280 = vand.u32 %v5279, 4294901760
    %5281 = vmatpush1.msra.mxu0 %v5280
    %5282 = vmatprep.subr.mxu0 0.0
    %v5283 = vand.u32 %v174, 4294901760
    %v5284 = vsub.f32 %v174, %v5283
    %v5285 = vand.u32 %v5284, 4294901760
    %5286 = vmatpush1.msra.mxu0 %v5285
    %5287 = vmatprep.subr.mxu0 0.0
    %v5288 = vand.u32 %v175, 4294901760
    %v5289 = vsub.f32 %v175, %v5288
    %v5290 = vand.u32 %v5289, 4294901760
    %5291 = vmatpush1.msra.mxu0 %v5290
    %5292 = vmatprep.subr.mxu0 0.0
    %v5293 = vand.u32 %v176, 4294901760
    %v5294 = vsub.f32 %v176, %v5293
    %v5295 = vand.u32 %v5294, 4294901760
    %5296 = vmatpush1.msra.mxu0 %v5295
    %5297 = vmatprep.subr.mxu0 0.0
    %v5298 = vand.u32 %v177, 4294901760
    %v5299 = vsub.f32 %v177, %v5298
    %v5300 = vand.u32 %v5299, 4294901760
    %5301 = vmatpush1.msra.mxu0 %v5300
    %5302 = vmatprep.subr.mxu0 0.0
    %v5303 = vand.u32 %v178, 4294901760
    %v5304 = vsub.f32 %v178, %v5303
    %v5305 = vand.u32 %v5304, 4294901760
    %5306 = vmatpush1.msra.mxu0 %v5305
    %5307 = vmatprep.subr.mxu0 0.0
    %v5308 = vand.u32 %v179, 4294901760
    %v5309 = vsub.f32 %v179, %v5308
    %v5310 = vand.u32 %v5309, 4294901760
    %5311 = vmatpush1.msra.mxu0 %v5310
    %5312 = vmatprep.subr.mxu0 0.0
    %v5313 = vand.u32 %v180, 4294901760
    %v5314 = vsub.f32 %v180, %v5313
    %v5315 = vand.u32 %v5314, 4294901760
    %5316 = vmatpush1.msra.mxu0 %v5315
    %5317 = vmatprep.subr.mxu0 0.0
    %v5318 = vand.u32 %v181, 4294901760
    %v5319 = vsub.f32 %v181, %v5318
    %v5320 = vand.u32 %v5319, 4294901760
    %5321 = vmatpush1.msra.mxu0 %v5320
    %5322 = vmatprep.subr.mxu0 0.0
    %v5323 = vand.u32 %v182, 4294901760
    %v5324 = vsub.f32 %v182, %v5323
    %v5325 = vand.u32 %v5324, 4294901760
    %5326 = vmatpush1.msra.mxu0 %v5325
    %5327 = vmatprep.subr.mxu0 0.0
    %v5328 = vand.u32 %v183, 4294901760
    %v5329 = vsub.f32 %v183, %v5328
    %v5330 = vand.u32 %v5329, 4294901760
    %5331 = vmatpush1.msra.mxu0 %v5330
    %5332 = vmatprep.subr.mxu0 0.0
    %v5333 = vand.u32 %v184, 4294901760
    %v5334 = vsub.f32 %v184, %v5333
    %v5335 = vand.u32 %v5334, 4294901760
    %5336 = vmatpush1.msra.mxu0 %v5335
    %5337 = vmatprep.subr.mxu0 0.0
    %v5338 = vand.u32 %v185, 4294901760
    %v5339 = vsub.f32 %v185, %v5338
    %v5340 = vand.u32 %v5339, 4294901760
    %5341 = vmatpush1.msra.mxu0 %v5340
    %5342 = vmatprep.subr.mxu0 0.0
    %v5343 = vand.u32 %v186, 4294901760
    %v5344 = vsub.f32 %v186, %v5343
    %v5345 = vand.u32 %v5344, 4294901760
    %5346 = vmatpush1.msra.mxu0 %v5345
    %5347 = vmatprep.subr.mxu0 0.0
    %v5348 = vand.u32 %v187, 4294901760
    %v5349 = vsub.f32 %v187, %v5348
    %v5350 = vand.u32 %v5349, 4294901760
    %5351 = vmatpush1.msra.mxu0 %v5350
    %5352 = vmatprep.subr.mxu0 0.0
    %5353 = vmatpush1.msra.mxu0 0.0
    %5354 = vmatprep.subr.mxu0 0.0
    %5355 = vmatpush1.msra.mxu0 0.0
    %5356 = vmatprep.subr.mxu0 0.0
    %5357 = vmatpush1.msra.mxu0 0.0
    %5358 = vmatprep.subr.mxu0 0.0
    %5359 = vmatpush1.msra.mxu0 0.0
    %5360 = vmatprep.subr.mxu0 0.0
    %5361 = vmatpush1.msra.mxu0 0.0
    %5362 = vmatprep.subr.mxu0 0.0
    %5363 = vmatpush1.msra.mxu0 0.0
    %5364 = vmatprep.subr.mxu0 0.0
    %5365 = vmatpush1.msra.mxu0 0.0
    %5366 = vmatprep.subr.mxu0 0.0
    %5367 = vmatpush1.msra.mxu0 0.0
    %5368 = vmatprep.subr.mxu0 0.0
    %5369 = vmatpush1.msra.mxu0 0.0
    %5370 = vmatprep.subr.mxu0 0.0
    %5371 = vmatpush1.msra.mxu0 0.0
    %5372 = vmatprep.subr.mxu0 0.0
    %5373 = vmatpush1.msra.mxu0 0.0
    %5374 = vmatprep.subr.mxu0 0.0
    %5375 = vmatpush1.msra.mxu0 0.0
    %5376 = vmatprep.subr.mxu0 0.0
    %5377 = vmatpush1.msra.mxu0 0.0
    %5378 = vmatprep.subr.mxu0 0.0
    %5379 = vmatpush1.msra.mxu0 0.0
    %5380 = vmatprep.subr.mxu0 0.0
    %5381 = vmatpush1.msra.mxu0 0.0
    %5382 = vmatprep.subr.mxu0 0.0
    %5383 = vmatpush1.msra.mxu0 0.0
    %5384 = vmatprep.mubr.f32.mxu0 0.0
    %v5385 = vand.u32 %v4836, 4294901760
    %5386 = vmatmul.mubr.f32.gmra.mrb[0].mxu0 %v5385
    %v5387 = vpop.f32.mrb[0].mxu0
    %v5388 = vadd.f32 %v5269, %v5387
    %v5389 = vpop.f32.mrb[0].mxu0
    %5390 = vdwg.mxu0
    %5391 = vmatprep.subr.mxu0 0.0
    %v5392 = vand.u32 %v172, 4294901760
    %5393 = vmatpush1.msra.mxu0 %v5392
    %5394 = vmatprep.subr.mxu0 0.0
    %v5395 = vand.u32 %v173, 4294901760
    %5396 = vmatpush1.msra.mxu0 %v5395
    %5397 = vmatprep.subr.mxu0 0.0
    %v5398 = vand.u32 %v174, 4294901760
    %5399 = vmatpush1.msra.mxu0 %v5398
    %5400 = vmatprep.subr.mxu0 0.0
    %v5401 = vand.u32 %v175, 4294901760
    %5402 = vmatpush1.msra.mxu0 %v5401
    %5403 = vmatprep.subr.mxu0 0.0
    %v5404 = vand.u32 %v176, 4294901760
    %5405 = vmatpush1.msra.mxu0 %v5404
    %5406 = vmatprep.subr.mxu0 0.0
    %v5407 = vand.u32 %v177, 4294901760
    %5408 = vmatpush1.msra.mxu0 %v5407
    %5409 = vmatprep.subr.mxu0 0.0
    %v5410 = vand.u32 %v178, 4294901760
    %5411 = vmatpush1.msra.mxu0 %v5410
    %5412 = vmatprep.subr.mxu0 0.0
    %v5413 = vand.u32 %v179, 4294901760
    %5414 = vmatpush1.msra.mxu0 %v5413
    %5415 = vmatprep.subr.mxu0 0.0
    %v5416 = vand.u32 %v180, 4294901760
    %5417 = vmatpush1.msra.mxu0 %v5416
    %5418 = vmatprep.subr.mxu0 0.0
    %v5419 = vand.u32 %v181, 4294901760
    %5420 = vmatpush1.msra.mxu0 %v5419
    %5421 = vmatprep.subr.mxu0 0.0
    %v5422 = vand.u32 %v182, 4294901760
    %5423 = vmatpush1.msra.mxu0 %v5422
    %5424 = vmatprep.subr.mxu0 0.0
    %v5425 = vand.u32 %v183, 4294901760
    %5426 = vmatpush1.msra.mxu0 %v5425
    %5427 = vmatprep.subr.mxu0 0.0
    %v5428 = vand.u32 %v184, 4294901760
    %5429 = vmatpush1.msra.mxu0 %v5428
    %5430 = vmatprep.subr.mxu0 0.0
    %v5431 = vand.u32 %v185, 4294901760
    %5432 = vmatpush1.msra.mxu0 %v5431
    %5433 = vmatprep.subr.mxu0 0.0
    %v5434 = vand.u32 %v186, 4294901760
    %5435 = vmatpush1.msra.mxu0 %v5434
    %5436 = vmatprep.subr.mxu0 0.0
    %v5437 = vand.u32 %v187, 4294901760
    %5438 = vmatpush1.msra.mxu0 %v5437
    %5439 = vmatprep.subr.mxu0 0.0
    %5440 = vmatpush1.msra.mxu0 0.0
    %5441 = vmatprep.subr.mxu0 0.0
    %5442 = vmatpush1.msra.mxu0 0.0
    %5443 = vmatprep.subr.mxu0 0.0
    %5444 = vmatpush1.msra.mxu0 0.0
    %5445 = vmatprep.subr.mxu0 0.0
    %5446 = vmatpush1.msra.mxu0 0.0
    %5447 = vmatprep.subr.mxu0 0.0
    %5448 = vmatpush1.msra.mxu0 0.0
    %5449 = vmatprep.subr.mxu0 0.0
    %5450 = vmatpush1.msra.mxu0 0.0
    %5451 = vmatprep.subr.mxu0 0.0
    %5452 = vmatpush1.msra.mxu0 0.0
    %5453 = vmatprep.subr.mxu0 0.0
    %5454 = vmatpush1.msra.mxu0 0.0
    %5455 = vmatprep.subr.mxu0 0.0
    %5456 = vmatpush1.msra.mxu0 0.0
    %5457 = vmatprep.subr.mxu0 0.0
    %5458 = vmatpush1.msra.mxu0 0.0
    %5459 = vmatprep.subr.mxu0 0.0
    %5460 = vmatpush1.msra.mxu0 0.0
    %5461 = vmatprep.subr.mxu0 0.0
    %5462 = vmatpush1.msra.mxu0 0.0
    %5463 = vmatprep.subr.mxu0 0.0
    %5464 = vmatpush1.msra.mxu0 0.0
    %5465 = vmatprep.subr.mxu0 0.0
    %5466 = vmatpush1.msra.mxu0 0.0
    %5467 = vmatprep.subr.mxu0 0.0
    %5468 = vmatpush1.msra.mxu0 0.0
    %5469 = vmatprep.subr.mxu0 0.0
    %5470 = vmatpush1.msra.mxu0 0.0
    %5471 = vmatprep.mubr.f32.mxu0 0.0
    %v5472 = vand.u32 %v4836, 4294901760
    %5473 = vmatmul.mubr.f32.gmra.mrb[0].mxu0 %v5472
    %v5474 = vpop.f32.mrb[0].mxu0
    %v5475 = vadd.f32 %v5388, %v5474
    %v5476 = vpop.f32.mrb[0].mxu0
    %5477 = vdwg.mxu0
    %v5478 = vlog2.pop %v5475
    %v5479 = vmul.f32 %v5478, 0.6931472
    %v5480 = vadd.f32 %v5479, %v4833
    %v5481 = vadd.f32 %v5480, %v845
    %v5482 = vadd.f32 %v5481, %v4829
    %vm5483 = vcmp.gt.f32.partialorder %v4831, 0.5
    %v5484 = vsel %vm5483, 1, 0
    %5485 = vset.pattern.permute.xlu0 0
    %5486 = vperm.xlu0 %5485, %v5484
    %v5487 = vpop.permute.xlu0 %5486
    %vm5488 = vcmp.eq.s32.totalorder %v5487, 1
    %v5489 = vsel %vm5488, %v5482, %v4827
    %5490 = vst [vmem:[#allocation2] sm:$0xff] %v5489
    // Predicated region
    $region22: #{tpu_custom_call.1} parent=1 // pred_check
      %p5491 = pneg %p29
    $region23: #{tpu_custom_call.1} parent=1 // pred_check_branch
      %5493 = sbr.rel (%p5491) target = $region25
    $region24: #{tpu_custom_call.1} parent=1 // pred_region
      %v5494 = vld [vmem:[#allocation5 + $0x5] sm:$0x1]
      %v5495 = vlaneseq
      %v5496 = vshrl.u32 %v5495, 7
      %v5497 = vsub.s32 0, %v5496
      %v5498 = vrot.slane %v5494, %v5497
      %v5499 = vadd.f32 %v5489, %v5498
      %5500 = vmax.xlane.f32.xlu0 %v5499
      %v5501 = vpop.xlane.xlu0 %5500
      %v5502 = vsub.f32 %v5499, %v5501
      %v5503 = vmul.f32 %v5502, 1.442695
      %v5504 = vpow.pop %v5503
      %5505 = vadd.xlane.f32.xlu0 %v5504
      %v5506 = vpop.xlane.xlu0 %5505
      %v5507 = vlog2.pop %v5506
      %v5508 = vmul.f32 %v5507, 0.6931472
      %v5509 = vadd.f32 %v5501, %v5508
      %5510 = vst [vmem:[#allocation8] sm:$0xff] %v5509
    $region25: #{tpu_custom_call.1} parent=1 // pred_fallthru
      _
    // Predicated region
    $region26: #{tpu_custom_call.1} parent=1 // pred_check
      _
    $region27: #{tpu_custom_call.1} parent=1 // pred_check_branch
      %5512 = sbr.rel (0) target = $region29
    $region28: #{tpu_custom_call.1} parent=1 // pred_region
      %s5514 = ssub.s32 128, 128
      %5515 = vsyncadd [#allocation7], %s5514
      %s5517 = sshll.u32 [#allocation8], 4
      %s5518 = int_to_ptr.vmem [resolvable:$true] %s5517
      %5520 = dma.vmem_to_hbm [thread:$0]  %s5518, 128, %s3, [#allocation7]
    $region29: #{tpu_custom_call.1} parent=1 // pred_fallthru
      _
    // Predicated region
    $region30: #{tpu_custom_call.1} parent=1 // pred_check
      _
    $region31: #{tpu_custom_call.1} parent=1 // pred_check_branch
      %5522 = sbr.rel (0) target = $region33
    $region32: #{tpu_custom_call.1} parent=1 // pred_region
      %5523 = dma.done [#allocation7], 128
    $region33: #{tpu_custom_call.1} parent=1 // pred_fallthru
      _
    %5524 = vsyncpa [#allocation6], 1
    %5525 = vsyncpa [#allocation7], 1

</llo_original>
